<compile_context>
chip_gen: v7x
topology: tpu7x:2x2x1
jax: 0.10.0
libtpu: 0.0.40
codegen_flags: <defaults>
</compile_context>

<pallas_src>
CONV_KERNEL_SIZE = 3
CONV_STRIDE = 2
CONV_PADDING = 1

import functools
import math

import jax
import jax.numpy as jnp
from jax.experimental import pallas as pl
from jax.experimental.pallas import tpu as pltpu

_VMEM_LIMIT = 48 * 1024 * 1024  # explicit scoped-VMEM budget (safe on v5e/v6e/v7x)


def _round_up(x, m):
    return (x + m - 1) // m * m


def _choose_tk(kp):
    """Pick a K tile that divides kp (kp is always a multiple of 128)."""
    if kp <= 512:
        return kp
    for tk in (512, 384, 256, 128):
        if kp % tk == 0:
            return tk
    return kp


# ----------------------------------------------------------------------------
# Pallas kernels
# ----------------------------------------------------------------------------
def _matmul_bias_act_kernel(x_ref, w_ref, b_ref, o_ref, acc_ref, *, act):
    """acc += x @ w over the K grid axis; bias + activation in the epilogue."""
    @pl.when(pl.program_id(1) == 0)
    def _():
        acc_ref[...] = jnp.zeros_like(acc_ref)

    acc_ref[...] += jnp.dot(x_ref[...], w_ref[...],
                            preferred_element_type=jnp.float32)

    @pl.when(pl.program_id(1) == pl.num_programs(1) - 1)
    def _():
        y = acc_ref[...] + b_ref[...]          # (1, Np) broadcasts over rows
        if act == "relu":
            y = jnp.maximum(y, 0.0)
        elif act == "sigmoid":
            y = jax.nn.sigmoid(y)
        o_ref[...] = y


def _heads_reparam_kernel(x_ref, w_ref, b_ref, eps_ref,
                          mu_ref, lv_ref, z_ref, acc_ref, *, np_half):
    """Fused fc_mu||fc_logvar matmul with reparameterize in the epilogue."""
    @pl.when(pl.program_id(1) == 0)
    def _():
        acc_ref[...] = jnp.zeros_like(acc_ref)

    acc_ref[...] += jnp.dot(x_ref[...], w_ref[...],
                            preferred_element_type=jnp.float32)

    @pl.when(pl.program_id(1) == pl.num_programs(1) - 1)
    def _():
        y = acc_ref[...] + b_ref[...]
        mu = y[:, :np_half]
        logvar = y[:, np_half:]
        mu_ref[...] = mu
        lv_ref[...] = logvar
        z_ref[...] = mu + eps_ref[...] * jnp.exp(0.5 * logvar)


def _bias_act_kernel(x_ref, b_ref, o_ref, *, act):
    y = x_ref[...] + b_ref[...]
    if act == "relu":
        y = jnp.maximum(y, 0.0)
    elif act == "sigmoid":
        y = jax.nn.sigmoid(y)
    o_ref[...] = y


# ----------------------------------------------------------------------------
# Pallas wrappers
# ----------------------------------------------------------------------------
def matmul_bias_act(x, w_p, b_p, n_out, act="none"):
    """act(x @ w + b).  x:(M,K) f32; w_p:(Kp,Np) pre-padded bf16; b_p:(1,Np) f32."""
    M, K = x.shape
    Kp, Np = w_p.shape
    if b_p is None:
        b_p = jnp.zeros((1, Np), jnp.float32)

    Mp8 = _round_up(M, 8)
    TM = min(Mp8, 512)
    Mp = _round_up(Mp8, TM)
    TK = _choose_tk(Kp)

    xp = jnp.pad(x.astype(jnp.bfloat16), ((0, Mp - M), (0, Kp - K)))

    out = pl.pallas_call(
        functools.partial(_matmul_bias_act_kernel, act=act),
        out_shape=jax.ShapeDtypeStruct((Mp, Np), jnp.float32),
        grid=(Mp // TM, Kp // TK),
        in_specs=[
            pl.BlockSpec((TM, TK), lambda i, k: (i, k)),
            pl.BlockSpec((TK, Np), lambda i, k: (k, 0)),
            pl.BlockSpec((1, Np), lambda i, k: (0, 0)),
        ],
        out_specs=pl.BlockSpec((TM, Np), lambda i, k: (i, 0)),
        scratch_shapes=[pltpu.VMEM((TM, Np), jnp.float32)],
        compiler_params=pltpu.CompilerParams(
            dimension_semantics=("parallel", "arbitrary"),
            vmem_limit_bytes=_VMEM_LIMIT),
    )(xp, w_p, b_p)
    return out[:M, :n_out]


def heads_reparam(latent_rep, w_p, b_p, eps, latent_dim):
    """Fused (fc_mu || fc_logvar) matmul + reparameterize.  Returns mu, logvar, z."""
    M, K = latent_rep.shape
    Kp, N2 = w_p.shape
    Lp = N2 // 2

    Mp8 = _round_up(M, 8)
    TM = min(Mp8, 512)
    Mp = _round_up(Mp8, TM)
    TK = _choose_tk(Kp)

    xp = jnp.pad(latent_rep.astype(jnp.bfloat16), ((0, Mp - M), (0, Kp - K)))
    ep = jnp.pad(eps.astype(jnp.float32), ((0, Mp - M), (0, Lp - latent_dim)))

    mu, lv, z = pl.pallas_call(
        functools.partial(_heads_reparam_kernel, np_half=Lp),
        out_shape=(jax.ShapeDtypeStruct((Mp, Lp), jnp.float32),) * 3,
        grid=(Mp // TM, Kp // TK),
        in_specs=[
            pl.BlockSpec((TM, TK), lambda i, k: (i, k)),
            pl.BlockSpec((TK, N2), lambda i, k: (k, 0)),
            pl.BlockSpec((1, N2), lambda i, k: (0, 0)),
            pl.BlockSpec((TM, Lp), lambda i, k: (i, 0)),
        ],
        out_specs=[pl.BlockSpec((TM, Lp), lambda i, k: (i, 0))] * 3,
        scratch_shapes=[pltpu.VMEM((TM, N2), jnp.float32)],
        compiler_params=pltpu.CompilerParams(
            dimension_semantics=("parallel", "arbitrary"),
            vmem_limit_bytes=_VMEM_LIMIT),
    )(xp, w_p, b_p, ep)
    return mu[:M, :latent_dim], lv[:M, :latent_dim], z[:M, :latent_dim]


def bias_act(x, b_p, n_out, act):
    """act(x + b), x:(M,N) f32, b_p:(1,Np) pre-padded f32."""
    M, N = x.shape
    Np = b_p.shape[1]
    Mp8 = _round_up(M, 8)
    TM = min(Mp8, 1024)
    Mp = _round_up(Mp8, TM)
    xp = jnp.pad(x, ((0, Mp - M), (0, Np - N)))

    out = pl.pallas_call(
        functools.partial(_bias_act_kernel, act=act),
        out_shape=jax.ShapeDtypeStruct((Mp, Np), jnp.float32),
        grid=(Mp // TM,),
        in_specs=[pl.BlockSpec((TM, Np), lambda i: (i, 0)),
                  pl.BlockSpec((1, Np), lambda i: (0, 0))],
        out_specs=pl.BlockSpec((TM, Np), lambda i: (i, 0)),
        compiler_params=pltpu.CompilerParams(
            dimension_semantics=("parallel",),
            vmem_limit_bytes=_VMEM_LIMIT),
    )(xp, b_p)
    return out[:M, :n_out]


# ----------------------------------------------------------------------------
# Conv / ConvTranspose (NHWC, pre-processed weights)
# ----------------------------------------------------------------------------
def conv2d_nhwc(x, w_p, b_p, c_out, stride, pad, act):
    """x:(B,H,W,C) NHWC; w_p:(round_up(k*k*C,128), round_up(c_out,128)) bf16."""
    B, H, W, C = x.shape
    k = CONV_KERNEL_SIZE
    OH = (H + 2 * pad - k) // stride + 1
    OW = (W + 2 * pad - k) // stride + 1
    xp = jnp.pad(x, ((0, 0), (pad, pad), (pad, pad), (0, 0)))
    patches = []
    for i in range(k):
        for j in range(k):
            patches.append(xp[:, i:i + stride * (OH - 1) + 1:stride,
                              j:j + stride * (OW - 1) + 1:stride, :])
    col = jnp.concatenate(patches, axis=-1).reshape(B * OH * OW, k * k * C)
    out = matmul_bias_act(col, w_p, b_p, c_out, act=act)
    return out.reshape(B, OH, OW, c_out)


def conv_transpose2d_nhwc(x, w_p, b_p, c_out, stride, pad, out_pad, act):
    """Dense matmul over real input pixels + col2im scatter-add (no zero dilation)."""
    B, H, W, C_in = x.shape
    k = CONV_KERNEL_SIZE
    # per-input-pixel, per-tap contributions: (B*H*W, k*k*c_out)
    col = matmul_bias_act(x.reshape(B * H * W, C_in), w_p, None,
                          k * k * c_out, act="none")
    col = col.reshape(B, H, W, k, k, c_out)

    Hb = (H - 1) * stride + k + out_pad
    Wb = (W - 1) * stride + k + out_pad
    y = jnp.zeros((B, Hb, Wb, c_out), jnp.float32)
    for i in range(k):
        for j in range(k):
            y = y.at[:, i:i + (H - 1) * stride + 1:stride,
                     j:j + (W - 1) * stride + 1:stride, :].add(col[:, :, :, i, j, :])

    OH = (H - 1) * stride - 2 * pad + k + out_pad
    OW = (W - 1) * stride - 2 * pad + k + out_pad
    y = y[:, pad:pad + OH, pad:pad + OW, :]
    y = bias_act(y.reshape(B * OH * OW, c_out), b_p, c_out, act)
    return y.reshape(B, OH, OW, c_out)


# ----------------------------------------------------------------------------
# Parameter init: weights pre-transposed / pre-padded (bf16), biases padded (f32)
# ----------------------------------------------------------------------------
def _uniform(key, shape, bound):
    return jax.random.uniform(key, shape, jnp.float32, -bound, bound)


def _pad2(a, dtype):
    p0 = _round_up(a.shape[0], 128) - a.shape[0] if a.shape[0] > 1 else 0
    p1 = _round_up(a.shape[1], 128) - a.shape[1]
    return jnp.pad(a, ((0, p0), (0, p1))).astype(dtype)


def init_vae_params(key, input_h, input_w, latent_dim, in_channels, filters):
    k = CONV_KERNEL_SIZE
    keys = iter(jax.random.split(key, 64))
    params = {}
    cfg = {"latent_dim": latent_dim, "in_channels": in_channels}

    # ---- Encoder convs ----
    enc_convs, enc_channels = [], []
    c_in = in_channels
    h, w = input_h, input_w
    for c_out in filters:
        bound = 1.0 / math.sqrt(c_in * k * k)
        w_raw = _uniform(next(keys), (c_out, c_in, k, k), bound)
        b_raw = _uniform(next(keys), (c_out,), bound)
        # row ordering (tap_i, tap_j, channel) matches the im2col concat order
        w_mat = w_raw.transpose(2, 3, 1, 0).reshape(k * k * c_in, c_out)
        enc_convs.append((_pad2(w_mat, jnp.bfloat16),
                          _pad2(b_raw.reshape(1, -1), jnp.float32)))
        enc_channels.append(c_out)
        h = (h + 2 * CONV_PADDING - k) // CONV_STRIDE + 1
        w = (w + 2 * CONV_PADDING - k) // CONV_STRIDE + 1
        c_in = c_out
    params["enc_convs"] = enc_convs
    cfg["enc_channels"] = enc_channels

    flat = filters[-1] * h * w
    # The reference PyTorch module builds fc_mu/fc_logvar with in_features equal
    # to the *flattened* encoder size but applies them to the latent_dim-sized
    # encoder output, so its forward only runs when latent_dim == flattened size.
    if latent_dim != flat:
        raise ValueError(
            f"VAE forward (as defined in the reference module) requires "
            f"latent_dim == flattened encoder size ({flat}), got {latent_dim}.")

    bound = 1.0 / math.sqrt(flat)
    params["enc_linear"] = (
        _pad2(_uniform(next(keys), (flat, latent_dim), bound), jnp.bfloat16),
        _pad2(_uniform(next(keys), (latent_dim,), bound).reshape(1, -1), jnp.float32))

    # ---- fused fc_mu || fc_logvar heads ----
    Lp = _round_up(latent_dim, 128)
    Kp = _round_up(flat, 128)
    w_mu = _uniform(next(keys), (flat, latent_dim), bound)
    b_mu = _uniform(next(keys), (latent_dim,), bound)
    w_lv = _uniform(next(keys), (flat, latent_dim), bound)
    b_lv = _uniform(next(keys), (latent_dim,), bound)
    padw = lambda m: jnp.pad(m, ((0, Kp - flat), (0, Lp - latent_dim)))
    padb = lambda v: jnp.pad(v.reshape(1, -1), ((0, 0), (0, Lp - latent_dim)))
    params["heads"] = (
        jnp.concatenate([padw(w_mu), padw(w_lv)], axis=1).astype(jnp.bfloat16),
        jnp.concatenate([padb(b_mu), padb(b_lv)], axis=1).astype(jnp.float32))

    # ---- Decoder linear ----
    bound = 1.0 / math.sqrt(latent_dim)
    params["dec_linear"] = (
        _pad2(_uniform(next(keys), (latent_dim, flat), bound), jnp.bfloat16),
        _pad2(_uniform(next(keys), (flat,), bound).reshape(1, -1), jnp.float32))
    cfg["dec_unflatten"] = (filters[-1], h, w)
    cfg["dec_flat"] = flat

    # ---- Decoder ConvTranspose layers ----
    dec_convts, dec_channels = [], []
    c_in = filters[-1]
    for c_out in reversed(filters):
        bound = 1.0 / math.sqrt(c_out * k * k)
        w_raw = _uniform(next(keys), (c_in, c_out, k, k), bound)   # PyTorch (Cin,Cout,k,k)
        b_raw = _uniform(next(keys), (c_out,), bound)
        # column ordering (tap_i, tap_j, c_out) matches the col2im scatter order
        w_mat = w_raw.transpose(0, 2, 3, 1).reshape(c_in, k * k * c_out)
        dec_convts.append((_pad2(w_mat, jnp.bfloat16),
                           _pad2(b_raw.reshape(1, -1), jnp.float32)))
        dec_channels.append(c_out)
        c_in = c_out
    params["dec_convts"] = dec_convts
    cfg["dec_channels"] = dec_channels

    # ---- Final ConvTranspose (stride 1) + Sigmoid ----
    bound = 1.0 / math.sqrt(in_channels * k * k)
    w_raw = _uniform(next(keys), (c_in, in_channels, k, k), bound)
    b_raw = _uniform(next(keys), (in_channels,), bound)
    w_mat = w_raw.transpose(0, 2, 3, 1).reshape(c_in, k * k * in_channels)
    params["dec_final"] = (_pad2(w_mat, jnp.bfloat16),
                           _pad2(b_raw.reshape(1, -1), jnp.float32))
    return params, cfg


# ----------------------------------------------------------------------------
# VAE forward
# ----------------------------------------------------------------------------
def vae_forward(cfg, params, x_nchw, eps_key):
    B = x_nchw.shape[0]
    h = jnp.transpose(x_nchw, (0, 2, 3, 1)).astype(jnp.float32)    # NCHW -> NHWC

    # Encoder: Conv+ReLU stack, flatten, Linear
    for (w_p, b_p), c_out in zip(params["enc_convs"], cfg["enc_channels"]):
        h = conv2d_nhwc(h, w_p, b_p, c_out, CONV_STRIDE, CONV_PADDING, act="relu")
    flat = h.reshape(B, -1)
    w_p, b_p = params["enc_linear"]
    latent_rep = matmul_bias_act(flat, w_p, b_p, cfg["latent_dim"], act="none")

    # Fused mu/logvar heads + reparameterize (eps ~ N(0,1))
    eps = jax.random.normal(eps_key, (B, cfg["latent_dim"]), jnp.float32)
    w_p, b_p = params["heads"]
    mu, logvar, z = heads_reparam(latent_rep, w_p, b_p, eps, cfg["latent_dim"])

    # Decoder: Linear, unflatten, ConvTranspose+ReLU stack, final ConvTranspose+Sigmoid
    w_p, b_p = params["dec_linear"]
    h = matmul_bias_act(z, w_p, b_p, cfg["dec_flat"], act="none")
    c, hh, ww = cfg["dec_unflatten"]
    h = h.reshape(B, hh, ww, c)
    for (w_p, b_p), c_out in zip(params["dec_convts"], cfg["dec_channels"]):
        h = conv_transpose2d_nhwc(h, w_p, b_p, c_out, CONV_STRIDE, CONV_PADDING, 1,
                                  act="relu")
    w_p, b_p = params["dec_final"]
    h = conv_transpose2d_nhwc(h, w_p, b_p, cfg["in_channels"], 1, CONV_PADDING, 0,
                              act="sigmoid")
    recon = jnp.transpose(h, (0, 3, 1, 2))                          # NHWC -> NCHW
    return recon, mu, logvar


# ----------------------------------------------------------------------------
if __name__ == "__main__":
    key = jax.random.PRNGKey(0)
    B, C_in, H, W = 2, 1, 16, 16
    filters = [8, 16, 32]     # 16 -> 8 -> 4 -> 2 spatially; flattened = 32*2*2 = 128
    latent_dim = 128          # must equal flattened size (reference-module quirk)

    k_params, k_x, k_eps = jax.random.split(key, 3)
    params, cfg = init_vae_params(k_params, H, W, latent_dim, C_in, filters)
    x = jax.random.uniform(k_x, (B, C_in, H, W), jnp.float32)

    forward = jax.jit(functools.partial(vae_forward, cfg))
    recon, mu, logvar = forward(params, x, k_eps)
    jax.block_until_ready((recon, mu, logvar))

    assert recon.shape == (B, C_in, H, W)
    assert mu.shape == (B, latent_dim) and logvar.shape == (B, latent_dim)
    assert bool(jnp.all(jnp.isfinite(recon)))
    assert bool(jnp.all((recon >= 0.0) & (recon <= 1.0)))   # sigmoid output range
    print("KERNEL_OK")
</pallas_src>

<mosaic_0001>
module attributes {stable_mosaic.version = 11 : i64} {
  func.func @_matmul_bias_act_kernel(%arg0: i32, %arg1: i32, %arg2: memref<128x128xbf16, #tpu.memory_space<vmem>>, %arg3: memref<128x128xbf16, #tpu.memory_space<vmem>>, %arg4: memref<1x128xf32, #tpu.memory_space<vmem>>, %arg5: memref<128x128xf32, #tpu.memory_space<vmem>>, %arg6: memref<128x128xf32, #tpu.memory_space<vmem>>) attributes {dimension_semantics = [#tpu.dimension_semantics<parallel>, #tpu.dimension_semantics<arbitrary>], iteration_bounds = array<i64: 1, 1>, scalar_prefetch = 0 : i64, scratch_operands = 1 : i64, tpu.core_type = #tpu.core_type<tc>, window_params = [{transform_indices = @transform_0, window_bounds = array<i64: 128, 128>}, {transform_indices = @transform_1, window_bounds = array<i64: 128, 128>}, {pipeline_mode = #tpu.pipeline_mode<synchronous>, transform_indices = @transform_2, window_bounds = array<i64: 1, 128>}, {transform_indices = @transform_3, window_bounds = array<i64: 128, 128>}]} {
    %c0_i32 = arith.constant 0 : i32
    %0 = arith.cmpi eq, %arg1, %c0_i32 : i32
    %1 = arith.extui %0 : i1 to i32
    %c0_i32_0 = arith.constant 0 : i32
    %2 = arith.cmpi ne, %1, %c0_i32_0 : i32
    scf.if %2 {
      %cst_10 = arith.constant 0.000000e+00 : f32
      %12 = vector.broadcast %cst_10 : f32 to vector<128x128xf32>
      %c0_11 = arith.constant 0 : index
      %c0_12 = arith.constant 0 : index
      %13 = vector.load %arg6[%c0_11, %c0_12] : memref<128x128xf32, #tpu.memory_space<vmem>>, vector<128x128xf32>
      tpu.vector_store %arg6[%c0_11, %c0_12], %12 {strides = array<i32>} : memref<128x128xf32, #tpu.memory_space<vmem>>, vector<128x128xf32>,
    } else {
    }
    %c0 = arith.constant 0 : index
    %c0_1 = arith.constant 0 : index
    %3 = vector.load %arg6[%c0, %c0_1] : memref<128x128xf32, #tpu.memory_space<vmem>>, vector<128x128xf32>
    %c0_2 = arith.constant 0 : index
    %c0_3 = arith.constant 0 : index
    %4 = vector.load %arg2[%c0_2, %c0_3] : memref<128x128xbf16, #tpu.memory_space<vmem>>, vector<128x128xbf16>
    %c0_4 = arith.constant 0 : index
    %c0_5 = arith.constant 0 : index
    %5 = vector.load %arg3[%c0_4, %c0_5] : memref<128x128xbf16, #tpu.memory_space<vmem>>, vector<128x128xbf16>
    %cst = arith.constant dense<0.000000e+00> : vector<128x128xf32>
    %6 = tpu.matmul %4, %5, %cst {dimension_numbers = #tpu.dot_dimension_numbers<[1], [0], [0], [1], [0, 0, 1, 1], [], []>} : vector<128x128xbf16>, vector<128x128xbf16>, vector<128x128xf32> -> vector<128x128xf32>
    %7 = arith.addf %3, %6 : vector<128x128xf32>
    %c0_6 = arith.constant 0 : index
    %c0_7 = arith.constant 0 : index
    %8 = vector.load %arg6[%c0_6, %c0_7] : memref<128x128xf32, #tpu.memory_space<vmem>>, vector<128x128xf32>
    tpu.vector_store %arg6[%c0_6, %c0_7], %7 {strides = array<i32>} : memref<128x128xf32, #tpu.memory_space<vmem>>, vector<128x128xf32>,
    %c0_i32_8 = arith.constant 0 : i32
    %9 = arith.cmpi eq, %arg1, %c0_i32_8 : i32
    %10 = arith.extui %9 : i1 to i32
    %c0_i32_9 = arith.constant 0 : i32
    %11 = arith.cmpi ne, %10, %c0_i32_9 : i32
    scf.if %11 {
      %c0_10 = arith.constant 0 : index
      %c0_11 = arith.constant 0 : index
      %12 = vector.load %arg6[%c0_10, %c0_11] : memref<128x128xf32, #tpu.memory_space<vmem>>, vector<128x128xf32>
      %c0_12 = arith.constant 0 : index
      %c0_13 = arith.constant 0 : index
      %13 = vector.load %arg4[%c0_12, %c0_13] : memref<1x128xf32, #tpu.memory_space<vmem>>, vector<1x128xf32>
      %14 = vector.broadcast %13 : vector<1x128xf32> to vector<128x128xf32>
      %15 = arith.addf %12, %14 : vector<128x128xf32>
      %cst_14 = arith.constant 0.000000e+00 : f32
      %16 = vector.broadcast %cst_14 : f32 to vector<128x128xf32>
      %17 = arith.maximumf %15, %16 : vector<128x128xf32>
      %c0_15 = arith.constant 0 : index
      %c0_16 = arith.constant 0 : index
      %18 = vector.load %arg5[%c0_15, %c0_16] : memref<128x128xf32, #tpu.memory_space<vmem>>, vector<128x128xf32>
      tpu.vector_store %arg5[%c0_15, %c0_16], %17 {strides = array<i32>} : memref<128x128xf32, #tpu.memory_space<vmem>>, vector<128x128xf32>,
    } else {
    }
    return
  }
  func.func @transform_0(%arg0: i32, %arg1: i32) -> (i32, i32) {
    %c0_i32 = arith.constant 0 : i32
    return %arg0, %arg1 : i32, i32
  }
  func.func @transform_1(%arg0: i32, %arg1: i32) -> (i32, i32) {
    %c0_i32 = arith.constant 0 : i32
    %c0_i32_0 = arith.constant 0 : i32
    return %arg1, %c0_i32 : i32, i32
  }
  func.func @transform_2(%arg0: i32, %arg1: i32) -> (i32, i32) {
    %c0_i32 = arith.constant 0 : i32
    %c0_i32_0 = arith.constant 0 : i32
    %c0_i32_1 = arith.constant 0 : i32
    return %c0_i32, %c0_i32_0 : i32, i32
  }
  func.func @transform_3(%arg0: i32, %arg1: i32) -> (i32, i32) {
    %c0_i32 = arith.constant 0 : i32
    %c0_i32_0 = arith.constant 0 : i32
    return %arg0, %c0_i32 : i32, i32
  }
}

module attributes {stable_mosaic.version = 11 : i64} {
  func.func @_matmul_bias_act_kernel(%arg0: i32, %arg1: i32, %arg2: memref<32x128xbf16, #tpu.memory_space<vmem>>, %arg3: memref<128x128xbf16, #tpu.memory_space<vmem>>, %arg4: memref<1x128xf32, #tpu.memory_space<vmem>>, %arg5: memref<32x128xf32, #tpu.memory_space<vmem>>, %arg6: memref<32x128xf32, #tpu.memory_space<vmem>>) attributes {dimension_semantics = [#tpu.dimension_semantics<parallel>, #tpu.dimension_semantics<arbitrary>], iteration_bounds = array<i64: 1, 1>, scalar_prefetch = 0 : i64, scratch_operands = 1 : i64, tpu.core_type = #tpu.core_type<tc>, window_params = [{transform_indices = @transform_0, window_bounds = array<i64: 32, 128>}, {transform_indices = @transform_1, window_bounds = array<i64: 128, 128>}, {pipeline_mode = #tpu.pipeline_mode<synchronous>, transform_indices = @transform_2, window_bounds = array<i64: 1, 128>}, {transform_indices = @transform_3, window_bounds = array<i64: 32, 128>}]} {
    %c0_i32 = arith.constant 0 : i32
    %0 = arith.cmpi eq, %arg1, %c0_i32 : i32
    %1 = arith.extui %0 : i1 to i32
    %c0_i32_0 = arith.constant 0 : i32
    %2 = arith.cmpi ne, %1, %c0_i32_0 : i32
    scf.if %2 {
      %cst_10 = arith.constant 0.000000e+00 : f32
      %12 = vector.broadcast %cst_10 : f32 to vector<32x128xf32>
      %c0_11 = arith.constant 0 : index
      %c0_12 = arith.constant 0 : index
      %13 = vector.load %arg6[%c0_11, %c0_12] : memref<32x128xf32, #tpu.memory_space<vmem>>, vector<32x128xf32>
      tpu.vector_store %arg6[%c0_11, %c0_12], %12 {strides = array<i32>} : memref<32x128xf32, #tpu.memory_space<vmem>>, vector<32x128xf32>,
    } else {
    }
    %c0 = arith.constant 0 : index
    %c0_1 = arith.constant 0 : index
    %3 = vector.load %arg6[%c0, %c0_1] : memref<32x128xf32, #tpu.memory_space<vmem>>, vector<32x128xf32>
    %c0_2 = arith.constant 0 : index
    %c0_3 = arith.constant 0 : index
    %4 = vector.load %arg2[%c0_2, %c0_3] : memref<32x128xbf16, #tpu.memory_space<vmem>>, vector<32x128xbf16>
    %c0_4 = arith.constant 0 : index
    %c0_5 = arith.constant 0 : index
    %5 = vector.load %arg3[%c0_4, %c0_5] : memref<128x128xbf16, #tpu.memory_space<vmem>>, vector<128x128xbf16>
    %cst = arith.constant dense<0.000000e+00> : vector<32x128xf32>
    %6 = tpu.matmul %4, %5, %cst {dimension_numbers = #tpu.dot_dimension_numbers<[1], [0], [0], [1], [0, 0, 1, 1], [], []>} : vector<32x128xbf16>, vector<128x128xbf16>, vector<32x128xf32> -> vector<32x128xf32>
    %7 = arith.addf %3, %6 : vector<32x128xf32>
    %c0_6 = arith.constant 0 : index
    %c0_7 = arith.constant 0 : index
    %8 = vector.load %arg6[%c0_6, %c0_7] : memref<32x128xf32, #tpu.memory_space<vmem>>, vector<32x128xf32>
    tpu.vector_store %arg6[%c0_6, %c0_7], %7 {strides = array<i32>} : memref<32x128xf32, #tpu.memory_space<vmem>>, vector<32x128xf32>,
    %c0_i32_8 = arith.constant 0 : i32
    %9 = arith.cmpi eq, %arg1, %c0_i32_8 : i32
    %10 = arith.extui %9 : i1 to i32
    %c0_i32_9 = arith.constant 0 : i32
    %11 = arith.cmpi ne, %10, %c0_i32_9 : i32
    scf.if %11 {
      %c0_10 = arith.constant 0 : index
      %c0_11 = arith.constant 0 : index
      %12 = vector.load %arg6[%c0_10, %c0_11] : memref<32x128xf32, #tpu.memory_space<vmem>>, vector<32x128xf32>
      %c0_12 = arith.constant 0 : index
      %c0_13 = arith.constant 0 : index
      %13 = vector.load %arg4[%c0_12, %c0_13] : memref<1x128xf32, #tpu.memory_space<vmem>>, vector<1x128xf32>
      %14 = vector.broadcast %13 : vector<1x128xf32> to vector<32x128xf32>
      %15 = arith.addf %12, %14 : vector<32x128xf32>
      %cst_14 = arith.constant 0.000000e+00 : f32
      %16 = vector.broadcast %cst_14 : f32 to vector<32x128xf32>
      %17 = arith.maximumf %15, %16 : vector<32x128xf32>
      %c0_15 = arith.constant 0 : index
      %c0_16 = arith.constant 0 : index
      %18 = vector.load %arg5[%c0_15, %c0_16] : memref<32x128xf32, #tpu.memory_space<vmem>>, vector<32x128xf32>
      tpu.vector_store %arg5[%c0_15, %c0_16], %17 {strides = array<i32>} : memref<32x128xf32, #tpu.memory_space<vmem>>, vector<32x128xf32>,
    } else {
    }
    return
  }
  func.func @transform_0(%arg0: i32, %arg1: i32) -> (i32, i32) {
    %c0_i32 = arith.constant 0 : i32
    return %arg0, %arg1 : i32, i32
  }
  func.func @transform_1(%arg0: i32, %arg1: i32) -> (i32, i32) {
    %c0_i32 = arith.constant 0 : i32
    %c0_i32_0 = arith.constant 0 : i32
    return %arg1, %c0_i32 : i32, i32
  }
  func.func @transform_2(%arg0: i32, %arg1: i32) -> (i32, i32) {
    %c0_i32 = arith.constant 0 : i32
    %c0_i32_0 = arith.constant 0 : i32
    %c0_i32_1 = arith.constant 0 : i32
    return %c0_i32, %c0_i32_0 : i32, i32
  }
  func.func @transform_3(%arg0: i32, %arg1: i32) -> (i32, i32) {
    %c0_i32 = arith.constant 0 : i32
    %c0_i32_0 = arith.constant 0 : i32
    return %arg0, %c0_i32 : i32, i32
  }
}

module attributes {stable_mosaic.version = 11 : i64} {
  func.func @_matmul_bias_act_kernel(%arg0: i32, %arg1: i32, %arg2: memref<8x256xbf16, #tpu.memory_space<vmem>>, %arg3: memref<256x128xbf16, #tpu.memory_space<vmem>>, %arg4: memref<1x128xf32, #tpu.memory_space<vmem>>, %arg5: memref<8x128xf32, #tpu.memory_space<vmem>>, %arg6: memref<8x128xf32, #tpu.memory_space<vmem>>) attributes {dimension_semantics = [#tpu.dimension_semantics<parallel>, #tpu.dimension_semantics<arbitrary>], iteration_bounds = array<i64: 1, 1>, scalar_prefetch = 0 : i64, scratch_operands = 1 : i64, tpu.core_type = #tpu.core_type<tc>, window_params = [{transform_indices = @transform_0, window_bounds = array<i64: 8, 256>}, {transform_indices = @transform_1, window_bounds = array<i64: 256, 128>}, {pipeline_mode = #tpu.pipeline_mode<synchronous>, transform_indices = @transform_2, window_bounds = array<i64: 1, 128>}, {transform_indices = @transform_3, window_bounds = array<i64: 8, 128>}]} {
    %c0_i32 = arith.constant 0 : i32
    %0 = arith.cmpi eq, %arg1, %c0_i32 : i32
    %1 = arith.extui %0 : i1 to i32
    %c0_i32_0 = arith.constant 0 : i32
    %2 = arith.cmpi ne, %1, %c0_i32_0 : i32
    scf.if %2 {
      %cst_10 = arith.constant 0.000000e+00 : f32
      %12 = vector.broadcast %cst_10 : f32 to vector<8x128xf32>
      %c0_11 = arith.constant 0 : index
      %c0_12 = arith.constant 0 : index
      %13 = vector.load %arg6[%c0_11, %c0_12] : memref<8x128xf32, #tpu.memory_space<vmem>>, vector<8x128xf32>
      tpu.vector_store %arg6[%c0_11, %c0_12], %12 {strides = array<i32>} : memref<8x128xf32, #tpu.memory_space<vmem>>, vector<8x128xf32>,
    } else {
    }
    %c0 = arith.constant 0 : index
    %c0_1 = arith.constant 0 : index
    %3 = vector.load %arg6[%c0, %c0_1] : memref<8x128xf32, #tpu.memory_space<vmem>>, vector<8x128xf32>
    %c0_2 = arith.constant 0 : index
    %c0_3 = arith.constant 0 : index
    %4 = vector.load %arg2[%c0_2, %c0_3] : memref<8x256xbf16, #tpu.memory_space<vmem>>, vector<8x256xbf16>
    %c0_4 = arith.constant 0 : index
    %c0_5 = arith.constant 0 : index
    %5 = vector.load %arg3[%c0_4, %c0_5] : memref<256x128xbf16, #tpu.memory_space<vmem>>, vector<256x128xbf16>
    %cst = arith.constant dense<0.000000e+00> : vector<8x128xf32>
    %6 = tpu.matmul %4, %5, %cst {dimension_numbers = #tpu.dot_dimension_numbers<[1], [0], [0], [1], [0, 0, 1, 1], [], []>} : vector<8x256xbf16>, vector<256x128xbf16>, vector<8x128xf32> -> vector<8x128xf32>
    %7 = arith.addf %3, %6 : vector<8x128xf32>
    %c0_6 = arith.constant 0 : index
    %c0_7 = arith.constant 0 : index
    %8 = vector.load %arg6[%c0_6, %c0_7] : memref<8x128xf32, #tpu.memory_space<vmem>>, vector<8x128xf32>
    tpu.vector_store %arg6[%c0_6, %c0_7], %7 {strides = array<i32>} : memref<8x128xf32, #tpu.memory_space<vmem>>, vector<8x128xf32>,
    %c0_i32_8 = arith.constant 0 : i32
    %9 = arith.cmpi eq, %arg1, %c0_i32_8 : i32
    %10 = arith.extui %9 : i1 to i32
    %c0_i32_9 = arith.constant 0 : i32
    %11 = arith.cmpi ne, %10, %c0_i32_9 : i32
    scf.if %11 {
      %c0_10 = arith.constant 0 : index
      %c0_11 = arith.constant 0 : index
      %12 = vector.load %arg6[%c0_10, %c0_11] : memref<8x128xf32, #tpu.memory_space<vmem>>, vector<8x128xf32>
      %c0_12 = arith.constant 0 : index
      %c0_13 = arith.constant 0 : index
      %13 = vector.load %arg4[%c0_12, %c0_13] : memref<1x128xf32, #tpu.memory_space<vmem>>, vector<1x128xf32>
      %14 = vector.broadcast %13 : vector<1x128xf32> to vector<8x128xf32>
      %15 = arith.addf %12, %14 : vector<8x128xf32>
      %cst_14 = arith.constant 0.000000e+00 : f32
      %16 = vector.broadcast %cst_14 : f32 to vector<8x128xf32>
      %17 = arith.maximumf %15, %16 : vector<8x128xf32>
      %c0_15 = arith.constant 0 : index
      %c0_16 = arith.constant 0 : index
      %18 = vector.load %arg5[%c0_15, %c0_16] : memref<8x128xf32, #tpu.memory_space<vmem>>, vector<8x128xf32>
      tpu.vector_store %arg5[%c0_15, %c0_16], %17 {strides = array<i32>} : memref<8x128xf32, #tpu.memory_space<vmem>>, vector<8x128xf32>,
    } else {
    }
    return
  }
  func.func @transform_0(%arg0: i32, %arg1: i32) -> (i32, i32) {
    %c0_i32 = arith.constant 0 : i32
    return %arg0, %arg1 : i32, i32
  }
  func.func @transform_1(%arg0: i32, %arg1: i32) -> (i32, i32) {
    %c0_i32 = arith.constant 0 : i32
    %c0_i32_0 = arith.constant 0 : i32
    return %arg1, %c0_i32 : i32, i32
  }
  func.func @transform_2(%arg0: i32, %arg1: i32) -> (i32, i32) {
    %c0_i32 = arith.constant 0 : i32
    %c0_i32_0 = arith.constant 0 : i32
    %c0_i32_1 = arith.constant 0 : i32
    return %c0_i32, %c0_i32_0 : i32, i32
  }
  func.func @transform_3(%arg0: i32, %arg1: i32) -> (i32, i32) {
    %c0_i32 = arith.constant 0 : i32
    %c0_i32_0 = arith.constant 0 : i32
    return %arg0, %c0_i32 : i32, i32
  }
}

module attributes {stable_mosaic.version = 11 : i64} {
  func.func @_matmul_bias_act_kernel(%arg0: i32, %arg1: i32, %arg2: memref<8x128xbf16, #tpu.memory_space<vmem>>, %arg3: memref<128x128xbf16, #tpu.memory_space<vmem>>, %arg4: memref<1x128xf32, #tpu.memory_space<vmem>>, %arg5: memref<8x128xf32, #tpu.memory_space<vmem>>, %arg6: memref<8x128xf32, #tpu.memory_space<vmem>>) attributes {dimension_semantics = [#tpu.dimension_semantics<parallel>, #tpu.dimension_semantics<arbitrary>], iteration_bounds = array<i64: 1, 1>, scalar_prefetch = 0 : i64, scratch_operands = 1 : i64, tpu.core_type = #tpu.core_type<tc>, window_params = [{transform_indices = @transform_0, window_bounds = array<i64: 8, 128>}, {transform_indices = @transform_1, window_bounds = array<i64: 128, 128>}, {pipeline_mode = #tpu.pipeline_mode<synchronous>, transform_indices = @transform_2, window_bounds = array<i64: 1, 128>}, {transform_indices = @transform_3, window_bounds = array<i64: 8, 128>}]} {
    %c0_i32 = arith.constant 0 : i32
    %0 = arith.cmpi eq, %arg1, %c0_i32 : i32
    %1 = arith.extui %0 : i1 to i32
    %c0_i32_0 = arith.constant 0 : i32
    %2 = arith.cmpi ne, %1, %c0_i32_0 : i32
    scf.if %2 {
      %cst_10 = arith.constant 0.000000e+00 : f32
      %12 = vector.broadcast %cst_10 : f32 to vector<8x128xf32>
      %c0_11 = arith.constant 0 : index
      %c0_12 = arith.constant 0 : index
      %13 = vector.load %arg6[%c0_11, %c0_12] : memref<8x128xf32, #tpu.memory_space<vmem>>, vector<8x128xf32>
      tpu.vector_store %arg6[%c0_11, %c0_12], %12 {strides = array<i32>} : memref<8x128xf32, #tpu.memory_space<vmem>>, vector<8x128xf32>,
    } else {
    }
    %c0 = arith.constant 0 : index
    %c0_1 = arith.constant 0 : index
    %3 = vector.load %arg6[%c0, %c0_1] : memref<8x128xf32, #tpu.memory_space<vmem>>, vector<8x128xf32>
    %c0_2 = arith.constant 0 : index
    %c0_3 = arith.constant 0 : index
    %4 = vector.load %arg2[%c0_2, %c0_3] : memref<8x128xbf16, #tpu.memory_space<vmem>>, vector<8x128xbf16>
    %c0_4 = arith.constant 0 : index
    %c0_5 = arith.constant 0 : index
    %5 = vector.load %arg3[%c0_4, %c0_5] : memref<128x128xbf16, #tpu.memory_space<vmem>>, vector<128x128xbf16>
    %cst = arith.constant dense<0.000000e+00> : vector<8x128xf32>
    %6 = tpu.matmul %4, %5, %cst {dimension_numbers = #tpu.dot_dimension_numbers<[1], [0], [0], [1], [0, 0, 1, 1], [], []>} : vector<8x128xbf16>, vector<128x128xbf16>, vector<8x128xf32> -> vector<8x128xf32>
    %7 = arith.addf %3, %6 : vector<8x128xf32>
    %c0_6 = arith.constant 0 : index
    %c0_7 = arith.constant 0 : index
    %8 = vector.load %arg6[%c0_6, %c0_7] : memref<8x128xf32, #tpu.memory_space<vmem>>, vector<8x128xf32>
    tpu.vector_store %arg6[%c0_6, %c0_7], %7 {strides = array<i32>} : memref<8x128xf32, #tpu.memory_space<vmem>>, vector<8x128xf32>,
    %c0_i32_8 = arith.constant 0 : i32
    %9 = arith.cmpi eq, %arg1, %c0_i32_8 : i32
    %10 = arith.extui %9 : i1 to i32
    %c0_i32_9 = arith.constant 0 : i32
    %11 = arith.cmpi ne, %10, %c0_i32_9 : i32
    scf.if %11 {
      %c0_10 = arith.constant 0 : index
      %c0_11 = arith.constant 0 : index
      %12 = vector.load %arg6[%c0_10, %c0_11] : memref<8x128xf32, #tpu.memory_space<vmem>>, vector<8x128xf32>
      %c0_12 = arith.constant 0 : index
      %c0_13 = arith.constant 0 : index
      %13 = vector.load %arg4[%c0_12, %c0_13] : memref<1x128xf32, #tpu.memory_space<vmem>>, vector<1x128xf32>
      %14 = vector.broadcast %13 : vector<1x128xf32> to vector<8x128xf32>
      %15 = arith.addf %12, %14 : vector<8x128xf32>
      %c0_14 = arith.constant 0 : index
      %c0_15 = arith.constant 0 : index
      %16 = vector.load %arg5[%c0_14, %c0_15] : memref<8x128xf32, #tpu.memory_space<vmem>>, vector<8x128xf32>
      tpu.vector_store %arg5[%c0_14, %c0_15], %15 {strides = array<i32>} : memref<8x128xf32, #tpu.memory_space<vmem>>, vector<8x128xf32>,
    } else {
    }
    return
  }
  func.func @transform_0(%arg0: i32, %arg1: i32) -> (i32, i32) {
    %c0_i32 = arith.constant 0 : i32
    return %arg0, %arg1 : i32, i32
  }
  func.func @transform_1(%arg0: i32, %arg1: i32) -> (i32, i32) {
    %c0_i32 = arith.constant 0 : i32
    %c0_i32_0 = arith.constant 0 : i32
    return %arg1, %c0_i32 : i32, i32
  }
  func.func @transform_2(%arg0: i32, %arg1: i32) -> (i32, i32) {
    %c0_i32 = arith.constant 0 : i32
    %c0_i32_0 = arith.constant 0 : i32
    %c0_i32_1 = arith.constant 0 : i32
    return %c0_i32, %c0_i32_0 : i32, i32
  }
  func.func @transform_3(%arg0: i32, %arg1: i32) -> (i32, i32) {
    %c0_i32 = arith.constant 0 : i32
    %c0_i32_0 = arith.constant 0 : i32
    return %arg0, %c0_i32 : i32, i32
  }
}

module attributes {stable_mosaic.version = 11 : i64} {
  func.func @_matmul_bias_act_kernel(%arg0: i32, %arg1: i32, %arg2: memref<8x128xbf16, #tpu.memory_space<vmem>>, %arg3: memref<128x384xbf16, #tpu.memory_space<vmem>>, %arg4: memref<1x384xf32, #tpu.memory_space<vmem>>, %arg5: memref<8x384xf32, #tpu.memory_space<vmem>>, %arg6: memref<8x384xf32, #tpu.memory_space<vmem>>) attributes {dimension_semantics = [#tpu.dimension_semantics<parallel>, #tpu.dimension_semantics<arbitrary>], iteration_bounds = array<i64: 1, 1>, scalar_prefetch = 0 : i64, scratch_operands = 1 : i64, tpu.core_type = #tpu.core_type<tc>, window_params = [{transform_indices = @transform_0, window_bounds = array<i64: 8, 128>}, {transform_indices = @transform_1, window_bounds = array<i64: 128, 384>}, {pipeline_mode = #tpu.pipeline_mode<synchronous>, transform_indices = @transform_2, window_bounds = array<i64: 1, 384>}, {transform_indices = @transform_3, window_bounds = array<i64: 8, 384>}]} {
    %c0_i32 = arith.constant 0 : i32
    %0 = arith.cmpi eq, %arg1, %c0_i32 : i32
    %1 = arith.extui %0 : i1 to i32
    %c0_i32_0 = arith.constant 0 : i32
    %2 = arith.cmpi ne, %1, %c0_i32_0 : i32
    scf.if %2 {
      %cst_10 = arith.constant 0.000000e+00 : f32
      %12 = vector.broadcast %cst_10 : f32 to vector<8x384xf32>
      %c0_11 = arith.constant 0 : index
      %c0_12 = arith.constant 0 : index
      %13 = vector.load %arg6[%c0_11, %c0_12] : memref<8x384xf32, #tpu.memory_space<vmem>>, vector<8x384xf32>
      tpu.vector_store %arg6[%c0_11, %c0_12], %12 {strides = array<i32>} : memref<8x384xf32, #tpu.memory_space<vmem>>, vector<8x384xf32>,
    } else {
    }
    %c0 = arith.constant 0 : index
    %c0_1 = arith.constant 0 : index
    %3 = vector.load %arg6[%c0, %c0_1] : memref<8x384xf32, #tpu.memory_space<vmem>>, vector<8x384xf32>
    %c0_2 = arith.constant 0 : index
    %c0_3 = arith.constant 0 : index
    %4 = vector.load %arg2[%c0_2, %c0_3] : memref<8x128xbf16, #tpu.memory_space<vmem>>, vector<8x128xbf16>
    %c0_4 = arith.constant 0 : index
    %c0_5 = arith.constant 0 : index
    %5 = vector.load %arg3[%c0_4, %c0_5] : memref<128x384xbf16, #tpu.memory_space<vmem>>, vector<128x384xbf16>
    %cst = arith.constant dense<0.000000e+00> : vector<8x384xf32>
    %6 = tpu.matmul %4, %5, %cst {dimension_numbers = #tpu.dot_dimension_numbers<[1], [0], [0], [1], [0, 0, 1, 1], [], []>} : vector<8x128xbf16>, vector<128x384xbf16>, vector<8x384xf32> -> vector<8x384xf32>
    %7 = arith.addf %3, %6 : vector<8x384xf32>
    %c0_6 = arith.constant 0 : index
    %c0_7 = arith.constant 0 : index
    %8 = vector.load %arg6[%c0_6, %c0_7] : memref<8x384xf32, #tpu.memory_space<vmem>>, vector<8x384xf32>
    tpu.vector_store %arg6[%c0_6, %c0_7], %7 {strides = array<i32>} : memref<8x384xf32, #tpu.memory_space<vmem>>, vector<8x384xf32>,
    %c0_i32_8 = arith.constant 0 : i32
    %9 = arith.cmpi eq, %arg1, %c0_i32_8 : i32
    %10 = arith.extui %9 : i1 to i32
    %c0_i32_9 = arith.constant 0 : i32
    %11 = arith.cmpi ne, %10, %c0_i32_9 : i32
    scf.if %11 {
      %c0_10 = arith.constant 0 : index
      %c0_11 = arith.constant 0 : index
      %12 = vector.load %arg6[%c0_10, %c0_11] : memref<8x384xf32, #tpu.memory_space<vmem>>, vector<8x384xf32>
      %c0_12 = arith.constant 0 : index
      %c0_13 = arith.constant 0 : index
      %13 = vector.load %arg4[%c0_12, %c0_13] : memref<1x384xf32, #tpu.memory_space<vmem>>, vector<1x384xf32>
      %14 = vector.broadcast %13 : vector<1x384xf32> to vector<8x384xf32>
      %15 = arith.addf %12, %14 : vector<8x384xf32>
      %c0_14 = arith.constant 0 : index
      %c0_15 = arith.constant 0 : index
      %16 = vector.load %arg5[%c0_14, %c0_15] : memref<8x384xf32, #tpu.memory_space<vmem>>, vector<8x384xf32>
      tpu.vector_store %arg5[%c0_14, %c0_15], %15 {strides = array<i32>} : memref<8x384xf32, #tpu.memory_space<vmem>>, vector<8x384xf32>,
    } else {
    }
    return
  }
  func.func @transform_0(%arg0: i32, %arg1: i32) -> (i32, i32) {
    %c0_i32 = arith.constant 0 : i32
    return %arg0, %arg1 : i32, i32
  }
  func.func @transform_1(%arg0: i32, %arg1: i32) -> (i32, i32) {
    %c0_i32 = arith.constant 0 : i32
    %c0_i32_0 = arith.constant 0 : i32
    return %arg1, %c0_i32 : i32, i32
  }
  func.func @transform_2(%arg0: i32, %arg1: i32) -> (i32, i32) {
    %c0_i32 = arith.constant 0 : i32
    %c0_i32_0 = arith.constant 0 : i32
    %c0_i32_1 = arith.constant 0 : i32
    return %c0_i32, %c0_i32_0 : i32, i32
  }
  func.func @transform_3(%arg0: i32, %arg1: i32) -> (i32, i32) {
    %c0_i32 = arith.constant 0 : i32
    %c0_i32_0 = arith.constant 0 : i32
    return %arg0, %c0_i32 : i32, i32
  }
}

module attributes {stable_mosaic.version = 11 : i64} {
  func.func @_heads_reparam_kernel(%arg0: i32, %arg1: i32, %arg2: memref<8x128xbf16, #tpu.memory_space<vmem>>, %arg3: memref<128x256xbf16, #tpu.memory_space<vmem>>, %arg4: memref<1x256xf32, #tpu.memory_space<vmem>>, %arg5: memref<8x128xf32, #tpu.memory_space<vmem>>, %arg6: memref<8x128xf32, #tpu.memory_space<vmem>>, %arg7: memref<8x128xf32, #tpu.memory_space<vmem>>, %arg8: memref<8x128xf32, #tpu.memory_space<vmem>>, %arg9: memref<8x256xf32, #tpu.memory_space<vmem>>) attributes {dimension_semantics = [#tpu.dimension_semantics<parallel>, #tpu.dimension_semantics<arbitrary>], iteration_bounds = array<i64: 1, 1>, scalar_prefetch = 0 : i64, scratch_operands = 1 : i64, tpu.core_type = #tpu.core_type<tc>, window_params = [{transform_indices = @transform_0, window_bounds = array<i64: 8, 128>}, {transform_indices = @transform_1, window_bounds = array<i64: 128, 256>}, {pipeline_mode = #tpu.pipeline_mode<synchronous>, transform_indices = @transform_2, window_bounds = array<i64: 1, 256>}, {transform_indices = @transform_3, window_bounds = array<i64: 8, 128>}, {transform_indices = @transform_4, window_bounds = array<i64: 8, 128>}, {transform_indices = @transform_5, window_bounds = array<i64: 8, 128>}, {transform_indices = @transform_6, window_bounds = array<i64: 8, 128>}]} {
    %c0_i32 = arith.constant 0 : i32
    %0 = arith.cmpi eq, %arg1, %c0_i32 : i32
    %1 = arith.extui %0 : i1 to i32
    %c0_i32_0 = arith.constant 0 : i32
    %2 = arith.cmpi ne, %1, %c0_i32_0 : i32
    scf.if %2 {
      %cst_10 = arith.constant 0.000000e+00 : f32
      %12 = vector.broadcast %cst_10 : f32 to vector<8x256xf32>
      %c0_11 = arith.constant 0 : index
      %c0_12 = arith.constant 0 : index
      %13 = vector.load %arg9[%c0_11, %c0_12] : memref<8x256xf32, #tpu.memory_space<vmem>>, vector<8x256xf32>
      tpu.vector_store %arg9[%c0_11, %c0_12], %12 {strides = array<i32>} : memref<8x256xf32, #tpu.memory_space<vmem>>, vector<8x256xf32>,
    } else {
    }
    %c0 = arith.constant 0 : index
    %c0_1 = arith.constant 0 : index
    %3 = vector.load %arg9[%c0, %c0_1] : memref<8x256xf32, #tpu.memory_space<vmem>>, vector<8x256xf32>
    %c0_2 = arith.constant 0 : index
    %c0_3 = arith.constant 0 : index
    %4 = vector.load %arg2[%c0_2, %c0_3] : memref<8x128xbf16, #tpu.memory_space<vmem>>, vector<8x128xbf16>
    %c0_4 = arith.constant 0 : index
    %c0_5 = arith.constant 0 : index
    %5 = vector.load %arg3[%c0_4, %c0_5] : memref<128x256xbf16, #tpu.memory_space<vmem>>, vector<128x256xbf16>
    %cst = arith.constant dense<0.000000e+00> : vector<8x256xf32>
    %6 = tpu.matmul %4, %5, %cst {dimension_numbers = #tpu.dot_dimension_numbers<[1], [0], [0], [1], [0, 0, 1, 1], [], []>} : vector<8x128xbf16>, vector<128x256xbf16>, vector<8x256xf32> -> vector<8x256xf32>
    %7 = arith.addf %3, %6 : vector<8x256xf32>
    %c0_6 = arith.constant 0 : index
    %c0_7 = arith.constant 0 : index
    %8 = vector.load %arg9[%c0_6, %c0_7] : memref<8x256xf32, #tpu.memory_space<vmem>>, vector<8x256xf32>
    tpu.vector_store %arg9[%c0_6, %c0_7], %7 {strides = array<i32>} : memref<8x256xf32, #tpu.memory_space<vmem>>, vector<8x256xf32>,
    %c0_i32_8 = arith.constant 0 : i32
    %9 = arith.cmpi eq, %arg1, %c0_i32_8 : i32
    %10 = arith.extui %9 : i1 to i32
    %c0_i32_9 = arith.constant 0 : i32
    %11 = arith.cmpi ne, %10, %c0_i32_9 : i32
    scf.if %11 {
      %c0_10 = arith.constant 0 : index
      %c0_11 = arith.constant 0 : index
      %12 = vector.load %arg9[%c0_10, %c0_11] : memref<8x256xf32, #tpu.memory_space<vmem>>, vector<8x256xf32>
      %c0_12 = arith.constant 0 : index
      %c0_13 = arith.constant 0 : index
      %13 = vector.load %arg4[%c0_12, %c0_13] : memref<1x256xf32, #tpu.memory_space<vmem>>, vector<1x256xf32>
      %14 = vector.broadcast %13 : vector<1x256xf32> to vector<8x256xf32>
      %15 = arith.addf %12, %14 : vector<8x256xf32>
      %16 = vector.extract_strided_slice %15 {offsets = [0, 0], sizes = [8, 128], strides = [1, 1]} : vector<8x256xf32> to vector<8x128xf32>
      %17 = vector.extract_strided_slice %15 {offsets = [0, 128], sizes = [8, 128], strides = [1, 1]} : vector<8x256xf32> to vector<8x128xf32>
      %c0_14 = arith.constant 0 : index
      %c0_15 = arith.constant 0 : index
      %18 = vector.load %arg6[%c0_14, %c0_15] : memref<8x128xf32, #tpu.memory_space<vmem>>, vector<8x128xf32>
      tpu.vector_store %arg6[%c0_14, %c0_15], %16 {strides = array<i32>} : memref<8x128xf32, #tpu.memory_space<vmem>>, vector<8x128xf32>,
      %c0_16 = arith.constant 0 : index
      %c0_17 = arith.constant 0 : index
      %19 = vector.load %arg7[%c0_16, %c0_17] : memref<8x128xf32, #tpu.memory_space<vmem>>, vector<8x128xf32>
      tpu.vector_store %arg7[%c0_16, %c0_17], %17 {strides = array<i32>} : memref<8x128xf32, #tpu.memory_space<vmem>>, vector<8x128xf32>,
      %c0_18 = arith.constant 0 : index
      %c0_19 = arith.constant 0 : index
      %20 = vector.load %arg5[%c0_18, %c0_19] : memref<8x128xf32, #tpu.memory_space<vmem>>, vector<8x128xf32>
      %cst_20 = arith.constant 5.000000e-01 : f32
      %21 = vector.broadcast %cst_20 : f32 to vector<8x128xf32>
      %22 = arith.mulf %21, %17 : vector<8x128xf32>
      %23 = math.exp %22 : vector<8x128xf32>
      %24 = arith.mulf %20, %23 : vector<8x128xf32>
      %25 = arith.addf %16, %24 : vector<8x128xf32>
      %c0_21 = arith.constant 0 : index
      %c0_22 = arith.constant 0 : index
      %26 = vector.load %arg8[%c0_21, %c0_22] : memref<8x128xf32, #tpu.memory_space<vmem>>, vector<8x128xf32>
      tpu.vector_store %arg8[%c0_21, %c0_22], %25 {strides = array<i32>} : memref<8x128xf32, #tpu.memory_space<vmem>>, vector<8x128xf32>,
    } else {
    }
    return
  }
  func.func @transform_0(%arg0: i32, %arg1: i32) -> (i32, i32) {
    %c0_i32 = arith.constant 0 : i32
    return %arg0, %arg1 : i32, i32
  }
  func.func @transform_1(%arg0: i32, %arg1: i32) -> (i32, i32) {
    %c0_i32 = arith.constant 0 : i32
    %c0_i32_0 = arith.constant 0 : i32
    return %arg1, %c0_i32 : i32, i32
  }
  func.func @transform_2(%arg0: i32, %arg1: i32) -> (i32, i32) {
    %c0_i32 = arith.constant 0 : i32
    %c0_i32_0 = arith.constant 0 : i32
    %c0_i32_1 = arith.constant 0 : i32
    return %c0_i32, %c0_i32_0 : i32, i32
  }
  func.func @transform_3(%arg0: i32, %arg1: i32) -> (i32, i32) {
    %c0_i32 = arith.constant 0 : i32
    %c0_i32_0 = arith.constant 0 : i32
    return %arg0, %c0_i32 : i32, i32
  }
  func.func @transform_4(%arg0: i32, %arg1: i32) -> (i32, i32) {
    %c0_i32 = arith.constant 0 : i32
    %c0_i32_0 = arith.constant 0 : i32
    return %arg0, %c0_i32 : i32, i32
  }
  func.func @transform_5(%arg0: i32, %arg1: i32) -> (i32, i32) {
    %c0_i32 = arith.constant 0 : i32
    %c0_i32_0 = arith.constant 0 : i32
    return %arg0, %c0_i32 : i32, i32
  }
  func.func @transform_6(%arg0: i32, %arg1: i32) -> (i32, i32) {
    %c0_i32 = arith.constant 0 : i32
    %c0_i32_0 = arith.constant 0 : i32
    return %arg0, %c0_i32 : i32, i32
  }
}

module attributes {stable_mosaic.version = 11 : i64} {
  func.func @_bias_act_kernel(%arg0: i32, %arg1: memref<32x128xf32, #tpu.memory_space<vmem>>, %arg2: memref<1x128xf32, #tpu.memory_space<vmem>>, %arg3: memref<32x128xf32, #tpu.memory_space<vmem>>) attributes {dimension_semantics = [#tpu.dimension_semantics<parallel>], iteration_bounds = array<i64: 1>, scalar_prefetch = 0 : i64, scratch_operands = 0 : i64, tpu.core_type = #tpu.core_type<tc>, window_params = [{transform_indices = @transform_0, window_bounds = array<i64: 32, 128>}, {pipeline_mode = #tpu.pipeline_mode<synchronous>, transform_indices = @transform_1, window_bounds = array<i64: 1, 128>}, {transform_indices = @transform_2, window_bounds = array<i64: 32, 128>}]} {
    %c0 = arith.constant 0 : index
    %c0_0 = arith.constant 0 : index
    %0 = vector.load %arg1[%c0, %c0_0] : memref<32x128xf32, #tpu.memory_space<vmem>>, vector<32x128xf32>
    %c0_1 = arith.constant 0 : index
    %c0_2 = arith.constant 0 : index
    %1 = vector.load %arg2[%c0_1, %c0_2] : memref<1x128xf32, #tpu.memory_space<vmem>>, vector<1x128xf32>
    %2 = vector.broadcast %1 : vector<1x128xf32> to vector<32x128xf32>
    %3 = arith.addf %0, %2 : vector<32x128xf32>
    %cst = arith.constant 0.000000e+00 : f32
    %4 = vector.broadcast %cst : f32 to vector<32x128xf32>
    %5 = arith.maximumf %3, %4 : vector<32x128xf32>
    %c0_3 = arith.constant 0 : index
    %c0_4 = arith.constant 0 : index
    %6 = vector.load %arg3[%c0_3, %c0_4] : memref<32x128xf32, #tpu.memory_space<vmem>>, vector<32x128xf32>
    tpu.vector_store %arg3[%c0_3, %c0_4], %5 {strides = array<i32>} : memref<32x128xf32, #tpu.memory_space<vmem>>, vector<32x128xf32>,
    return
  }
  func.func @transform_0(%arg0: i32) -> (i32, i32) {
    %c0_i32 = arith.constant 0 : i32
    %c0_i32_0 = arith.constant 0 : i32
    return %arg0, %c0_i32 : i32, i32
  }
  func.func @transform_1(%arg0: i32) -> (i32, i32) {
    %c0_i32 = arith.constant 0 : i32
    %c0_i32_0 = arith.constant 0 : i32
    %c0_i32_1 = arith.constant 0 : i32
    return %c0_i32, %c0_i32_0 : i32, i32
  }
  func.func @transform_2(%arg0: i32) -> (i32, i32) {
    %c0_i32 = arith.constant 0 : i32
    %c0_i32_0 = arith.constant 0 : i32
    return %arg0, %c0_i32 : i32, i32
  }
}

module attributes {stable_mosaic.version = 11 : i64} {
  func.func @_matmul_bias_act_kernel(%arg0: i32, %arg1: i32, %arg2: memref<32x128xbf16, #tpu.memory_space<vmem>>, %arg3: memref<128x256xbf16, #tpu.memory_space<vmem>>, %arg4: memref<1x256xf32, #tpu.memory_space<vmem>>, %arg5: memref<32x256xf32, #tpu.memory_space<vmem>>, %arg6: memref<32x256xf32, #tpu.memory_space<vmem>>) attributes {dimension_semantics = [#tpu.dimension_semantics<parallel>, #tpu.dimension_semantics<arbitrary>], iteration_bounds = array<i64: 1, 1>, scalar_prefetch = 0 : i64, scratch_operands = 1 : i64, tpu.core_type = #tpu.core_type<tc>, window_params = [{transform_indices = @transform_0, window_bounds = array<i64: 32, 128>}, {transform_indices = @transform_1, window_bounds = array<i64: 128, 256>}, {pipeline_mode = #tpu.pipeline_mode<synchronous>, transform_indices = @transform_2, window_bounds = array<i64: 1, 256>}, {transform_indices = @transform_3, window_bounds = array<i64: 32, 256>}]} {
    %c0_i32 = arith.constant 0 : i32
    %0 = arith.cmpi eq, %arg1, %c0_i32 : i32
    %1 = arith.extui %0 : i1 to i32
    %c0_i32_0 = arith.constant 0 : i32
    %2 = arith.cmpi ne, %1, %c0_i32_0 : i32
    scf.if %2 {
      %cst_10 = arith.constant 0.000000e+00 : f32
      %12 = vector.broadcast %cst_10 : f32 to vector<32x256xf32>
      %c0_11 = arith.constant 0 : index
      %c0_12 = arith.constant 0 : index
      %13 = vector.load %arg6[%c0_11, %c0_12] : memref<32x256xf32, #tpu.memory_space<vmem>>, vector<32x256xf32>
      tpu.vector_store %arg6[%c0_11, %c0_12], %12 {strides = array<i32>} : memref<32x256xf32, #tpu.memory_space<vmem>>, vector<32x256xf32>,
    } else {
    }
    %c0 = arith.constant 0 : index
    %c0_1 = arith.constant 0 : index
    %3 = vector.load %arg6[%c0, %c0_1] : memref<32x256xf32, #tpu.memory_space<vmem>>, vector<32x256xf32>
    %c0_2 = arith.constant 0 : index
    %c0_3 = arith.constant 0 : index
    %4 = vector.load %arg2[%c0_2, %c0_3] : memref<32x128xbf16, #tpu.memory_space<vmem>>, vector<32x128xbf16>
    %c0_4 = arith.constant 0 : index
    %c0_5 = arith.constant 0 : index
    %5 = vector.load %arg3[%c0_4, %c0_5] : memref<128x256xbf16, #tpu.memory_space<vmem>>, vector<128x256xbf16>
    %cst = arith.constant dense<0.000000e+00> : vector<32x256xf32>
    %6 = tpu.matmul %4, %5, %cst {dimension_numbers = #tpu.dot_dimension_numbers<[1], [0], [0], [1], [0, 0, 1, 1], [], []>} : vector<32x128xbf16>, vector<128x256xbf16>, vector<32x256xf32> -> vector<32x256xf32>
    %7 = arith.addf %3, %6 : vector<32x256xf32>
    %c0_6 = arith.constant 0 : index
    %c0_7 = arith.constant 0 : index
    %8 = vector.load %arg6[%c0_6, %c0_7] : memref<32x256xf32, #tpu.memory_space<vmem>>, vector<32x256xf32>
    tpu.vector_store %arg6[%c0_6, %c0_7], %7 {strides = array<i32>} : memref<32x256xf32, #tpu.memory_space<vmem>>, vector<32x256xf32>,
    %c0_i32_8 = arith.constant 0 : i32
    %9 = arith.cmpi eq, %arg1, %c0_i32_8 : i32
    %10 = arith.extui %9 : i1 to i32
    %c0_i32_9 = arith.constant 0 : i32
    %11 = arith.cmpi ne, %10, %c0_i32_9 : i32
    scf.if %11 {
      %c0_10 = arith.constant 0 : index
      %c0_11 = arith.constant 0 : index
      %12 = vector.load %arg6[%c0_10, %c0_11] : memref<32x256xf32, #tpu.memory_space<vmem>>, vector<32x256xf32>
      %c0_12 = arith.constant 0 : index
      %c0_13 = arith.constant 0 : index
      %13 = vector.load %arg4[%c0_12, %c0_13] : memref<1x256xf32, #tpu.memory_space<vmem>>, vector<1x256xf32>
      %14 = vector.broadcast %13 : vector<1x256xf32> to vector<32x256xf32>
      %15 = arith.addf %12, %14 : vector<32x256xf32>
      %c0_14 = arith.constant 0 : index
      %c0_15 = arith.constant 0 : index
      %16 = vector.load %arg5[%c0_14, %c0_15] : memref<32x256xf32, #tpu.memory_space<vmem>>, vector<32x256xf32>
      tpu.vector_store %arg5[%c0_14, %c0_15], %15 {strides = array<i32>} : memref<32x256xf32, #tpu.memory_space<vmem>>, vector<32x256xf32>,
    } else {
    }
    return
  }
  func.func @transform_0(%arg0: i32, %arg1: i32) -> (i32, i32) {
    %c0_i32 = arith.constant 0 : i32
    return %arg0, %arg1 : i32, i32
  }
  func.func @transform_1(%arg0: i32, %arg1: i32) -> (i32, i32) {
    %c0_i32 = arith.constant 0 : i32
    %c0_i32_0 = arith.constant 0 : i32
    return %arg1, %c0_i32 : i32, i32
  }
  func.func @transform_2(%arg0: i32, %arg1: i32) -> (i32, i32) {
    %c0_i32 = arith.constant 0 : i32
    %c0_i32_0 = arith.constant 0 : i32
    %c0_i32_1 = arith.constant 0 : i32
    return %c0_i32, %c0_i32_0 : i32, i32
  }
  func.func @transform_3(%arg0: i32, %arg1: i32) -> (i32, i32) {
    %c0_i32 = arith.constant 0 : i32
    %c0_i32_0 = arith.constant 0 : i32
    return %arg0, %c0_i32 : i32, i32
  }
}

module attributes {stable_mosaic.version = 11 : i64} {
  func.func @_matmul_bias_act_kernel(%arg0: i32, %arg1: i32, %arg2: memref<128x128xbf16, #tpu.memory_space<vmem>>, %arg3: memref<128x128xbf16, #tpu.memory_space<vmem>>, %arg4: memref<1x128xf32, #tpu.memory_space<vmem>>, %arg5: memref<128x128xf32, #tpu.memory_space<vmem>>, %arg6: memref<128x128xf32, #tpu.memory_space<vmem>>) attributes {dimension_semantics = [#tpu.dimension_semantics<parallel>, #tpu.dimension_semantics<arbitrary>], iteration_bounds = array<i64: 1, 1>, scalar_prefetch = 0 : i64, scratch_operands = 1 : i64, tpu.core_type = #tpu.core_type<tc>, window_params = [{transform_indices = @transform_0, window_bounds = array<i64: 128, 128>}, {transform_indices = @transform_1, window_bounds = array<i64: 128, 128>}, {pipeline_mode = #tpu.pipeline_mode<synchronous>, transform_indices = @transform_2, window_bounds = array<i64: 1, 128>}, {transform_indices = @transform_3, window_bounds = array<i64: 128, 128>}]} {
    %c0_i32 = arith.constant 0 : i32
    %0 = arith.cmpi eq, %arg1, %c0_i32 : i32
    %1 = arith.extui %0 : i1 to i32
    %c0_i32_0 = arith.constant 0 : i32
    %2 = arith.cmpi ne, %1, %c0_i32_0 : i32
    scf.if %2 {
      %cst_10 = arith.constant 0.000000e+00 : f32
      %12 = vector.broadcast %cst_10 : f32 to vector<128x128xf32>
      %c0_11 = arith.constant 0 : index
      %c0_12 = arith.constant 0 : index
      %13 = vector.load %arg6[%c0_11, %c0_12] : memref<128x128xf32, #tpu.memory_space<vmem>>, vector<128x128xf32>
      tpu.vector_store %arg6[%c0_11, %c0_12], %12 {strides = array<i32>} : memref<128x128xf32, #tpu.memory_space<vmem>>, vector<128x128xf32>,
    } else {
    }
    %c0 = arith.constant 0 : index
    %c0_1 = arith.constant 0 : index
    %3 = vector.load %arg6[%c0, %c0_1] : memref<128x128xf32, #tpu.memory_space<vmem>>, vector<128x128xf32>
    %c0_2 = arith.constant 0 : index
    %c0_3 = arith.constant 0 : index
    %4 = vector.load %arg2[%c0_2, %c0_3] : memref<128x128xbf16, #tpu.memory_space<vmem>>, vector<128x128xbf16>
    %c0_4 = arith.constant 0 : index
    %c0_5 = arith.constant 0 : index
    %5 = vector.load %arg3[%c0_4, %c0_5] : memref<128x128xbf16, #tpu.memory_space<vmem>>, vector<128x128xbf16>
    %cst = arith.constant dense<0.000000e+00> : vector<128x128xf32>
    %6 = tpu.matmul %4, %5, %cst {dimension_numbers = #tpu.dot_dimension_numbers<[1], [0], [0], [1], [0, 0, 1, 1], [], []>} : vector<128x128xbf16>, vector<128x128xbf16>, vector<128x128xf32> -> vector<128x128xf32>
    %7 = arith.addf %3, %6 : vector<128x128xf32>
    %c0_6 = arith.constant 0 : index
    %c0_7 = arith.constant 0 : index
    %8 = vector.load %arg6[%c0_6, %c0_7] : memref<128x128xf32, #tpu.memory_space<vmem>>, vector<128x128xf32>
    tpu.vector_store %arg6[%c0_6, %c0_7], %7 {strides = array<i32>} : memref<128x128xf32, #tpu.memory_space<vmem>>, vector<128x128xf32>,
    %c0_i32_8 = arith.constant 0 : i32
    %9 = arith.cmpi eq, %arg1, %c0_i32_8 : i32
    %10 = arith.extui %9 : i1 to i32
    %c0_i32_9 = arith.constant 0 : i32
    %11 = arith.cmpi ne, %10, %c0_i32_9 : i32
    scf.if %11 {
      %c0_10 = arith.constant 0 : index
      %c0_11 = arith.constant 0 : index
      %12 = vector.load %arg6[%c0_10, %c0_11] : memref<128x128xf32, #tpu.memory_space<vmem>>, vector<128x128xf32>
      %c0_12 = arith.constant 0 : index
      %c0_13 = arith.constant 0 : index
      %13 = vector.load %arg4[%c0_12, %c0_13] : memref<1x128xf32, #tpu.memory_space<vmem>>, vector<1x128xf32>
      %14 = vector.broadcast %13 : vector<1x128xf32> to vector<128x128xf32>
      %15 = arith.addf %12, %14 : vector<128x128xf32>
      %c0_14 = arith.constant 0 : index
      %c0_15 = arith.constant 0 : index
      %16 = vector.load %arg5[%c0_14, %c0_15] : memref<128x128xf32, #tpu.memory_space<vmem>>, vector<128x128xf32>
      tpu.vector_store %arg5[%c0_14, %c0_15], %15 {strides = array<i32>} : memref<128x128xf32, #tpu.memory_space<vmem>>, vector<128x128xf32>,
    } else {
    }
    return
  }
  func.func @transform_0(%arg0: i32, %arg1: i32) -> (i32, i32) {
    %c0_i32 = arith.constant 0 : i32
    return %arg0, %arg1 : i32, i32
  }
  func.func @transform_1(%arg0: i32, %arg1: i32) -> (i32, i32) {
    %c0_i32 = arith.constant 0 : i32
    %c0_i32_0 = arith.constant 0 : i32
    return %arg1, %c0_i32 : i32, i32
  }
  func.func @transform_2(%arg0: i32, %arg1: i32) -> (i32, i32) {
    %c0_i32 = arith.constant 0 : i32
    %c0_i32_0 = arith.constant 0 : i32
    %c0_i32_1 = arith.constant 0 : i32
    return %c0_i32, %c0_i32_0 : i32, i32
  }
  func.func @transform_3(%arg0: i32, %arg1: i32) -> (i32, i32) {
    %c0_i32 = arith.constant 0 : i32
    %c0_i32_0 = arith.constant 0 : i32
    return %arg0, %c0_i32 : i32, i32
  }
}

module attributes {stable_mosaic.version = 11 : i64} {
  func.func @_bias_act_kernel(%arg0: i32, %arg1: memref<128x128xf32, #tpu.memory_space<vmem>>, %arg2: memref<1x128xf32, #tpu.memory_space<vmem>>, %arg3: memref<128x128xf32, #tpu.memory_space<vmem>>) attributes {dimension_semantics = [#tpu.dimension_semantics<parallel>], iteration_bounds = array<i64: 1>, scalar_prefetch = 0 : i64, scratch_operands = 0 : i64, tpu.core_type = #tpu.core_type<tc>, window_params = [{transform_indices = @transform_0, window_bounds = array<i64: 128, 128>}, {pipeline_mode = #tpu.pipeline_mode<synchronous>, transform_indices = @transform_1, window_bounds = array<i64: 1, 128>}, {transform_indices = @transform_2, window_bounds = array<i64: 128, 128>}]} {
    %c0 = arith.constant 0 : index
    %c0_0 = arith.constant 0 : index
    %0 = vector.load %arg1[%c0, %c0_0] : memref<128x128xf32, #tpu.memory_space<vmem>>, vector<128x128xf32>
    %c0_1 = arith.constant 0 : index
    %c0_2 = arith.constant 0 : index
    %1 = vector.load %arg2[%c0_1, %c0_2] : memref<1x128xf32, #tpu.memory_space<vmem>>, vector<1x128xf32>
    %2 = vector.broadcast %1 : vector<1x128xf32> to vector<128x128xf32>
    %3 = arith.addf %0, %2 : vector<128x128xf32>
    %cst = arith.constant 0.000000e+00 : f32
    %4 = vector.broadcast %cst : f32 to vector<128x128xf32>
    %5 = arith.maximumf %3, %4 : vector<128x128xf32>
    %c0_3 = arith.constant 0 : index
    %c0_4 = arith.constant 0 : index
    %6 = vector.load %arg3[%c0_3, %c0_4] : memref<128x128xf32, #tpu.memory_space<vmem>>, vector<128x128xf32>
    tpu.vector_store %arg3[%c0_3, %c0_4], %5 {strides = array<i32>} : memref<128x128xf32, #tpu.memory_space<vmem>>, vector<128x128xf32>,
    return
  }
  func.func @transform_0(%arg0: i32) -> (i32, i32) {
    %c0_i32 = arith.constant 0 : i32
    %c0_i32_0 = arith.constant 0 : i32
    return %arg0, %c0_i32 : i32, i32
  }
  func.func @transform_1(%arg0: i32) -> (i32, i32) {
    %c0_i32 = arith.constant 0 : i32
    %c0_i32_0 = arith.constant 0 : i32
    %c0_i32_1 = arith.constant 0 : i32
    return %c0_i32, %c0_i32_0 : i32, i32
  }
  func.func @transform_2(%arg0: i32) -> (i32, i32) {
    %c0_i32 = arith.constant 0 : i32
    %c0_i32_0 = arith.constant 0 : i32
    return %arg0, %c0_i32 : i32, i32
  }
}

module attributes {stable_mosaic.version = 11 : i64} {
  func.func @_matmul_bias_act_kernel(%arg0: i32, %arg1: i32, %arg2: memref<512x128xbf16, #tpu.memory_space<vmem>>, %arg3: memref<128x128xbf16, #tpu.memory_space<vmem>>, %arg4: memref<1x128xf32, #tpu.memory_space<vmem>>, %arg5: memref<512x128xf32, #tpu.memory_space<vmem>>, %arg6: memref<512x128xf32, #tpu.memory_space<vmem>>) attributes {dimension_semantics = [#tpu.dimension_semantics<parallel>, #tpu.dimension_semantics<arbitrary>], iteration_bounds = array<i64: 1, 1>, scalar_prefetch = 0 : i64, scratch_operands = 1 : i64, tpu.core_type = #tpu.core_type<tc>, window_params = [{transform_indices = @transform_0, window_bounds = array<i64: 512, 128>}, {transform_indices = @transform_1, window_bounds = array<i64: 128, 128>}, {pipeline_mode = #tpu.pipeline_mode<synchronous>, transform_indices = @transform_2, window_bounds = array<i64: 1, 128>}, {transform_indices = @transform_3, window_bounds = array<i64: 512, 128>}]} {
    %c0_i32 = arith.constant 0 : i32
    %0 = arith.cmpi eq, %arg1, %c0_i32 : i32
    %1 = arith.extui %0 : i1 to i32
    %c0_i32_0 = arith.constant 0 : i32
    %2 = arith.cmpi ne, %1, %c0_i32_0 : i32
    scf.if %2 {
      %cst_10 = arith.constant 0.000000e+00 : f32
      %12 = vector.broadcast %cst_10 : f32 to vector<512x128xf32>
      %c0_11 = arith.constant 0 : index
      %c0_12 = arith.constant 0 : index
      %13 = vector.load %arg6[%c0_11, %c0_12] : memref<512x128xf32, #tpu.memory_space<vmem>>, vector<512x128xf32>
      tpu.vector_store %arg6[%c0_11, %c0_12], %12 {strides = array<i32>} : memref<512x128xf32, #tpu.memory_space<vmem>>, vector<512x128xf32>,
    } else {
    }
    %c0 = arith.constant 0 : index
    %c0_1 = arith.constant 0 : index
    %3 = vector.load %arg6[%c0, %c0_1] : memref<512x128xf32, #tpu.memory_space<vmem>>, vector<512x128xf32>
    %c0_2 = arith.constant 0 : index
    %c0_3 = arith.constant 0 : index
    %4 = vector.load %arg2[%c0_2, %c0_3] : memref<512x128xbf16, #tpu.memory_space<vmem>>, vector<512x128xbf16>
    %c0_4 = arith.constant 0 : index
    %c0_5 = arith.constant 0 : index
    %5 = vector.load %arg3[%c0_4, %c0_5] : memref<128x128xbf16, #tpu.memory_space<vmem>>, vector<128x128xbf16>
    %cst = arith.constant dense<0.000000e+00> : vector<512x128xf32>
    %6 = tpu.matmul %4, %5, %cst {dimension_numbers = #tpu.dot_dimension_numbers<[1], [0], [0], [1], [0, 0, 1, 1], [], []>} : vector<512x128xbf16>, vector<128x128xbf16>, vector<512x128xf32> -> vector<512x128xf32>
    %7 = arith.addf %3, %6 : vector<512x128xf32>
    %c0_6 = arith.constant 0 : index
    %c0_7 = arith.constant 0 : index
    %8 = vector.load %arg6[%c0_6, %c0_7] : memref<512x128xf32, #tpu.memory_space<vmem>>, vector<512x128xf32>
    tpu.vector_store %arg6[%c0_6, %c0_7], %7 {strides = array<i32>} : memref<512x128xf32, #tpu.memory_space<vmem>>, vector<512x128xf32>,
    %c0_i32_8 = arith.constant 0 : i32
    %9 = arith.cmpi eq, %arg1, %c0_i32_8 : i32
    %10 = arith.extui %9 : i1 to i32
    %c0_i32_9 = arith.constant 0 : i32
    %11 = arith.cmpi ne, %10, %c0_i32_9 : i32
    scf.if %11 {
      %c0_10 = arith.constant 0 : index
      %c0_11 = arith.constant 0 : index
      %12 = vector.load %arg6[%c0_10, %c0_11] : memref<512x128xf32, #tpu.memory_space<vmem>>, vector<512x128xf32>
      %c0_12 = arith.constant 0 : index
      %c0_13 = arith.constant 0 : index
      %13 = vector.load %arg4[%c0_12, %c0_13] : memref<1x128xf32, #tpu.memory_space<vmem>>, vector<1x128xf32>
      %14 = vector.broadcast %13 : vector<1x128xf32> to vector<512x128xf32>
      %15 = arith.addf %12, %14 : vector<512x128xf32>
      %c0_14 = arith.constant 0 : index
      %c0_15 = arith.constant 0 : index
      %16 = vector.load %arg5[%c0_14, %c0_15] : memref<512x128xf32, #tpu.memory_space<vmem>>, vector<512x128xf32>
      tpu.vector_store %arg5[%c0_14, %c0_15], %15 {strides = array<i32>} : memref<512x128xf32, #tpu.memory_space<vmem>>, vector<512x128xf32>,
    } else {
    }
    return
  }
  func.func @transform_0(%arg0: i32, %arg1: i32) -> (i32, i32) {
    %c0_i32 = arith.constant 0 : i32
    return %arg0, %arg1 : i32, i32
  }
  func.func @transform_1(%arg0: i32, %arg1: i32) -> (i32, i32) {
    %c0_i32 = arith.constant 0 : i32
    %c0_i32_0 = arith.constant 0 : i32
    return %arg1, %c0_i32 : i32, i32
  }
  func.func @transform_2(%arg0: i32, %arg1: i32) -> (i32, i32) {
    %c0_i32 = arith.constant 0 : i32
    %c0_i32_0 = arith.constant 0 : i32
    %c0_i32_1 = arith.constant 0 : i32
    return %c0_i32, %c0_i32_0 : i32, i32
  }
  func.func @transform_3(%arg0: i32, %arg1: i32) -> (i32, i32) {
    %c0_i32 = arith.constant 0 : i32
    %c0_i32_0 = arith.constant 0 : i32
    return %arg0, %c0_i32 : i32, i32
  }
}

module attributes {stable_mosaic.version = 11 : i64} {
  func.func @_bias_act_kernel(%arg0: i32, %arg1: memref<512x128xf32, #tpu.memory_space<vmem>>, %arg2: memref<1x128xf32, #tpu.memory_space<vmem>>, %arg3: memref<512x128xf32, #tpu.memory_space<vmem>>) attributes {dimension_semantics = [#tpu.dimension_semantics<parallel>], iteration_bounds = array<i64: 1>, scalar_prefetch = 0 : i64, scratch_operands = 0 : i64, tpu.core_type = #tpu.core_type<tc>, window_params = [{transform_indices = @transform_0, window_bounds = array<i64: 512, 128>}, {pipeline_mode = #tpu.pipeline_mode<synchronous>, transform_indices = @transform_1, window_bounds = array<i64: 1, 128>}, {transform_indices = @transform_2, window_bounds = array<i64: 512, 128>}]} {
    %c0 = arith.constant 0 : index
    %c0_0 = arith.constant 0 : index
    %0 = vector.load %arg1[%c0, %c0_0] : memref<512x128xf32, #tpu.memory_space<vmem>>, vector<512x128xf32>
    %c0_1 = arith.constant 0 : index
    %c0_2 = arith.constant 0 : index
    %1 = vector.load %arg2[%c0_1, %c0_2] : memref<1x128xf32, #tpu.memory_space<vmem>>, vector<1x128xf32>
    %2 = vector.broadcast %1 : vector<1x128xf32> to vector<512x128xf32>
    %3 = arith.addf %0, %2 : vector<512x128xf32>
    %cst = arith.constant 0.000000e+00 : f32
    %4 = vector.broadcast %cst : f32 to vector<512x128xf32>
    %5 = arith.maximumf %3, %4 : vector<512x128xf32>
    %c0_3 = arith.constant 0 : index
    %c0_4 = arith.constant 0 : index
    %6 = vector.load %arg3[%c0_3, %c0_4] : memref<512x128xf32, #tpu.memory_space<vmem>>, vector<512x128xf32>
    tpu.vector_store %arg3[%c0_3, %c0_4], %5 {strides = array<i32>} : memref<512x128xf32, #tpu.memory_space<vmem>>, vector<512x128xf32>,
    return
  }
  func.func @transform_0(%arg0: i32) -> (i32, i32) {
    %c0_i32 = arith.constant 0 : i32
    %c0_i32_0 = arith.constant 0 : i32
    return %arg0, %c0_i32 : i32, i32
  }
  func.func @transform_1(%arg0: i32) -> (i32, i32) {
    %c0_i32 = arith.constant 0 : i32
    %c0_i32_0 = arith.constant 0 : i32
    %c0_i32_1 = arith.constant 0 : i32
    return %c0_i32, %c0_i32_0 : i32, i32
  }
  func.func @transform_2(%arg0: i32) -> (i32, i32) {
    %c0_i32 = arith.constant 0 : i32
    %c0_i32_0 = arith.constant 0 : i32
    return %arg0, %c0_i32 : i32, i32
  }
}

module attributes {stable_mosaic.version = 11 : i64} {
  func.func @_bias_act_kernel(%arg0: i32, %arg1: memref<512x128xf32, #tpu.memory_space<vmem>>, %arg2: memref<1x128xf32, #tpu.memory_space<vmem>>, %arg3: memref<512x128xf32, #tpu.memory_space<vmem>>) attributes {dimension_semantics = [#tpu.dimension_semantics<parallel>], iteration_bounds = array<i64: 1>, scalar_prefetch = 0 : i64, scratch_operands = 0 : i64, tpu.core_type = #tpu.core_type<tc>, window_params = [{transform_indices = @transform_0, window_bounds = array<i64: 512, 128>}, {pipeline_mode = #tpu.pipeline_mode<synchronous>, transform_indices = @transform_1, window_bounds = array<i64: 1, 128>}, {transform_indices = @transform_2, window_bounds = array<i64: 512, 128>}]} {
    %c0 = arith.constant 0 : index
    %c0_0 = arith.constant 0 : index
    %0 = vector.load %arg1[%c0, %c0_0] : memref<512x128xf32, #tpu.memory_space<vmem>>, vector<512x128xf32>
    %c0_1 = arith.constant 0 : index
    %c0_2 = arith.constant 0 : index
    %1 = vector.load %arg2[%c0_1, %c0_2] : memref<1x128xf32, #tpu.memory_space<vmem>>, vector<1x128xf32>
    %2 = vector.broadcast %1 : vector<1x128xf32> to vector<512x128xf32>
    %3 = arith.addf %0, %2 : vector<512x128xf32>
    %4 = arith.negf %3 : vector<512x128xf32>
    %5 = math.exp %4 : vector<512x128xf32>
    %cst = arith.constant 1.000000e+00 : f32
    %6 = vector.broadcast %cst : f32 to vector<512x128xf32>
    %7 = arith.addf %6, %5 : vector<512x128xf32>
    %8 = arith.divf %6, %7 : vector<512x128xf32>
    %c0_3 = arith.constant 0 : index
    %c0_4 = arith.constant 0 : index
    %9 = vector.load %arg3[%c0_3, %c0_4] : memref<512x128xf32, #tpu.memory_space<vmem>>, vector<512x128xf32>
    tpu.vector_store %arg3[%c0_3, %c0_4], %8 {strides = array<i32>} : memref<512x128xf32, #tpu.memory_space<vmem>>, vector<512x128xf32>,
    return
  }
  func.func @transform_0(%arg0: i32) -> (i32, i32) {
    %c0_i32 = arith.constant 0 : i32
    %c0_i32_0 = arith.constant 0 : i32
    return %arg0, %c0_i32 : i32, i32
  }
  func.func @transform_1(%arg0: i32) -> (i32, i32) {
    %c0_i32 = arith.constant 0 : i32
    %c0_i32_0 = arith.constant 0 : i32
    %c0_i32_1 = arith.constant 0 : i32
    return %c0_i32, %c0_i32_0 : i32, i32
  }
  func.func @transform_2(%arg0: i32) -> (i32, i32) {
    %c0_i32 = arith.constant 0 : i32
    %c0_i32_0 = arith.constant 0 : i32
    return %arg0, %c0_i32 : i32, i32
  }
}

</mosaic_0001>

<llo_original>
// kernel: vae_forward.15
$region0: #{vae_forward.15}
  #allocation0 [shape = 'u32[]', space=smem, size = 0x4, offset = 0x4, fixed_abs, tag = 'smem constant byte address 0x4 - core index']
  #allocation1 [shape = 'u32[144,128]{1,0:T(1,128)}', space=vmem, size = 0x12000, scoped, tag = 'internal scratch']
  #allocation2 [shape = 'f32[32,128]{1,0:T(8,128)}', space=vmem, size = 0x4000, scoped, tag = 'scratch operand']
  %s0 = inlined_call_operand.vmem [shape: bf16[32,128], index: 0, kind: input, shape index: {}]
  %s1 = inlined_call_operand.vmem [shape: bf16[128,128], index: 1, kind: input, shape index: {}]
  %s2 = inlined_call_operand.vmem [shape: f32[1,128], index: 2, kind: input, shape index: {}]
  %s3 = inlined_call_operand.vmem [shape: f32[32,128], index: 3, kind: output, shape index: {}]
  %s4 = sld [smem:[#allocation0]]
  $region30: #{vae_forward.15} parent=0
    _
  %s6 = ssub.s32 1, %s4
  %s7 = scalar_select 0, %s6, %s4
  // Predicated region
  $region2: #{vae_forward.15} parent=0 // pred_check
    _
  $region3: #{vae_forward.15} parent=0 // pred_check_branch
    %9 = sbr.rel (0) target = $region5
  $region4: #{vae_forward.15} parent=0 // pred_region
    _
  $region5: #{vae_forward.15} parent=0 // pred_fallthru
    _
  // Predicated region
  $region6: #{vae_forward.15} parent=0 // pred_check
    _
  $region7: #{vae_forward.15} parent=0 // pred_check_branch
    %11 = sbr.rel (0) target = $region9
  $region8: #{vae_forward.15} parent=0 // pred_region
    _
  $region9: #{vae_forward.15} parent=0 // pred_fallthru
    _
  // Predicated region
  $region10: #{vae_forward.15} parent=0 // pred_check
    _
  $region11: #{vae_forward.15} parent=0 // pred_check_branch
    %13 = sbr.rel (0) target = $region13
  $region12: #{vae_forward.15} parent=0 // pred_region
    _
  $region13: #{vae_forward.15} parent=0 // pred_fallthru
    _
  %p15 = scmp.eq.s32.totalorder 0, 0
  // Predicated region
  $region14: #{vae_forward.15} parent=0 // pred_check
    %p16 = pneg %p15
  $region15: #{vae_forward.15} parent=0 // pred_check_branch
    %18 = sbr.rel (%p16) target = $region17
  $region16: #{vae_forward.15} parent=0 // pred_region
    %19 = vst [vmem:[#allocation2] sm:$0xff] 0.0
    %20 = vst [vmem:[#allocation2 + $0x8] sm:$0xff] 0.0
    %21 = vst [vmem:[#allocation2 + $0x10] sm:$0xff] 0.0
    %22 = vst [vmem:[#allocation2 + $0x18] sm:$0xff] 0.0
  $region17: #{vae_forward.15} parent=0 // pred_fallthru
    _
  %v23 = vld [vmem:[#allocation2] sm:$0xff]
  %v24 = vld [vmem:[#allocation2 + $0x8] sm:$0xff]
  %v25 = vld [vmem:[#allocation2 + $0x10] sm:$0xff]
  %v26 = vld [vmem:[#allocation2 + $0x18] sm:$0xff]
  %v27 = vld [vmem:[%s0] sm:$0xf]
  %v28 = vld [vmem:[%s0 + $0x4] sm:$0xf]
  %v29 = vld [vmem:[%s0 + $0x8] sm:$0xf]
  %v30 = vld [vmem:[%s0 + $0xc] sm:$0xf]
  %v31 = vld [vmem:[%s1] sm:$0xf]
  %v32 = vld [vmem:[%s1 + $0x4] sm:$0xf]
  %v33 = vld [vmem:[%s1 + $0x8] sm:$0xf]
  %v34 = vld [vmem:[%s1 + $0xc] sm:$0xf]
  %v35 = vld [vmem:[%s1 + $0x10] sm:$0xf]
  %v36 = vld [vmem:[%s1 + $0x14] sm:$0xf]
  %v37 = vld [vmem:[%s1 + $0x18] sm:$0xf]
  %v38 = vld [vmem:[%s1 + $0x1c] sm:$0xf]
  %v39 = vld [vmem:[%s1 + $0x20] sm:$0xf]
  %v40 = vld [vmem:[%s1 + $0x24] sm:$0xf]
  %v41 = vld [vmem:[%s1 + $0x28] sm:$0xf]
  %v42 = vld [vmem:[%s1 + $0x2c] sm:$0xf]
  %v43 = vld [vmem:[%s1 + $0x30] sm:$0xf]
  %v44 = vld [vmem:[%s1 + $0x34] sm:$0xf]
  %v45 = vld [vmem:[%s1 + $0x38] sm:$0xf]
  %v46 = vld [vmem:[%s1 + $0x3c] sm:$0xf]
  %v51 = vunpack.c.l.b16 %v27
  %v52 = vunpack.c.l.b16 %v28
  %v53 = vunpack.c.l.b16 %v29
  %v54 = vunpack.c.l.b16 %v30
  %v55 = vpack.c.b16 %v52, %v51
  %v56 = vpack.c.b16 %v54, %v53
  %v75 = vunpack.c.l.b16 %v31
  %v76 = vunpack.c.l.b16 %v32
  %v77 = vunpack.c.l.b16 %v33
  %v78 = vunpack.c.l.b16 %v34
  %v79 = vunpack.c.l.b16 %v35
  %v80 = vunpack.c.l.b16 %v36
  %v81 = vunpack.c.l.b16 %v37
  %v82 = vunpack.c.l.b16 %v38
  %v83 = vunpack.c.l.b16 %v39
  %v84 = vunpack.c.l.b16 %v40
  %v85 = vunpack.c.l.b16 %v41
  %v86 = vunpack.c.l.b16 %v42
  %v87 = vunpack.c.l.b16 %v43
  %v88 = vunpack.c.l.b16 %v44
  %v89 = vunpack.c.l.b16 %v45
  %v90 = vunpack.c.l.b16 %v46
  %v91 = vpack.c.b16 %v76, %v75
  %v92 = vpack.c.b16 %v78, %v77
  %v93 = vpack.c.b16 %v80, %v79
  %v94 = vpack.c.b16 %v82, %v81
  %v95 = vpack.c.b16 %v84, %v83
  %v96 = vpack.c.b16 %v86, %v85
  %v97 = vpack.c.b16 %v88, %v87
  %v98 = vpack.c.b16 %v90, %v89
  %107 = vmatprep.subr.bf16.mxu0 0
  %108 = vmatpush1.bf16.msra.mxu0 %v91
  %109 = vmatprep.subr.bf16.mxu0 0
  %110 = vmatpush1.bf16.msra.mxu0 %v92
  %111 = vmatprep.subr.bf16.mxu0 0
  %112 = vmatpush1.bf16.msra.mxu0 %v93
  %113 = vmatprep.subr.bf16.mxu0 0
  %114 = vmatpush1.bf16.msra.mxu0 %v94
  %115 = vmatprep.subr.bf16.mxu0 0
  %116 = vmatpush1.bf16.msra.mxu0 %v95
  %117 = vmatprep.subr.bf16.mxu0 0
  %118 = vmatpush1.bf16.msra.mxu0 %v96
  %119 = vmatprep.subr.bf16.mxu0 0
  %120 = vmatpush1.bf16.msra.mxu0 %v97
  %121 = vmatprep.subr.bf16.mxu0 0
  %122 = vmatpush1.bf16.msra.mxu0 %v98
  %123 = vmatprep.subr.bf16.mxu0 0
  %124 = vmatpush1.bf16.msra.mxu0 0
  %125 = vmatprep.subr.bf16.mxu0 0
  %126 = vmatpush1.bf16.msra.mxu0 0
  %127 = vmatprep.subr.bf16.mxu0 0
  %128 = vmatpush1.bf16.msra.mxu0 0
  %129 = vmatprep.subr.bf16.mxu0 0
  %130 = vmatpush1.bf16.msra.mxu0 0
  %131 = vmatprep.subr.bf16.mxu0 0
  %132 = vmatpush1.bf16.msra.mxu0 0
  %133 = vmatprep.subr.bf16.mxu0 0
  %134 = vmatpush1.bf16.msra.mxu0 0
  %135 = vmatprep.subr.bf16.mxu0 0
  %136 = vmatpush1.bf16.msra.mxu0 0
  %137 = vmatprep.subr.bf16.mxu0 0
  %138 = vmatpush1.bf16.msra.mxu0 0
  %139 = vmatprep.mubr.bf16.mxu0 0
  %140 = vmatmul.mubr.bf16.gmra.mrb[0].mxu0 %v55
  %v141 = vpop.f32.mrb[0].mxu0
  %v142 = vadd.f32 0.0, %v141
  %v143 = vpop.f32.mrb[0].mxu0
  %v144 = vpop.f32.mrb[0].mxu0
  %v145 = vadd.f32 0.0, %v144
  %v146 = vpop.f32.mrb[0].mxu0
  %147 = vmatprep.mubr.bf16.mxu0 0
  %148 = vmatmul.mubr.bf16.gmra.mrb[0].mxu0 %v56
  %v149 = vpop.f32.mrb[0].mxu0
  %v150 = vadd.f32 0.0, %v149
  %v151 = vpop.f32.mrb[0].mxu0
  %v152 = vpop.f32.mrb[0].mxu0
  %v153 = vadd.f32 0.0, %v152
  %v154 = vpop.f32.mrb[0].mxu0
  %155 = vdwg.mxu0
  %v156 = vadd.f32 %v23, %v142
  %v157 = vadd.f32 %v24, %v145
  %v158 = vadd.f32 %v25, %v150
  %v159 = vadd.f32 %v26, %v153
  %160 = vst [vmem:[#allocation2] sm:$0xff] %v156
  %161 = vst [vmem:[#allocation2 + $0x8] sm:$0xff] %v157
  %162 = vst [vmem:[#allocation2 + $0x10] sm:$0xff] %v158
  %163 = vst [vmem:[#allocation2 + $0x18] sm:$0xff] %v159
  // Predicated region
  $region18: #{vae_forward.15} parent=0 // pred_check
    %p164 = pneg %p15
  $region19: #{vae_forward.15} parent=0 // pred_check_branch
    %166 = sbr.rel (%p164) target = $region21
  $region20: #{vae_forward.15} parent=0 // pred_region
    %v167 = vld [vmem:[#allocation2] sm:$0xff]
    %v168 = vld [vmem:[#allocation2 + $0x8] sm:$0xff]
    %v169 = vld [vmem:[#allocation2 + $0x10] sm:$0xff]
    %v170 = vld [vmem:[#allocation2 + $0x18] sm:$0xff]
    %v171 = vld [vmem:[%s2] sm:$0x1]
    %v173 = vlaneseq
    %v174 = vshrl.u32 %v173, 7
    %v175 = vsub.s32 0, %v174
    %v176 = vrot.slane %v171, %v175
    %v178 = vadd.f32 %v167, %v176
    %v179 = vadd.f32 %v168, %v176
    %v180 = vadd.f32 %v169, %v176
    %v181 = vadd.f32 %v170, %v176
    %v182 = vmax.f32 %v178, 0.0
    %v183 = vmax.f32 %v179, 0.0
    %v184 = vmax.f32 %v180, 0.0
    %v185 = vmax.f32 %v181, 0.0
    %186 = vst [vmem:[%s3] sm:$0xff] %v182
    %187 = vst [vmem:[%s3 + $0x8] sm:$0xff] %v183
    %188 = vst [vmem:[%s3 + $0x10] sm:$0xff] %v184
    %189 = vst [vmem:[%s3 + $0x18] sm:$0xff] %v185
  $region21: #{vae_forward.15} parent=0 // pred_fallthru
    _
  // Predicated region
  $region22: #{vae_forward.15} parent=0 // pred_check
    _
  $region23: #{vae_forward.15} parent=0 // pred_check_branch
    %191 = sbr.rel (0) target = $region25
  $region24: #{vae_forward.15} parent=0 // pred_region
    _
  $region25: #{vae_forward.15} parent=0 // pred_fallthru
    _
  // Predicated region
  $region26: #{vae_forward.15} parent=0 // pred_check
    _
  $region27: #{vae_forward.15} parent=0 // pred_check_branch
    %193 = sbr.rel (0) target = $region29
  $region28: #{vae_forward.15} parent=0 // pred_region
    _
  $region29: #{vae_forward.15} parent=0 // pred_fallthru
    _

// kernel: vae_forward.14
$region0: #{vae_forward.14}
  #allocation0 [shape = 'u32[]', space=smem, size = 0x4, offset = 0x4, fixed_abs, tag = 'smem constant byte address 0x4 - core index']
  #allocation1 [shape = 'u32[144,128]{1,0:T(1,128)}', space=vmem, size = 0x12000, scoped, tag = 'internal scratch']
  #allocation2 [shape = 'f32[128,128]{1,0:T(8,128)}', space=vmem, size = 0x10000, scoped, tag = 'scratch operand']
  %s0 = inlined_call_operand.vmem [shape: bf16[128,128], index: 0, kind: input, shape index: {}]
  %s1 = inlined_call_operand.vmem [shape: bf16[128,128], index: 1, kind: input, shape index: {}]
  %s2 = inlined_call_operand.vmem [shape: f32[1,128], index: 2, kind: input, shape index: {}]
  %s3 = inlined_call_operand.vmem [shape: f32[128,128], index: 3, kind: output, shape index: {}]
  %s4 = sld [smem:[#allocation0]]
  $region30: #{vae_forward.14} parent=0
    _
  %s6 = ssub.s32 1, %s4
  %s7 = scalar_select 0, %s6, %s4
  // Predicated region
  $region2: #{vae_forward.14} parent=0 // pred_check
    _
  $region3: #{vae_forward.14} parent=0 // pred_check_branch
    %9 = sbr.rel (0) target = $region5
  $region4: #{vae_forward.14} parent=0 // pred_region
    _
  $region5: #{vae_forward.14} parent=0 // pred_fallthru
    _
  // Predicated region
  $region6: #{vae_forward.14} parent=0 // pred_check
    _
  $region7: #{vae_forward.14} parent=0 // pred_check_branch
    %11 = sbr.rel (0) target = $region9
  $region8: #{vae_forward.14} parent=0 // pred_region
    _
  $region9: #{vae_forward.14} parent=0 // pred_fallthru
    _
  // Predicated region
  $region10: #{vae_forward.14} parent=0 // pred_check
    _
  $region11: #{vae_forward.14} parent=0 // pred_check_branch
    %13 = sbr.rel (0) target = $region13
  $region12: #{vae_forward.14} parent=0 // pred_region
    _
  $region13: #{vae_forward.14} parent=0 // pred_fallthru
    _
  %p15 = scmp.eq.s32.totalorder 0, 0
  // Predicated region
  $region14: #{vae_forward.14} parent=0 // pred_check
    %p16 = pneg %p15
  $region15: #{vae_forward.14} parent=0 // pred_check_branch
    %18 = sbr.rel (%p16) target = $region17
  $region16: #{vae_forward.14} parent=0 // pred_region
    %19 = vst [vmem:[#allocation2] sm:$0xff] 0.0
    %20 = vst [vmem:[#allocation2 + $0x8] sm:$0xff] 0.0
    %21 = vst [vmem:[#allocation2 + $0x10] sm:$0xff] 0.0
    %22 = vst [vmem:[#allocation2 + $0x18] sm:$0xff] 0.0
    %23 = vst [vmem:[#allocation2 + $0x20] sm:$0xff] 0.0
    %24 = vst [vmem:[#allocation2 + $0x28] sm:$0xff] 0.0
    %25 = vst [vmem:[#allocation2 + $0x30] sm:$0xff] 0.0
    %26 = vst [vmem:[#allocation2 + $0x38] sm:$0xff] 0.0
    %27 = vst [vmem:[#allocation2 + $0x40] sm:$0xff] 0.0
    %28 = vst [vmem:[#allocation2 + $0x48] sm:$0xff] 0.0
    %29 = vst [vmem:[#allocation2 + $0x50] sm:$0xff] 0.0
    %30 = vst [vmem:[#allocation2 + $0x58] sm:$0xff] 0.0
    %31 = vst [vmem:[#allocation2 + $0x60] sm:$0xff] 0.0
    %32 = vst [vmem:[#allocation2 + $0x68] sm:$0xff] 0.0
    %33 = vst [vmem:[#allocation2 + $0x70] sm:$0xff] 0.0
    %34 = vst [vmem:[#allocation2 + $0x78] sm:$0xff] 0.0
  $region17: #{vae_forward.14} parent=0 // pred_fallthru
    _
  %v35 = vld [vmem:[#allocation2] sm:$0xff]
  %v36 = vld [vmem:[#allocation2 + $0x8] sm:$0xff]
  %v37 = vld [vmem:[#allocation2 + $0x10] sm:$0xff]
  %v38 = vld [vmem:[#allocation2 + $0x18] sm:$0xff]
  %v39 = vld [vmem:[#allocation2 + $0x20] sm:$0xff]
  %v40 = vld [vmem:[#allocation2 + $0x28] sm:$0xff]
  %v41 = vld [vmem:[#allocation2 + $0x30] sm:$0xff]
  %v42 = vld [vmem:[#allocation2 + $0x38] sm:$0xff]
  %v43 = vld [vmem:[#allocation2 + $0x40] sm:$0xff]
  %v44 = vld [vmem:[#allocation2 + $0x48] sm:$0xff]
  %v45 = vld [vmem:[#allocation2 + $0x50] sm:$0xff]
  %v46 = vld [vmem:[#allocation2 + $0x58] sm:$0xff]
  %v47 = vld [vmem:[#allocation2 + $0x60] sm:$0xff]
  %v48 = vld [vmem:[#allocation2 + $0x68] sm:$0xff]
  %v49 = vld [vmem:[#allocation2 + $0x70] sm:$0xff]
  %v50 = vld [vmem:[#allocation2 + $0x78] sm:$0xff]
  %v51 = vld [vmem:[%s0] sm:$0xf]
  %v52 = vld [vmem:[%s0 + $0x4] sm:$0xf]
  %v53 = vld [vmem:[%s0 + $0x8] sm:$0xf]
  %v54 = vld [vmem:[%s0 + $0xc] sm:$0xf]
  %v55 = vld [vmem:[%s0 + $0x10] sm:$0xf]
  %v56 = vld [vmem:[%s0 + $0x14] sm:$0xf]
  %v57 = vld [vmem:[%s0 + $0x18] sm:$0xf]
  %v58 = vld [vmem:[%s0 + $0x1c] sm:$0xf]
  %v59 = vld [vmem:[%s0 + $0x20] sm:$0xf]
  %v60 = vld [vmem:[%s0 + $0x24] sm:$0xf]
  %v61 = vld [vmem:[%s0 + $0x28] sm:$0xf]
  %v62 = vld [vmem:[%s0 + $0x2c] sm:$0xf]
  %v63 = vld [vmem:[%s0 + $0x30] sm:$0xf]
  %v64 = vld [vmem:[%s0 + $0x34] sm:$0xf]
  %v65 = vld [vmem:[%s0 + $0x38] sm:$0xf]
  %v66 = vld [vmem:[%s0 + $0x3c] sm:$0xf]
  %v67 = vld [vmem:[%s1] sm:$0xf]
  %v68 = vld [vmem:[%s1 + $0x4] sm:$0xf]
  %v69 = vld [vmem:[%s1 + $0x8] sm:$0xf]
  %v70 = vld [vmem:[%s1 + $0xc] sm:$0xf]
  %v71 = vld [vmem:[%s1 + $0x10] sm:$0xf]
  %v72 = vld [vmem:[%s1 + $0x14] sm:$0xf]
  %v73 = vld [vmem:[%s1 + $0x18] sm:$0xf]
  %v74 = vld [vmem:[%s1 + $0x1c] sm:$0xf]
  %v75 = vld [vmem:[%s1 + $0x20] sm:$0xf]
  %v76 = vld [vmem:[%s1 + $0x24] sm:$0xf]
  %v77 = vld [vmem:[%s1 + $0x28] sm:$0xf]
  %v78 = vld [vmem:[%s1 + $0x2c] sm:$0xf]
  %v79 = vld [vmem:[%s1 + $0x30] sm:$0xf]
  %v80 = vld [vmem:[%s1 + $0x34] sm:$0xf]
  %v81 = vld [vmem:[%s1 + $0x38] sm:$0xf]
  %v82 = vld [vmem:[%s1 + $0x3c] sm:$0xf]
  %v99 = vunpack.c.l.b16 %v51
  %v100 = vunpack.c.l.b16 %v52
  %v101 = vunpack.c.l.b16 %v53
  %v102 = vunpack.c.l.b16 %v54
  %v103 = vunpack.c.l.b16 %v55
  %v104 = vunpack.c.l.b16 %v56
  %v105 = vunpack.c.l.b16 %v57
  %v106 = vunpack.c.l.b16 %v58
  %v107 = vunpack.c.l.b16 %v59
  %v108 = vunpack.c.l.b16 %v60
  %v109 = vunpack.c.l.b16 %v61
  %v110 = vunpack.c.l.b16 %v62
  %v111 = vunpack.c.l.b16 %v63
  %v112 = vunpack.c.l.b16 %v64
  %v113 = vunpack.c.l.b16 %v65
  %v114 = vunpack.c.l.b16 %v66
  %v115 = vpack.c.b16 %v100, %v99
  %v116 = vpack.c.b16 %v102, %v101
  %v117 = vpack.c.b16 %v104, %v103
  %v118 = vpack.c.b16 %v106, %v105
  %v119 = vpack.c.b16 %v108, %v107
  %v120 = vpack.c.b16 %v110, %v109
  %v121 = vpack.c.b16 %v112, %v111
  %v122 = vpack.c.b16 %v114, %v113
  %v147 = vunpack.c.l.b16 %v67
  %v148 = vunpack.c.l.b16 %v68
  %v149 = vunpack.c.l.b16 %v69
  %v150 = vunpack.c.l.b16 %v70
  %v151 = vunpack.c.l.b16 %v71
  %v152 = vunpack.c.l.b16 %v72
  %v153 = vunpack.c.l.b16 %v73
  %v154 = vunpack.c.l.b16 %v74
  %v155 = vunpack.c.l.b16 %v75
  %v156 = vunpack.c.l.b16 %v76
  %v157 = vunpack.c.l.b16 %v77
  %v158 = vunpack.c.l.b16 %v78
  %v159 = vunpack.c.l.b16 %v79
  %v160 = vunpack.c.l.b16 %v80
  %v161 = vunpack.c.l.b16 %v81
  %v162 = vunpack.c.l.b16 %v82
  %v163 = vpack.c.b16 %v148, %v147
  %v164 = vpack.c.b16 %v150, %v149
  %v165 = vpack.c.b16 %v152, %v151
  %v166 = vpack.c.b16 %v154, %v153
  %v167 = vpack.c.b16 %v156, %v155
  %v168 = vpack.c.b16 %v158, %v157
  %v169 = vpack.c.b16 %v160, %v159
  %v170 = vpack.c.b16 %v162, %v161
  %179 = vmatprep.subr.bf16.mxu0 0
  %180 = vmatpush1.bf16.msra.mxu0 %v163
  %181 = vmatprep.subr.bf16.mxu0 0
  %182 = vmatpush1.bf16.msra.mxu0 %v164
  %183 = vmatprep.subr.bf16.mxu0 0
  %184 = vmatpush1.bf16.msra.mxu0 %v165
  %185 = vmatprep.subr.bf16.mxu0 0
  %186 = vmatpush1.bf16.msra.mxu0 %v166
  %187 = vmatprep.subr.bf16.mxu0 0
  %188 = vmatpush1.bf16.msra.mxu0 %v167
  %189 = vmatprep.subr.bf16.mxu0 0
  %190 = vmatpush1.bf16.msra.mxu0 %v168
  %191 = vmatprep.subr.bf16.mxu0 0
  %192 = vmatpush1.bf16.msra.mxu0 %v169
  %193 = vmatprep.subr.bf16.mxu0 0
  %194 = vmatpush1.bf16.msra.mxu0 %v170
  %195 = vmatprep.subr.bf16.mxu0 0
  %196 = vmatpush1.bf16.msra.mxu0 0
  %197 = vmatprep.subr.bf16.mxu0 0
  %198 = vmatpush1.bf16.msra.mxu0 0
  %199 = vmatprep.subr.bf16.mxu0 0
  %200 = vmatpush1.bf16.msra.mxu0 0
  %201 = vmatprep.subr.bf16.mxu0 0
  %202 = vmatpush1.bf16.msra.mxu0 0
  %203 = vmatprep.subr.bf16.mxu0 0
  %204 = vmatpush1.bf16.msra.mxu0 0
  %205 = vmatprep.subr.bf16.mxu0 0
  %206 = vmatpush1.bf16.msra.mxu0 0
  %207 = vmatprep.subr.bf16.mxu0 0
  %208 = vmatpush1.bf16.msra.mxu0 0
  %209 = vmatprep.subr.bf16.mxu0 0
  %210 = vmatpush1.bf16.msra.mxu0 0
  %211 = vmatprep.mubr.bf16.mxu0 0
  %212 = vmatmul.mubr.bf16.gmra.mrb[0].mxu0 %v115
  %v213 = vpop.f32.mrb[0].mxu0
  %v214 = vadd.f32 0.0, %v213
  %v215 = vpop.f32.mrb[0].mxu0
  %v216 = vpop.f32.mrb[0].mxu0
  %v217 = vadd.f32 0.0, %v216
  %v218 = vpop.f32.mrb[0].mxu0
  %219 = vmatprep.mubr.bf16.mxu0 0
  %220 = vmatmul.mubr.bf16.gmra.mrb[0].mxu0 %v116
  %v221 = vpop.f32.mrb[0].mxu0
  %v222 = vadd.f32 0.0, %v221
  %v223 = vpop.f32.mrb[0].mxu0
  %v224 = vpop.f32.mrb[0].mxu0
  %v225 = vadd.f32 0.0, %v224
  %v226 = vpop.f32.mrb[0].mxu0
  %227 = vmatprep.mubr.bf16.mxu0 0
  %228 = vmatmul.mubr.bf16.gmra.mrb[0].mxu0 %v117
  %v229 = vpop.f32.mrb[0].mxu0
  %v230 = vadd.f32 0.0, %v229
  %v231 = vpop.f32.mrb[0].mxu0
  %v232 = vpop.f32.mrb[0].mxu0
  %v233 = vadd.f32 0.0, %v232
  %v234 = vpop.f32.mrb[0].mxu0
  %235 = vmatprep.mubr.bf16.mxu0 0
  %236 = vmatmul.mubr.bf16.gmra.mrb[0].mxu0 %v118
  %v237 = vpop.f32.mrb[0].mxu0
  %v238 = vadd.f32 0.0, %v237
  %v239 = vpop.f32.mrb[0].mxu0
  %v240 = vpop.f32.mrb[0].mxu0
  %v241 = vadd.f32 0.0, %v240
  %v242 = vpop.f32.mrb[0].mxu0
  %243 = vmatprep.mubr.bf16.mxu0 0
  %244 = vmatmul.mubr.bf16.gmra.mrb[0].mxu0 %v119
  %v245 = vpop.f32.mrb[0].mxu0
  %v246 = vadd.f32 0.0, %v245
  %v247 = vpop.f32.mrb[0].mxu0
  %v248 = vpop.f32.mrb[0].mxu0
  %v249 = vadd.f32 0.0, %v248
  %v250 = vpop.f32.mrb[0].mxu0
  %251 = vmatprep.mubr.bf16.mxu0 0
  %252 = vmatmul.mubr.bf16.gmra.mrb[0].mxu0 %v120
  %v253 = vpop.f32.mrb[0].mxu0
  %v254 = vadd.f32 0.0, %v253
  %v255 = vpop.f32.mrb[0].mxu0
  %v256 = vpop.f32.mrb[0].mxu0
  %v257 = vadd.f32 0.0, %v256
  %v258 = vpop.f32.mrb[0].mxu0
  %259 = vmatprep.mubr.bf16.mxu0 0
  %260 = vmatmul.mubr.bf16.gmra.mrb[0].mxu0 %v121
  %v261 = vpop.f32.mrb[0].mxu0
  %v262 = vadd.f32 0.0, %v261
  %v263 = vpop.f32.mrb[0].mxu0
  %v264 = vpop.f32.mrb[0].mxu0
  %v265 = vadd.f32 0.0, %v264
  %v266 = vpop.f32.mrb[0].mxu0
  %267 = vmatprep.mubr.bf16.mxu0 0
  %268 = vmatmul.mubr.bf16.gmra.mrb[0].mxu0 %v122
  %v269 = vpop.f32.mrb[0].mxu0
  %v270 = vadd.f32 0.0, %v269
  %v271 = vpop.f32.mrb[0].mxu0
  %v272 = vpop.f32.mrb[0].mxu0
  %v273 = vadd.f32 0.0, %v272
  %v274 = vpop.f32.mrb[0].mxu0
  %275 = vdwg.mxu0
  %v276 = vadd.f32 %v35, %v214
  %v277 = vadd.f32 %v36, %v217
  %v278 = vadd.f32 %v37, %v222
  %v279 = vadd.f32 %v38, %v225
  %v280 = vadd.f32 %v39, %v230
  %v281 = vadd.f32 %v40, %v233
  %v282 = vadd.f32 %v41, %v238
  %v283 = vadd.f32 %v42, %v241
  %v284 = vadd.f32 %v43, %v246
  %v285 = vadd.f32 %v44, %v249
  %v286 = vadd.f32 %v45, %v254
  %v287 = vadd.f32 %v46, %v257
  %v288 = vadd.f32 %v47, %v262
  %v289 = vadd.f32 %v48, %v265
  %v290 = vadd.f32 %v49, %v270
  %v291 = vadd.f32 %v50, %v273
  %292 = vst [vmem:[#allocation2] sm:$0xff] %v276
  %293 = vst [vmem:[#allocation2 + $0x8] sm:$0xff] %v277
  %294 = vst [vmem:[#allocation2 + $0x10] sm:$0xff] %v278
  %295 = vst [vmem:[#allocation2 + $0x18] sm:$0xff] %v279
  %296 = vst [vmem:[#allocation2 + $0x20] sm:$0xff] %v280
  %297 = vst [vmem:[#allocation2 + $0x28] sm:$0xff] %v281
  %298 = vst [vmem:[#allocation2 + $0x30] sm:$0xff] %v282
  %299 = vst [vmem:[#allocation2 + $0x38] sm:$0xff] %v283
  %300 = vst [vmem:[#allocation2 + $0x40] sm:$0xff] %v284
  %301 = vst [vmem:[#allocation2 + $0x48] sm:$0xff] %v285
  %302 = vst [vmem:[#allocation2 + $0x50] sm:$0xff] %v286
  %303 = vst [vmem:[#allocation2 + $0x58] sm:$0xff] %v287
  %304 = vst [vmem:[#allocation2 + $0x60] sm:$0xff] %v288
  %305 = vst [vmem:[#allocation2 + $0x68] sm:$0xff] %v289
  %306 = vst [vmem:[#allocation2 + $0x70] sm:$0xff] %v290
  %307 = vst [vmem:[#allocation2 + $0x78] sm:$0xff] %v291
  // Predicated region
  $region18: #{vae_forward.14} parent=0 // pred_check
    %p308 = pneg %p15
  $region19: #{vae_forward.14} parent=0 // pred_check_branch
    %310 = sbr.rel (%p308) target = $region21
  $region20: #{vae_forward.14} parent=0 // pred_region
    %v311 = vld [vmem:[#allocation2] sm:$0xff]
    %v312 = vld [vmem:[#allocation2 + $0x8] sm:$0xff]
    %v313 = vld [vmem:[#allocation2 + $0x10] sm:$0xff]
    %v314 = vld [vmem:[#allocation2 + $0x18] sm:$0xff]
    %v315 = vld [vmem:[#allocation2 + $0x20] sm:$0xff]
    %v316 = vld [vmem:[#allocation2 + $0x28] sm:$0xff]
    %v317 = vld [vmem:[#allocation2 + $0x30] sm:$0xff]
    %v318 = vld [vmem:[#allocation2 + $0x38] sm:$0xff]
    %v319 = vld [vmem:[#allocation2 + $0x40] sm:$0xff]
    %v320 = vld [vmem:[#allocation2 + $0x48] sm:$0xff]
    %v321 = vld [vmem:[#allocation2 + $0x50] sm:$0xff]
    %v322 = vld [vmem:[#allocation2 + $0x58] sm:$0xff]
    %v323 = vld [vmem:[#allocation2 + $0x60] sm:$0xff]
    %v324 = vld [vmem:[#allocation2 + $0x68] sm:$0xff]
    %v325 = vld [vmem:[#allocation2 + $0x70] sm:$0xff]
    %v326 = vld [vmem:[#allocation2 + $0x78] sm:$0xff]
    %v327 = vld [vmem:[%s2] sm:$0x1]
    %v329 = vlaneseq
    %v330 = vshrl.u32 %v329, 7
    %v331 = vsub.s32 0, %v330
    %v332 = vrot.slane %v327, %v331
    %v334 = vadd.f32 %v311, %v332
    %v335 = vadd.f32 %v312, %v332
    %v336 = vadd.f32 %v313, %v332
    %v337 = vadd.f32 %v314, %v332
    %v338 = vadd.f32 %v315, %v332
    %v339 = vadd.f32 %v316, %v332
    %v340 = vadd.f32 %v317, %v332
    %v341 = vadd.f32 %v318, %v332
    %v342 = vadd.f32 %v319, %v332
    %v343 = vadd.f32 %v320, %v332
    %v344 = vadd.f32 %v321, %v332
    %v345 = vadd.f32 %v322, %v332
    %v346 = vadd.f32 %v323, %v332
    %v347 = vadd.f32 %v324, %v332
    %v348 = vadd.f32 %v325, %v332
    %v349 = vadd.f32 %v326, %v332
    %v350 = vmax.f32 %v334, 0.0
    %v351 = vmax.f32 %v335, 0.0
    %v352 = vmax.f32 %v336, 0.0
    %v353 = vmax.f32 %v337, 0.0
    %v354 = vmax.f32 %v338, 0.0
    %v355 = vmax.f32 %v339, 0.0
    %v356 = vmax.f32 %v340, 0.0
    %v357 = vmax.f32 %v341, 0.0
    %v358 = vmax.f32 %v342, 0.0
    %v359 = vmax.f32 %v343, 0.0
    %v360 = vmax.f32 %v344, 0.0
    %v361 = vmax.f32 %v345, 0.0
    %v362 = vmax.f32 %v346, 0.0
    %v363 = vmax.f32 %v347, 0.0
    %v364 = vmax.f32 %v348, 0.0
    %v365 = vmax.f32 %v349, 0.0
    %366 = vst [vmem:[%s3] sm:$0xff] %v350
    %367 = vst [vmem:[%s3 + $0x8] sm:$0xff] %v351
    %368 = vst [vmem:[%s3 + $0x10] sm:$0xff] %v352
    %369 = vst [vmem:[%s3 + $0x18] sm:$0xff] %v353
    %370 = vst [vmem:[%s3 + $0x20] sm:$0xff] %v354
    %371 = vst [vmem:[%s3 + $0x28] sm:$0xff] %v355
    %372 = vst [vmem:[%s3 + $0x30] sm:$0xff] %v356
    %373 = vst [vmem:[%s3 + $0x38] sm:$0xff] %v357
    %374 = vst [vmem:[%s3 + $0x40] sm:$0xff] %v358
    %375 = vst [vmem:[%s3 + $0x48] sm:$0xff] %v359
    %376 = vst [vmem:[%s3 + $0x50] sm:$0xff] %v360
    %377 = vst [vmem:[%s3 + $0x58] sm:$0xff] %v361
    %378 = vst [vmem:[%s3 + $0x60] sm:$0xff] %v362
    %379 = vst [vmem:[%s3 + $0x68] sm:$0xff] %v363
    %380 = vst [vmem:[%s3 + $0x70] sm:$0xff] %v364
    %381 = vst [vmem:[%s3 + $0x78] sm:$0xff] %v365
  $region21: #{vae_forward.14} parent=0 // pred_fallthru
    _
  // Predicated region
  $region22: #{vae_forward.14} parent=0 // pred_check
    _
  $region23: #{vae_forward.14} parent=0 // pred_check_branch
    %383 = sbr.rel (0) target = $region25
  $region24: #{vae_forward.14} parent=0 // pred_region
    _
  $region25: #{vae_forward.14} parent=0 // pred_fallthru
    _
  // Predicated region
  $region26: #{vae_forward.14} parent=0 // pred_check
    _
  $region27: #{vae_forward.14} parent=0 // pred_check_branch
    %385 = sbr.rel (0) target = $region29
  $region28: #{vae_forward.14} parent=0 // pred_region
    _
  $region29: #{vae_forward.14} parent=0 // pred_fallthru
    _

// kernel: vae_forward.16
$region0: #{vae_forward.16}
  #allocation0 [shape = 'u32[]', space=smem, size = 0x4, offset = 0x4, fixed_abs, tag = 'smem constant byte address 0x4 - core index']
  #allocation1 [shape = 'u32[144,128]{1,0:T(1,128)}', space=vmem, size = 0x12000, scoped, tag = 'internal scratch']
  #allocation2 [shape = 'f32[8,128]{1,0:T(8,128)}', space=vmem, size = 0x1000, scoped, tag = 'scratch operand']
  %s0 = inlined_call_operand.vmem [shape: bf16[8,256], index: 0, kind: input, shape index: {}]
  %s1 = inlined_call_operand.vmem [shape: bf16[256,128], index: 1, kind: input, shape index: {}]
  %s2 = inlined_call_operand.vmem [shape: f32[1,128], index: 2, kind: input, shape index: {}]
  %s3 = inlined_call_operand.vmem [shape: f32[8,128], index: 3, kind: output, shape index: {}]
  %s4 = sld [smem:[#allocation0]]
  $region30: #{vae_forward.16} parent=0
    _
  %s6 = ssub.s32 1, %s4
  %s7 = scalar_select 0, %s6, %s4
  // Predicated region
  $region2: #{vae_forward.16} parent=0 // pred_check
    _
  $region3: #{vae_forward.16} parent=0 // pred_check_branch
    %9 = sbr.rel (0) target = $region5
  $region4: #{vae_forward.16} parent=0 // pred_region
    _
  $region5: #{vae_forward.16} parent=0 // pred_fallthru
    _
  // Predicated region
  $region6: #{vae_forward.16} parent=0 // pred_check
    _
  $region7: #{vae_forward.16} parent=0 // pred_check_branch
    %11 = sbr.rel (0) target = $region9
  $region8: #{vae_forward.16} parent=0 // pred_region
    _
  $region9: #{vae_forward.16} parent=0 // pred_fallthru
    _
  // Predicated region
  $region10: #{vae_forward.16} parent=0 // pred_check
    _
  $region11: #{vae_forward.16} parent=0 // pred_check_branch
    %13 = sbr.rel (0) target = $region13
  $region12: #{vae_forward.16} parent=0 // pred_region
    _
  $region13: #{vae_forward.16} parent=0 // pred_fallthru
    _
  %p15 = scmp.eq.s32.totalorder 0, 0
  // Predicated region
  $region14: #{vae_forward.16} parent=0 // pred_check
    %p16 = pneg %p15
  $region15: #{vae_forward.16} parent=0 // pred_check_branch
    %18 = sbr.rel (%p16) target = $region17
  $region16: #{vae_forward.16} parent=0 // pred_region
    %19 = vst [vmem:[#allocation2] sm:$0xff] 0.0
  $region17: #{vae_forward.16} parent=0 // pred_fallthru
    _
  %v20 = vld [vmem:[#allocation2] sm:$0xff]
  %v21 = vld [vmem:[%s0] sm:$0xff]
  %v22 = vld [vmem:[%s1] sm:$0xf]
  %v23 = vld [vmem:[%s1 + $0x4] sm:$0xf]
  %v24 = vld [vmem:[%s1 + $0x8] sm:$0xf]
  %v25 = vld [vmem:[%s1 + $0xc] sm:$0xf]
  %v26 = vld [vmem:[%s1 + $0x10] sm:$0xf]
  %v27 = vld [vmem:[%s1 + $0x14] sm:$0xf]
  %v28 = vld [vmem:[%s1 + $0x18] sm:$0xf]
  %v29 = vld [vmem:[%s1 + $0x1c] sm:$0xf]
  %v30 = vld [vmem:[%s1 + $0x20] sm:$0xf]
  %v31 = vld [vmem:[%s1 + $0x24] sm:$0xf]
  %v32 = vld [vmem:[%s1 + $0x28] sm:$0xf]
  %v33 = vld [vmem:[%s1 + $0x2c] sm:$0xf]
  %v34 = vld [vmem:[%s1 + $0x30] sm:$0xf]
  %v35 = vld [vmem:[%s1 + $0x34] sm:$0xf]
  %v36 = vld [vmem:[%s1 + $0x38] sm:$0xf]
  %v37 = vld [vmem:[%s1 + $0x3c] sm:$0xf]
  %v38 = vld [vmem:[%s1 + $0x40] sm:$0xf]
  %v39 = vld [vmem:[%s1 + $0x44] sm:$0xf]
  %v40 = vld [vmem:[%s1 + $0x48] sm:$0xf]
  %v41 = vld [vmem:[%s1 + $0x4c] sm:$0xf]
  %v42 = vld [vmem:[%s1 + $0x50] sm:$0xf]
  %v43 = vld [vmem:[%s1 + $0x54] sm:$0xf]
  %v44 = vld [vmem:[%s1 + $0x58] sm:$0xf]
  %v45 = vld [vmem:[%s1 + $0x5c] sm:$0xf]
  %v46 = vld [vmem:[%s1 + $0x60] sm:$0xf]
  %v47 = vld [vmem:[%s1 + $0x64] sm:$0xf]
  %v48 = vld [vmem:[%s1 + $0x68] sm:$0xf]
  %v49 = vld [vmem:[%s1 + $0x6c] sm:$0xf]
  %v50 = vld [vmem:[%s1 + $0x70] sm:$0xf]
  %v51 = vld [vmem:[%s1 + $0x74] sm:$0xf]
  %v52 = vld [vmem:[%s1 + $0x78] sm:$0xf]
  %v53 = vld [vmem:[%s1 + $0x7c] sm:$0xf]
  %v55 = vunpack.c.l.b16 %v21
  %v56 = vunpack.c.h.b16 %v21
  %v57 = vpack.c.b16 %v55, %v55
  %v58 = vpack.c.b16 %v56, %v56
  %v93 = vunpack.c.l.b16 %v22
  %v94 = vunpack.c.l.b16 %v23
  %v95 = vunpack.c.l.b16 %v24
  %v96 = vunpack.c.l.b16 %v25
  %v97 = vunpack.c.l.b16 %v26
  %v98 = vunpack.c.l.b16 %v27
  %v99 = vunpack.c.l.b16 %v28
  %v100 = vunpack.c.l.b16 %v29
  %v101 = vunpack.c.l.b16 %v30
  %v102 = vunpack.c.l.b16 %v31
  %v103 = vunpack.c.l.b16 %v32
  %v104 = vunpack.c.l.b16 %v33
  %v105 = vunpack.c.l.b16 %v34
  %v106 = vunpack.c.l.b16 %v35
  %v107 = vunpack.c.l.b16 %v36
  %v108 = vunpack.c.l.b16 %v37
  %v109 = vunpack.c.l.b16 %v38
  %v110 = vunpack.c.l.b16 %v39
  %v111 = vunpack.c.l.b16 %v40
  %v112 = vunpack.c.l.b16 %v41
  %v113 = vunpack.c.l.b16 %v42
  %v114 = vunpack.c.l.b16 %v43
  %v115 = vunpack.c.l.b16 %v44
  %v116 = vunpack.c.l.b16 %v45
  %v117 = vunpack.c.l.b16 %v46
  %v118 = vunpack.c.l.b16 %v47
  %v119 = vunpack.c.l.b16 %v48
  %v120 = vunpack.c.l.b16 %v49
  %v121 = vunpack.c.l.b16 %v50
  %v122 = vunpack.c.l.b16 %v51
  %v123 = vunpack.c.l.b16 %v52
  %v124 = vunpack.c.l.b16 %v53
  %v125 = vpack.c.b16 %v94, %v93
  %v126 = vpack.c.b16 %v96, %v95
  %v127 = vpack.c.b16 %v98, %v97
  %v128 = vpack.c.b16 %v100, %v99
  %v129 = vpack.c.b16 %v102, %v101
  %v130 = vpack.c.b16 %v104, %v103
  %v131 = vpack.c.b16 %v106, %v105
  %v132 = vpack.c.b16 %v108, %v107
  %v133 = vpack.c.b16 %v110, %v109
  %v134 = vpack.c.b16 %v112, %v111
  %v135 = vpack.c.b16 %v114, %v113
  %v136 = vpack.c.b16 %v116, %v115
  %v137 = vpack.c.b16 %v118, %v117
  %v138 = vpack.c.b16 %v120, %v119
  %v139 = vpack.c.b16 %v122, %v121
  %v140 = vpack.c.b16 %v124, %v123
  %157 = vmatprep.subr.bf16.mxu0 0
  %158 = vmatpush1.bf16.msra.mxu0 %v125
  %159 = vmatprep.subr.bf16.mxu0 0
  %160 = vmatpush1.bf16.msra.mxu0 %v126
  %161 = vmatprep.subr.bf16.mxu0 0
  %162 = vmatpush1.bf16.msra.mxu0 %v127
  %163 = vmatprep.subr.bf16.mxu0 0
  %164 = vmatpush1.bf16.msra.mxu0 %v128
  %165 = vmatprep.subr.bf16.mxu0 0
  %166 = vmatpush1.bf16.msra.mxu0 %v129
  %167 = vmatprep.subr.bf16.mxu0 0
  %168 = vmatpush1.bf16.msra.mxu0 %v130
  %169 = vmatprep.subr.bf16.mxu0 0
  %170 = vmatpush1.bf16.msra.mxu0 %v131
  %171 = vmatprep.subr.bf16.mxu0 0
  %172 = vmatpush1.bf16.msra.mxu0 %v132
  %173 = vmatprep.subr.bf16.mxu0 0
  %174 = vmatpush1.bf16.msra.mxu0 %v133
  %175 = vmatprep.subr.bf16.mxu0 0
  %176 = vmatpush1.bf16.msra.mxu0 %v134
  %177 = vmatprep.subr.bf16.mxu0 0
  %178 = vmatpush1.bf16.msra.mxu0 %v135
  %179 = vmatprep.subr.bf16.mxu0 0
  %180 = vmatpush1.bf16.msra.mxu0 %v136
  %181 = vmatprep.subr.bf16.mxu0 0
  %182 = vmatpush1.bf16.msra.mxu0 %v137
  %183 = vmatprep.subr.bf16.mxu0 0
  %184 = vmatpush1.bf16.msra.mxu0 %v138
  %185 = vmatprep.subr.bf16.mxu0 0
  %186 = vmatpush1.bf16.msra.mxu0 %v139
  %187 = vmatprep.subr.bf16.mxu0 0
  %188 = vmatpush1.bf16.msra.mxu0 %v140
  %189 = vmatprep.mubr.bf16.mxu0 %v58
  %190 = vmatmul.mubr.bf16.gmra.mrb[0].mxu0 %v57
  %v191 = vpop.f32.mrb[0].mxu0
  %v192 = vadd.f32 0.0, %v191
  %v193 = vpop.f32.mrb[0].mxu0
  %v194 = vpop.f32.mrb[0].mxu0
  %v195 = vpop.f32.mrb[0].mxu0
  %196 = vdwg.mxu0
  %v197 = vadd.f32 %v20, %v192
  %198 = vst [vmem:[#allocation2] sm:$0xff] %v197
  // Predicated region
  $region18: #{vae_forward.16} parent=0 // pred_check
    %p199 = pneg %p15
  $region19: #{vae_forward.16} parent=0 // pred_check_branch
    %201 = sbr.rel (%p199) target = $region21
  $region20: #{vae_forward.16} parent=0 // pred_region
    %v202 = vld [vmem:[#allocation2] sm:$0xff]
    %v203 = vld [vmem:[%s2] sm:$0x1]
    %v205 = vlaneseq
    %v206 = vshrl.u32 %v205, 7
    %v207 = vsub.s32 0, %v206
    %v208 = vrot.slane %v203, %v207
    %v210 = vadd.f32 %v202, %v208
    %v211 = vmax.f32 %v210, 0.0
    %212 = vst [vmem:[%s3] sm:$0xff] %v211
  $region21: #{vae_forward.16} parent=0 // pred_fallthru
    _
  // Predicated region
  $region22: #{vae_forward.16} parent=0 // pred_check
    _
  $region23: #{vae_forward.16} parent=0 // pred_check_branch
    %214 = sbr.rel (0) target = $region25
  $region24: #{vae_forward.16} parent=0 // pred_region
    _
  $region25: #{vae_forward.16} parent=0 // pred_fallthru
    _
  // Predicated region
  $region26: #{vae_forward.16} parent=0 // pred_check
    _
  $region27: #{vae_forward.16} parent=0 // pred_check_branch
    %216 = sbr.rel (0) target = $region29
  $region28: #{vae_forward.16} parent=0 // pred_region
    _
  $region29: #{vae_forward.16} parent=0 // pred_fallthru
    _

// kernel: vae_forward.17
$region0: #{vae_forward.17}
  #allocation0 [shape = 'u32[]', space=smem, size = 0x4, offset = 0x4, fixed_abs, tag = 'smem constant byte address 0x4 - core index']
  #allocation1 [shape = 'u32[144,128]{1,0:T(1,128)}', space=vmem, size = 0x12000, scoped, tag = 'internal scratch']
  #allocation2 [shape = 'f32[8,128]{1,0:T(8,128)}', space=vmem, size = 0x1000, scoped, tag = 'scratch operand']
  %s0 = inlined_call_operand.vmem [shape: bf16[8,128], index: 0, kind: input, shape index: {}]
  %s1 = inlined_call_operand.vmem [shape: bf16[128,128], index: 1, kind: input, shape index: {}]
  %s2 = inlined_call_operand.vmem [shape: f32[1,128], index: 2, kind: input, shape index: {}]
  %s3 = inlined_call_operand.vmem [shape: f32[8,128], index: 3, kind: output, shape index: {}]
  %s4 = sld [smem:[#allocation0]]
  $region30: #{vae_forward.17} parent=0
    _
  %s6 = ssub.s32 1, %s4
  %s7 = scalar_select 0, %s6, %s4
  // Predicated region
  $region2: #{vae_forward.17} parent=0 // pred_check
    _
  $region3: #{vae_forward.17} parent=0 // pred_check_branch
    %9 = sbr.rel (0) target = $region5
  $region4: #{vae_forward.17} parent=0 // pred_region
    _
  $region5: #{vae_forward.17} parent=0 // pred_fallthru
    _
  // Predicated region
  $region6: #{vae_forward.17} parent=0 // pred_check
    _
  $region7: #{vae_forward.17} parent=0 // pred_check_branch
    %11 = sbr.rel (0) target = $region9
  $region8: #{vae_forward.17} parent=0 // pred_region
    _
  $region9: #{vae_forward.17} parent=0 // pred_fallthru
    _
  // Predicated region
  $region10: #{vae_forward.17} parent=0 // pred_check
    _
  $region11: #{vae_forward.17} parent=0 // pred_check_branch
    %13 = sbr.rel (0) target = $region13
  $region12: #{vae_forward.17} parent=0 // pred_region
    _
  $region13: #{vae_forward.17} parent=0 // pred_fallthru
    _
  %p15 = scmp.eq.s32.totalorder 0, 0
  // Predicated region
  $region14: #{vae_forward.17} parent=0 // pred_check
    %p16 = pneg %p15
  $region15: #{vae_forward.17} parent=0 // pred_check_branch
    %18 = sbr.rel (%p16) target = $region17
  $region16: #{vae_forward.17} parent=0 // pred_region
    %19 = vst [vmem:[#allocation2] sm:$0xff] 0.0
  $region17: #{vae_forward.17} parent=0 // pred_fallthru
    _
  %v20 = vld [vmem:[#allocation2] sm:$0xff]
  %v21 = vld [vmem:[%s0] sm:$0xf]
  %v22 = vld [vmem:[%s1] sm:$0xf]
  %v23 = vld [vmem:[%s1 + $0x4] sm:$0xf]
  %v24 = vld [vmem:[%s1 + $0x8] sm:$0xf]
  %v25 = vld [vmem:[%s1 + $0xc] sm:$0xf]
  %v26 = vld [vmem:[%s1 + $0x10] sm:$0xf]
  %v27 = vld [vmem:[%s1 + $0x14] sm:$0xf]
  %v28 = vld [vmem:[%s1 + $0x18] sm:$0xf]
  %v29 = vld [vmem:[%s1 + $0x1c] sm:$0xf]
  %v30 = vld [vmem:[%s1 + $0x20] sm:$0xf]
  %v31 = vld [vmem:[%s1 + $0x24] sm:$0xf]
  %v32 = vld [vmem:[%s1 + $0x28] sm:$0xf]
  %v33 = vld [vmem:[%s1 + $0x2c] sm:$0xf]
  %v34 = vld [vmem:[%s1 + $0x30] sm:$0xf]
  %v35 = vld [vmem:[%s1 + $0x34] sm:$0xf]
  %v36 = vld [vmem:[%s1 + $0x38] sm:$0xf]
  %v37 = vld [vmem:[%s1 + $0x3c] sm:$0xf]
  %v54 = vunpack.c.l.b16 %v22
  %v55 = vunpack.c.l.b16 %v23
  %v56 = vunpack.c.l.b16 %v24
  %v57 = vunpack.c.l.b16 %v25
  %v58 = vunpack.c.l.b16 %v26
  %v59 = vunpack.c.l.b16 %v27
  %v60 = vunpack.c.l.b16 %v28
  %v61 = vunpack.c.l.b16 %v29
  %v62 = vunpack.c.l.b16 %v30
  %v63 = vunpack.c.l.b16 %v31
  %v64 = vunpack.c.l.b16 %v32
  %v65 = vunpack.c.l.b16 %v33
  %v66 = vunpack.c.l.b16 %v34
  %v67 = vunpack.c.l.b16 %v35
  %v68 = vunpack.c.l.b16 %v36
  %v69 = vunpack.c.l.b16 %v37
  %v70 = vpack.c.b16 %v55, %v54
  %v71 = vpack.c.b16 %v57, %v56
  %v72 = vpack.c.b16 %v59, %v58
  %v73 = vpack.c.b16 %v61, %v60
  %v74 = vpack.c.b16 %v63, %v62
  %v75 = vpack.c.b16 %v65, %v64
  %v76 = vpack.c.b16 %v67, %v66
  %v77 = vpack.c.b16 %v69, %v68
  %86 = vmatprep.subr.bf16.mxu0 0
  %87 = vmatpush1.bf16.msra.mxu0 %v70
  %88 = vmatprep.subr.bf16.mxu0 0
  %89 = vmatpush1.bf16.msra.mxu0 %v71
  %90 = vmatprep.subr.bf16.mxu0 0
  %91 = vmatpush1.bf16.msra.mxu0 %v72
  %92 = vmatprep.subr.bf16.mxu0 0
  %93 = vmatpush1.bf16.msra.mxu0 %v73
  %94 = vmatprep.subr.bf16.mxu0 0
  %95 = vmatpush1.bf16.msra.mxu0 %v74
  %96 = vmatprep.subr.bf16.mxu0 0
  %97 = vmatpush1.bf16.msra.mxu0 %v75
  %98 = vmatprep.subr.bf16.mxu0 0
  %99 = vmatpush1.bf16.msra.mxu0 %v76
  %100 = vmatprep.subr.bf16.mxu0 0
  %101 = vmatpush1.bf16.msra.mxu0 %v77
  %102 = vmatprep.subr.bf16.mxu0 0
  %103 = vmatpush1.bf16.msra.mxu0 0
  %104 = vmatprep.subr.bf16.mxu0 0
  %105 = vmatpush1.bf16.msra.mxu0 0
  %106 = vmatprep.subr.bf16.mxu0 0
  %107 = vmatpush1.bf16.msra.mxu0 0
  %108 = vmatprep.subr.bf16.mxu0 0
  %109 = vmatpush1.bf16.msra.mxu0 0
  %110 = vmatprep.subr.bf16.mxu0 0
  %111 = vmatpush1.bf16.msra.mxu0 0
  %112 = vmatprep.subr.bf16.mxu0 0
  %113 = vmatpush1.bf16.msra.mxu0 0
  %114 = vmatprep.subr.bf16.mxu0 0
  %115 = vmatpush1.bf16.msra.mxu0 0
  %116 = vmatprep.subr.bf16.mxu0 0
  %117 = vmatpush1.bf16.msra.mxu0 0
  %118 = vmatprep.mubr.bf16.mxu0 0
  %119 = vmatmul.mubr.bf16.gmra.mrb[0].mxu0 %v21
  %v120 = vpop.f32.mrb[0].mxu0
  %v121 = vadd.f32 0.0, %v120
  %v122 = vpop.f32.mrb[0].mxu0
  %v123 = vpop.f32.mrb[0].mxu0
  %v124 = vpop.f32.mrb[0].mxu0
  %125 = vdwg.mxu0
  %v126 = vadd.f32 %v20, %v121
  %127 = vst [vmem:[#allocation2] sm:$0xff] %v126
  // Predicated region
  $region18: #{vae_forward.17} parent=0 // pred_check
    %p128 = pneg %p15
  $region19: #{vae_forward.17} parent=0 // pred_check_branch
    %130 = sbr.rel (%p128) target = $region21
  $region20: #{vae_forward.17} parent=0 // pred_region
    %v131 = vld [vmem:[#allocation2] sm:$0xff]
    %v132 = vld [vmem:[%s2] sm:$0x1]
    %v134 = vlaneseq
    %v135 = vshrl.u32 %v134, 7
    %v136 = vsub.s32 0, %v135
    %v137 = vrot.slane %v132, %v136
    %v139 = vadd.f32 %v131, %v137
    %140 = vst [vmem:[%s3] sm:$0xff] %v139
  $region21: #{vae_forward.17} parent=0 // pred_fallthru
    _
  // Predicated region
  $region22: #{vae_forward.17} parent=0 // pred_check
    _
  $region23: #{vae_forward.17} parent=0 // pred_check_branch
    %142 = sbr.rel (0) target = $region25
  $region24: #{vae_forward.17} parent=0 // pred_region
    _
  $region25: #{vae_forward.17} parent=0 // pred_fallthru
    _
  // Predicated region
  $region26: #{vae_forward.17} parent=0 // pred_check
    _
  $region27: #{vae_forward.17} parent=0 // pred_check_branch
    %144 = sbr.rel (0) target = $region29
  $region28: #{vae_forward.17} parent=0 // pred_region
    _
  $region29: #{vae_forward.17} parent=0 // pred_fallthru
    _

// kernel: vae_forward.20
$region0: #{vae_forward.20}
  #allocation0 [shape = 'u32[]', space=smem, size = 0x4, offset = 0x4, fixed_abs, tag = 'smem constant byte address 0x4 - core index']
  #allocation1 [shape = 'u32[144,128]{1,0:T(1,128)}', space=vmem, size = 0x12000, scoped, tag = 'internal scratch']
  #allocation2 [shape = 'f32[8,384]{1,0:T(8,128)}', space=vmem, size = 0x3000, scoped, tag = 'scratch operand']
  %s0 = inlined_call_operand.vmem [shape: bf16[8,128], index: 0, kind: input, shape index: {}]
  %s1 = inlined_call_operand.vmem [shape: bf16[128,384], index: 1, kind: input, shape index: {}]
  %s2 = inlined_call_operand.vmem [shape: f32[1,384], index: 2, kind: input, shape index: {}]
  %s3 = inlined_call_operand.vmem [shape: f32[8,384], index: 3, kind: output, shape index: {}]
  %s4 = sld [smem:[#allocation0]]
  $region30: #{vae_forward.20} parent=0
    _
  %s6 = ssub.s32 1, %s4
  %s7 = scalar_select 0, %s6, %s4
  // Predicated region
  $region2: #{vae_forward.20} parent=0 // pred_check
    _
  $region3: #{vae_forward.20} parent=0 // pred_check_branch
    %9 = sbr.rel (0) target = $region5
  $region4: #{vae_forward.20} parent=0 // pred_region
    _
  $region5: #{vae_forward.20} parent=0 // pred_fallthru
    _
  // Predicated region
  $region6: #{vae_forward.20} parent=0 // pred_check
    _
  $region7: #{vae_forward.20} parent=0 // pred_check_branch
    %11 = sbr.rel (0) target = $region9
  $region8: #{vae_forward.20} parent=0 // pred_region
    _
  $region9: #{vae_forward.20} parent=0 // pred_fallthru
    _
  // Predicated region
  $region10: #{vae_forward.20} parent=0 // pred_check
    _
  $region11: #{vae_forward.20} parent=0 // pred_check_branch
    %13 = sbr.rel (0) target = $region13
  $region12: #{vae_forward.20} parent=0 // pred_region
    _
  $region13: #{vae_forward.20} parent=0 // pred_fallthru
    _
  %p15 = scmp.eq.s32.totalorder 0, 0
  // Predicated region
  $region14: #{vae_forward.20} parent=0 // pred_check
    %p16 = pneg %p15
  $region15: #{vae_forward.20} parent=0 // pred_check_branch
    %18 = sbr.rel (%p16) target = $region17
  $region16: #{vae_forward.20} parent=0 // pred_region
    %19 = vst [vmem:[#allocation2] sm:$0xff] 0.0
    %20 = vst [vmem:[#allocation2 + $0x8] sm:$0xff] 0.0
    %21 = vst [vmem:[#allocation2 + $0x10] sm:$0xff] 0.0
  $region17: #{vae_forward.20} parent=0 // pred_fallthru
    _
  %v22 = vld [vmem:[#allocation2] sm:$0xff]
  %v23 = vld [vmem:[#allocation2 + $0x8] sm:$0xff]
  %v24 = vld [vmem:[#allocation2 + $0x10] sm:$0xff]
  %v25 = vld [vmem:[%s0] sm:$0xf]
  %v26 = vld [vmem:[%s1] sm:$0xff]
  %v27 = vld [vmem:[%s1 + $0x8] sm:$0xf]
  %v28 = vld [vmem:[%s1 + $0xc] sm:$0xff]
  %v29 = vld [vmem:[%s1 + $0x14] sm:$0xf]
  %v30 = vld [vmem:[%s1 + $0x18] sm:$0xff]
  %v31 = vld [vmem:[%s1 + $0x20] sm:$0xf]
  %v32 = vld [vmem:[%s1 + $0x24] sm:$0xff]
  %v33 = vld [vmem:[%s1 + $0x2c] sm:$0xf]
  %v34 = vld [vmem:[%s1 + $0x30] sm:$0xff]
  %v35 = vld [vmem:[%s1 + $0x38] sm:$0xf]
  %v36 = vld [vmem:[%s1 + $0x3c] sm:$0xff]
  %v37 = vld [vmem:[%s1 + $0x44] sm:$0xf]
  %v38 = vld [vmem:[%s1 + $0x48] sm:$0xff]
  %v39 = vld [vmem:[%s1 + $0x50] sm:$0xf]
  %v40 = vld [vmem:[%s1 + $0x54] sm:$0xff]
  %v41 = vld [vmem:[%s1 + $0x5c] sm:$0xf]
  %v42 = vld [vmem:[%s1 + $0x60] sm:$0xff]
  %v43 = vld [vmem:[%s1 + $0x68] sm:$0xf]
  %v44 = vld [vmem:[%s1 + $0x6c] sm:$0xff]
  %v45 = vld [vmem:[%s1 + $0x74] sm:$0xf]
  %v46 = vld [vmem:[%s1 + $0x78] sm:$0xff]
  %v47 = vld [vmem:[%s1 + $0x80] sm:$0xf]
  %v48 = vld [vmem:[%s1 + $0x84] sm:$0xff]
  %v49 = vld [vmem:[%s1 + $0x8c] sm:$0xf]
  %v50 = vld [vmem:[%s1 + $0x90] sm:$0xff]
  %v51 = vld [vmem:[%s1 + $0x98] sm:$0xf]
  %v52 = vld [vmem:[%s1 + $0x9c] sm:$0xff]
  %v53 = vld [vmem:[%s1 + $0xa4] sm:$0xf]
  %v54 = vld [vmem:[%s1 + $0xa8] sm:$0xff]
  %v55 = vld [vmem:[%s1 + $0xb0] sm:$0xf]
  %v56 = vld [vmem:[%s1 + $0xb4] sm:$0xff]
  %v57 = vld [vmem:[%s1 + $0xbc] sm:$0xf]
  %v90 = vunpack.c.l.b16 %v26
  %v91 = vunpack.c.h.b16 %v26
  %v92 = vunpack.c.l.b16 %v27
  %v93 = vunpack.c.l.b16 %v28
  %v94 = vunpack.c.h.b16 %v28
  %v95 = vunpack.c.l.b16 %v29
  %v96 = vunpack.c.l.b16 %v30
  %v97 = vunpack.c.h.b16 %v30
  %v98 = vunpack.c.l.b16 %v31
  %v99 = vunpack.c.l.b16 %v32
  %v100 = vunpack.c.h.b16 %v32
  %v101 = vunpack.c.l.b16 %v33
  %v102 = vunpack.c.l.b16 %v34
  %v103 = vunpack.c.h.b16 %v34
  %v104 = vunpack.c.l.b16 %v35
  %v105 = vunpack.c.l.b16 %v36
  %v106 = vunpack.c.h.b16 %v36
  %v107 = vunpack.c.l.b16 %v37
  %v108 = vunpack.c.l.b16 %v38
  %v109 = vunpack.c.h.b16 %v38
  %v110 = vunpack.c.l.b16 %v39
  %v111 = vunpack.c.l.b16 %v40
  %v112 = vunpack.c.h.b16 %v40
  %v113 = vunpack.c.l.b16 %v41
  %v114 = vunpack.c.l.b16 %v42
  %v115 = vunpack.c.h.b16 %v42
  %v116 = vunpack.c.l.b16 %v43
  %v117 = vunpack.c.l.b16 %v44
  %v118 = vunpack.c.h.b16 %v44
  %v119 = vunpack.c.l.b16 %v45
  %v120 = vunpack.c.l.b16 %v46
  %v121 = vunpack.c.h.b16 %v46
  %v122 = vunpack.c.l.b16 %v47
  %v123 = vunpack.c.l.b16 %v48
  %v124 = vunpack.c.h.b16 %v48
  %v125 = vunpack.c.l.b16 %v49
  %v126 = vunpack.c.l.b16 %v50
  %v127 = vunpack.c.h.b16 %v50
  %v128 = vunpack.c.l.b16 %v51
  %v129 = vunpack.c.l.b16 %v52
  %v130 = vunpack.c.h.b16 %v52
  %v131 = vunpack.c.l.b16 %v53
  %v132 = vunpack.c.l.b16 %v54
  %v133 = vunpack.c.h.b16 %v54
  %v134 = vunpack.c.l.b16 %v55
  %v135 = vunpack.c.l.b16 %v56
  %v136 = vunpack.c.h.b16 %v56
  %v137 = vunpack.c.l.b16 %v57
  %v138 = vpack.c.b16 %v93, %v90
  %v139 = vpack.c.b16 %v94, %v91
  %v140 = vpack.c.b16 %v95, %v92
  %v141 = vpack.c.b16 %v99, %v96
  %v142 = vpack.c.b16 %v100, %v97
  %v143 = vpack.c.b16 %v101, %v98
  %v144 = vpack.c.b16 %v105, %v102
  %v145 = vpack.c.b16 %v106, %v103
  %v146 = vpack.c.b16 %v107, %v104
  %v147 = vpack.c.b16 %v111, %v108
  %v148 = vpack.c.b16 %v112, %v109
  %v149 = vpack.c.b16 %v113, %v110
  %v150 = vpack.c.b16 %v117, %v114
  %v151 = vpack.c.b16 %v118, %v115
  %v152 = vpack.c.b16 %v119, %v116
  %v153 = vpack.c.b16 %v123, %v120
  %v154 = vpack.c.b16 %v124, %v121
  %v155 = vpack.c.b16 %v125, %v122
  %v156 = vpack.c.b16 %v129, %v126
  %v157 = vpack.c.b16 %v130, %v127
  %v158 = vpack.c.b16 %v131, %v128
  %v159 = vpack.c.b16 %v135, %v132
  %v160 = vpack.c.b16 %v136, %v133
  %v161 = vpack.c.b16 %v137, %v134
  %186 = vmatprep.subr.bf16.mxu0 %v139
  %187 = vmatpush1.bf16.msra.mxu0 %v138
  %188 = vmatprep.subr.bf16.mxu0 %v142
  %189 = vmatpush1.bf16.msra.mxu0 %v141
  %190 = vmatprep.subr.bf16.mxu0 %v145
  %191 = vmatpush1.bf16.msra.mxu0 %v144
  %192 = vmatprep.subr.bf16.mxu0 %v148
  %193 = vmatpush1.bf16.msra.mxu0 %v147
  %194 = vmatprep.subr.bf16.mxu0 %v151
  %195 = vmatpush1.bf16.msra.mxu0 %v150
  %196 = vmatprep.subr.bf16.mxu0 %v154
  %197 = vmatpush1.bf16.msra.mxu0 %v153
  %198 = vmatprep.subr.bf16.mxu0 %v157
  %199 = vmatpush1.bf16.msra.mxu0 %v156
  %200 = vmatprep.subr.bf16.mxu0 %v160
  %201 = vmatpush1.bf16.msra.mxu0 %v159
  %202 = vmatprep.subr.bf16.mxu0 0
  %203 = vmatpush1.bf16.msra.mxu0 0
  %204 = vmatprep.subr.bf16.mxu0 0
  %205 = vmatpush1.bf16.msra.mxu0 0
  %206 = vmatprep.subr.bf16.mxu0 0
  %207 = vmatpush1.bf16.msra.mxu0 0
  %208 = vmatprep.subr.bf16.mxu0 0
  %209 = vmatpush1.bf16.msra.mxu0 0
  %210 = vmatprep.subr.bf16.mxu0 0
  %211 = vmatpush1.bf16.msra.mxu0 0
  %212 = vmatprep.subr.bf16.mxu0 0
  %213 = vmatpush1.bf16.msra.mxu0 0
  %214 = vmatprep.subr.bf16.mxu0 0
  %215 = vmatpush1.bf16.msra.mxu0 0
  %216 = vmatprep.subr.bf16.mxu0 0
  %217 = vmatpush1.bf16.msra.mxu0 0
  %218 = vmatprep.mubr.bf16.mxu0 0
  %219 = vmatmul.mubr.bf16.gmra.mrb[0].mxu0 %v25
  %v220 = vpop.f32.mrb[0].mxu0
  %v221 = vadd.f32 0.0, %v220
  %v222 = vpop.f32.mrb[0].mxu0
  %v223 = vadd.f32 0.0, %v222
  %v224 = vpop.f32.mrb[0].mxu0
  %v225 = vpop.f32.mrb[0].mxu0
  %226 = vdwg.mxu0
  %227 = vmatprep.subr.bf16.mxu0 0
  %228 = vmatpush1.bf16.msra.mxu0 %v140
  %229 = vmatprep.subr.bf16.mxu0 0
  %230 = vmatpush1.bf16.msra.mxu0 %v143
  %231 = vmatprep.subr.bf16.mxu0 0
  %232 = vmatpush1.bf16.msra.mxu0 %v146
  %233 = vmatprep.subr.bf16.mxu0 0
  %234 = vmatpush1.bf16.msra.mxu0 %v149
  %235 = vmatprep.subr.bf16.mxu0 0
  %236 = vmatpush1.bf16.msra.mxu0 %v152
  %237 = vmatprep.subr.bf16.mxu0 0
  %238 = vmatpush1.bf16.msra.mxu0 %v155
  %239 = vmatprep.subr.bf16.mxu0 0
  %240 = vmatpush1.bf16.msra.mxu0 %v158
  %241 = vmatprep.subr.bf16.mxu0 0
  %242 = vmatpush1.bf16.msra.mxu0 %v161
  %243 = vmatprep.subr.bf16.mxu0 0
  %244 = vmatpush1.bf16.msra.mxu0 0
  %245 = vmatprep.subr.bf16.mxu0 0
  %246 = vmatpush1.bf16.msra.mxu0 0
  %247 = vmatprep.subr.bf16.mxu0 0
  %248 = vmatpush1.bf16.msra.mxu0 0
  %249 = vmatprep.subr.bf16.mxu0 0
  %250 = vmatpush1.bf16.msra.mxu0 0
  %251 = vmatprep.subr.bf16.mxu0 0
  %252 = vmatpush1.bf16.msra.mxu0 0
  %253 = vmatprep.subr.bf16.mxu0 0
  %254 = vmatpush1.bf16.msra.mxu0 0
  %255 = vmatprep.subr.bf16.mxu0 0
  %256 = vmatpush1.bf16.msra.mxu0 0
  %257 = vmatprep.subr.bf16.mxu0 0
  %258 = vmatpush1.bf16.msra.mxu0 0
  %259 = vmatprep.mubr.bf16.mxu0 0
  %260 = vmatmul.mubr.bf16.gmra.mrb[0].mxu0 %v25
  %v261 = vpop.f32.mrb[0].mxu0
  %v262 = vadd.f32 0.0, %v261
  %v263 = vpop.f32.mrb[0].mxu0
  %v264 = vpop.f32.mrb[0].mxu0
  %v265 = vpop.f32.mrb[0].mxu0
  %266 = vdwg.mxu0
  %v267 = vadd.f32 %v22, %v221
  %v268 = vadd.f32 %v23, %v223
  %v269 = vadd.f32 %v24, %v262
  %270 = vst [vmem:[#allocation2] sm:$0xff] %v267
  %271 = vst [vmem:[#allocation2 + $0x8] sm:$0xff] %v268
  %272 = vst [vmem:[#allocation2 + $0x10] sm:$0xff] %v269
  // Predicated region
  $region18: #{vae_forward.20} parent=0 // pred_check
    %p273 = pneg %p15
  $region19: #{vae_forward.20} parent=0 // pred_check_branch
    %275 = sbr.rel (%p273) target = $region21
  $region20: #{vae_forward.20} parent=0 // pred_region
    %v276 = vld [vmem:[#allocation2] sm:$0xff]
    %v277 = vld [vmem:[#allocation2 + $0x8] sm:$0xff]
    %v278 = vld [vmem:[#allocation2 + $0x10] sm:$0xff]
    %v279 = vld [vmem:[%s2] sm:$0x7]
    %v281 = vlaneseq
    %v282 = vshrl.u32 %v281, 7
    %v283 = vsub.s32 0, %v282
    %v284 = vrot.slane %v279, %v283
    %v285 = vlaneseq
    %v286 = vshrl.u32 %v285, 7
    %v287 = vsub.s32 1, %v286
    %v288 = vrot.slane %v279, %v287
    %v289 = vlaneseq
    %v290 = vshrl.u32 %v289, 7
    %v291 = vsub.s32 2, %v290
    %v292 = vrot.slane %v279, %v291
    %v296 = vadd.f32 %v276, %v284
    %v297 = vadd.f32 %v277, %v288
    %v298 = vadd.f32 %v278, %v292
    %299 = vst [vmem:[%s3] sm:$0xff] %v296
    %300 = vst [vmem:[%s3 + $0x8] sm:$0xff] %v297
    %301 = vst [vmem:[%s3 + $0x10] sm:$0xff] %v298
  $region21: #{vae_forward.20} parent=0 // pred_fallthru
    _
  // Predicated region
  $region22: #{vae_forward.20} parent=0 // pred_check
    _
  $region23: #{vae_forward.20} parent=0 // pred_check_branch
    %303 = sbr.rel (0) target = $region25
  $region24: #{vae_forward.20} parent=0 // pred_region
    _
  $region25: #{vae_forward.20} parent=0 // pred_fallthru
    _
  // Predicated region
  $region26: #{vae_forward.20} parent=0 // pred_check
    _
  $region27: #{vae_forward.20} parent=0 // pred_check_branch
    %305 = sbr.rel (0) target = $region29
  $region28: #{vae_forward.20} parent=0 // pred_region
    _
  $region29: #{vae_forward.20} parent=0 // pred_fallthru
    _

// kernel: vae_forward.18
$region0: #{vae_forward.18}
  #allocation0 [shape = 'u32[]', space=smem, size = 0x4, offset = 0x4, fixed_abs, tag = 'smem constant byte address 0x4 - core index']
  #allocation1 [shape = 'u32[144,128]{1,0:T(1,128)}', space=vmem, size = 0x12000, scoped, tag = 'internal scratch']
  #allocation2 [shape = 'f32[8,256]{1,0:T(8,128)}', space=vmem, size = 0x2000, scoped, tag = 'scratch operand']
  %s0 = inlined_call_operand.vmem [shape: bf16[8,128], index: 0, kind: input, shape index: {}]
  %s1 = inlined_call_operand.vmem [shape: bf16[128,256], index: 1, kind: input, shape index: {}]
  %s2 = inlined_call_operand.vmem [shape: f32[1,256], index: 2, kind: input, shape index: {}]
  %s3 = inlined_call_operand.vmem [shape: f32[8,128], index: 3, kind: input, shape index: {}]
  %s4 = inlined_call_operand.vmem [shape: f32[8,128], index: 4, kind: output, shape index: {0}]
  %s5 = inlined_call_operand.vmem [shape: f32[8,128], index: 5, kind: output, shape index: {1}]
  %s6 = inlined_call_operand.vmem [shape: f32[8,128], index: 6, kind: output, shape index: {2}]
  %7 = xla_tuple %s4, %s5, %s6
  %s8 = sld [smem:[#allocation0]]
  $region50: #{vae_forward.18} parent=0
    _
  %s10 = ssub.s32 1, %s8
  %s11 = scalar_select 0, %s10, %s8
  // Predicated region
  $region2: #{vae_forward.18} parent=0 // pred_check
    _
  $region3: #{vae_forward.18} parent=0 // pred_check_branch
    %13 = sbr.rel (0) target = $region5
  $region4: #{vae_forward.18} parent=0 // pred_region
    _
  $region5: #{vae_forward.18} parent=0 // pred_fallthru
    _
  // Predicated region
  $region6: #{vae_forward.18} parent=0 // pred_check
    _
  $region7: #{vae_forward.18} parent=0 // pred_check_branch
    %15 = sbr.rel (0) target = $region9
  $region8: #{vae_forward.18} parent=0 // pred_region
    _
  $region9: #{vae_forward.18} parent=0 // pred_fallthru
    _
  // Predicated region
  $region10: #{vae_forward.18} parent=0 // pred_check
    _
  $region11: #{vae_forward.18} parent=0 // pred_check_branch
    %17 = sbr.rel (0) target = $region13
  $region12: #{vae_forward.18} parent=0 // pred_region
    _
  $region13: #{vae_forward.18} parent=0 // pred_fallthru
    _
  // Predicated region
  $region14: #{vae_forward.18} parent=0 // pred_check
    _
  $region15: #{vae_forward.18} parent=0 // pred_check_branch
    %19 = sbr.rel (0) target = $region17
  $region16: #{vae_forward.18} parent=0 // pred_region
    _
  $region17: #{vae_forward.18} parent=0 // pred_fallthru
    _
  %p21 = scmp.eq.s32.totalorder 0, 0
  // Predicated region
  $region18: #{vae_forward.18} parent=0 // pred_check
    %p22 = pneg %p21
  $region19: #{vae_forward.18} parent=0 // pred_check_branch
    %24 = sbr.rel (%p22) target = $region21
  $region20: #{vae_forward.18} parent=0 // pred_region
    %25 = vst [vmem:[#allocation2] sm:$0xff] 0.0
    %26 = vst [vmem:[#allocation2 + $0x8] sm:$0xff] 0.0
  $region21: #{vae_forward.18} parent=0 // pred_fallthru
    _
  %v27 = vld [vmem:[#allocation2] sm:$0xff]
  %v28 = vld [vmem:[#allocation2 + $0x8] sm:$0xff]
  %v29 = vld [vmem:[%s0] sm:$0xf]
  %v30 = vld [vmem:[%s1] sm:$0xff]
  %v31 = vld [vmem:[%s1 + $0x8] sm:$0xff]
  %v32 = vld [vmem:[%s1 + $0x10] sm:$0xff]
  %v33 = vld [vmem:[%s1 + $0x18] sm:$0xff]
  %v34 = vld [vmem:[%s1 + $0x20] sm:$0xff]
  %v35 = vld [vmem:[%s1 + $0x28] sm:$0xff]
  %v36 = vld [vmem:[%s1 + $0x30] sm:$0xff]
  %v37 = vld [vmem:[%s1 + $0x38] sm:$0xff]
  %v38 = vld [vmem:[%s1 + $0x40] sm:$0xff]
  %v39 = vld [vmem:[%s1 + $0x48] sm:$0xff]
  %v40 = vld [vmem:[%s1 + $0x50] sm:$0xff]
  %v41 = vld [vmem:[%s1 + $0x58] sm:$0xff]
  %v42 = vld [vmem:[%s1 + $0x60] sm:$0xff]
  %v43 = vld [vmem:[%s1 + $0x68] sm:$0xff]
  %v44 = vld [vmem:[%s1 + $0x70] sm:$0xff]
  %v45 = vld [vmem:[%s1 + $0x78] sm:$0xff]
  %v62 = vunpack.c.l.b16 %v30
  %v63 = vunpack.c.h.b16 %v30
  %v64 = vunpack.c.l.b16 %v31
  %v65 = vunpack.c.h.b16 %v31
  %v66 = vunpack.c.l.b16 %v32
  %v67 = vunpack.c.h.b16 %v32
  %v68 = vunpack.c.l.b16 %v33
  %v69 = vunpack.c.h.b16 %v33
  %v70 = vunpack.c.l.b16 %v34
  %v71 = vunpack.c.h.b16 %v34
  %v72 = vunpack.c.l.b16 %v35
  %v73 = vunpack.c.h.b16 %v35
  %v74 = vunpack.c.l.b16 %v36
  %v75 = vunpack.c.h.b16 %v36
  %v76 = vunpack.c.l.b16 %v37
  %v77 = vunpack.c.h.b16 %v37
  %v78 = vunpack.c.l.b16 %v38
  %v79 = vunpack.c.h.b16 %v38
  %v80 = vunpack.c.l.b16 %v39
  %v81 = vunpack.c.h.b16 %v39
  %v82 = vunpack.c.l.b16 %v40
  %v83 = vunpack.c.h.b16 %v40
  %v84 = vunpack.c.l.b16 %v41
  %v85 = vunpack.c.h.b16 %v41
  %v86 = vunpack.c.l.b16 %v42
  %v87 = vunpack.c.h.b16 %v42
  %v88 = vunpack.c.l.b16 %v43
  %v89 = vunpack.c.h.b16 %v43
  %v90 = vunpack.c.l.b16 %v44
  %v91 = vunpack.c.h.b16 %v44
  %v92 = vunpack.c.l.b16 %v45
  %v93 = vunpack.c.h.b16 %v45
  %v94 = vpack.c.b16 %v64, %v62
  %v95 = vpack.c.b16 %v65, %v63
  %v96 = vpack.c.b16 %v68, %v66
  %v97 = vpack.c.b16 %v69, %v67
  %v98 = vpack.c.b16 %v72, %v70
  %v99 = vpack.c.b16 %v73, %v71
  %v100 = vpack.c.b16 %v76, %v74
  %v101 = vpack.c.b16 %v77, %v75
  %v102 = vpack.c.b16 %v80, %v78
  %v103 = vpack.c.b16 %v81, %v79
  %v104 = vpack.c.b16 %v84, %v82
  %v105 = vpack.c.b16 %v85, %v83
  %v106 = vpack.c.b16 %v88, %v86
  %v107 = vpack.c.b16 %v89, %v87
  %v108 = vpack.c.b16 %v92, %v90
  %v109 = vpack.c.b16 %v93, %v91
  %126 = vmatprep.subr.bf16.mxu0 %v95
  %127 = vmatpush1.bf16.msra.mxu0 %v94
  %128 = vmatprep.subr.bf16.mxu0 %v97
  %129 = vmatpush1.bf16.msra.mxu0 %v96
  %130 = vmatprep.subr.bf16.mxu0 %v99
  %131 = vmatpush1.bf16.msra.mxu0 %v98
  %132 = vmatprep.subr.bf16.mxu0 %v101
  %133 = vmatpush1.bf16.msra.mxu0 %v100
  %134 = vmatprep.subr.bf16.mxu0 %v103
  %135 = vmatpush1.bf16.msra.mxu0 %v102
  %136 = vmatprep.subr.bf16.mxu0 %v105
  %137 = vmatpush1.bf16.msra.mxu0 %v104
  %138 = vmatprep.subr.bf16.mxu0 %v107
  %139 = vmatpush1.bf16.msra.mxu0 %v106
  %140 = vmatprep.subr.bf16.mxu0 %v109
  %141 = vmatpush1.bf16.msra.mxu0 %v108
  %142 = vmatprep.subr.bf16.mxu0 0
  %143 = vmatpush1.bf16.msra.mxu0 0
  %144 = vmatprep.subr.bf16.mxu0 0
  %145 = vmatpush1.bf16.msra.mxu0 0
  %146 = vmatprep.subr.bf16.mxu0 0
  %147 = vmatpush1.bf16.msra.mxu0 0
  %148 = vmatprep.subr.bf16.mxu0 0
  %149 = vmatpush1.bf16.msra.mxu0 0
  %150 = vmatprep.subr.bf16.mxu0 0
  %151 = vmatpush1.bf16.msra.mxu0 0
  %152 = vmatprep.subr.bf16.mxu0 0
  %153 = vmatpush1.bf16.msra.mxu0 0
  %154 = vmatprep.subr.bf16.mxu0 0
  %155 = vmatpush1.bf16.msra.mxu0 0
  %156 = vmatprep.subr.bf16.mxu0 0
  %157 = vmatpush1.bf16.msra.mxu0 0
  %158 = vmatprep.mubr.bf16.mxu0 0
  %159 = vmatmul.mubr.bf16.gmra.mrb[0].mxu0 %v29
  %v160 = vpop.f32.mrb[0].mxu0
  %v161 = vadd.f32 0.0, %v160
  %v162 = vpop.f32.mrb[0].mxu0
  %v163 = vadd.f32 0.0, %v162
  %v164 = vpop.f32.mrb[0].mxu0
  %v165 = vpop.f32.mrb[0].mxu0
  %166 = vdwg.mxu0
  %v167 = vadd.f32 %v27, %v161
  %v168 = vadd.f32 %v28, %v163
  %169 = vst [vmem:[#allocation2] sm:$0xff] %v167
  %170 = vst [vmem:[#allocation2 + $0x8] sm:$0xff] %v168
  // Predicated region
  $region22: #{vae_forward.18} parent=0 // pred_check
    %p171 = pneg %p21
  $region23: #{vae_forward.18} parent=0 // pred_check_branch
    %173 = sbr.rel (%p171) target = $region25
  $region24: #{vae_forward.18} parent=0 // pred_region
    %v174 = vld [vmem:[#allocation2] sm:$0xff]
    %v175 = vld [vmem:[#allocation2 + $0x8] sm:$0xff]
    %v176 = vld [vmem:[%s2] sm:$0x3]
    %v178 = vlaneseq
    %v179 = vshrl.u32 %v178, 7
    %v180 = vsub.s32 0, %v179
    %v181 = vrot.slane %v176, %v180
    %v182 = vlaneseq
    %v183 = vshrl.u32 %v182, 7
    %v184 = vsub.s32 1, %v183
    %v185 = vrot.slane %v176, %v184
    %v188 = vadd.f32 %v174, %v181
    %v189 = vadd.f32 %v175, %v185
    %190 = vst [vmem:[%s4] sm:$0xff] %v188
    %191 = vst [vmem:[%s5] sm:$0xff] %v189
    %v192 = vld [vmem:[%s3] sm:$0xff]
    %v193 = vmul.f32 %v189, 0.5
    %v194 = vmul.f32 %v193, 1.442695
    %v195 = vpow.pop %v194
    %v196 = vmul.f32 %v192, %v195
    %v197 = vadd.f32 %v188, %v196
    %198 = vst [vmem:[%s6] sm:$0xff] %v197
  $region25: #{vae_forward.18} parent=0 // pred_fallthru
    _
  // Predicated region
  $region26: #{vae_forward.18} parent=0 // pred_check
    _
  $region27: #{vae_forward.18} parent=0 // pred_check_branch
    %200 = sbr.rel (0) target = $region29
  $region28: #{vae_forward.18} parent=0 // pred_region
    _
  $region29: #{vae_forward.18} parent=0 // pred_fallthru
    _
  // Predicated region
  $region30: #{vae_forward.18} parent=0 // pred_check
    _
  $region31: #{vae_forward.18} parent=0 // pred_check_branch
    %202 = sbr.rel (0) target = $region33
  $region32: #{vae_forward.18} parent=0 // pred_region
    _
  $region33: #{vae_forward.18} parent=0 // pred_fallthru
    _
  // Predicated region
  $region34: #{vae_forward.18} parent=0 // pred_check
    _
  $region35: #{vae_forward.18} parent=0 // pred_check_branch
    %204 = sbr.rel (0) target = $region37
  $region36: #{vae_forward.18} parent=0 // pred_region
    _
  $region37: #{vae_forward.18} parent=0 // pred_fallthru
    _
  // Predicated region
  $region38: #{vae_forward.18} parent=0 // pred_check
    _
  $region39: #{vae_forward.18} parent=0 // pred_check_branch
    %206 = sbr.rel (0) target = $region41
  $region40: #{vae_forward.18} parent=0 // pred_region
    _
  $region41: #{vae_forward.18} parent=0 // pred_fallthru
    _
  // Predicated region
  $region42: #{vae_forward.18} parent=0 // pred_check
    _
  $region43: #{vae_forward.18} parent=0 // pred_check_branch
    %208 = sbr.rel (0) target = $region45
  $region44: #{vae_forward.18} parent=0 // pred_region
    _
  $region45: #{vae_forward.18} parent=0 // pred_fallthru
    _
  // Predicated region
  $region46: #{vae_forward.18} parent=0 // pred_check
    _
  $region47: #{vae_forward.18} parent=0 // pred_check_branch
    %210 = sbr.rel (0) target = $region49
  $region48: #{vae_forward.18} parent=0 // pred_region
    _
  $region49: #{vae_forward.18} parent=0 // pred_fallthru
    _

// kernel: vae_forward.21
$region0: #{vae_forward.21}
  #allocation0 [shape = 'u32[]', space=smem, size = 0x4, offset = 0x4, fixed_abs, tag = 'smem constant byte address 0x4 - core index']
  #allocation1 [shape = 'u32[144,128]{1,0:T(1,128)}', space=vmem, size = 0x12000, scoped, tag = 'internal scratch']
  %s0 = inlined_call_operand.vmem [shape: f32[32,128], index: 0, kind: input, shape index: {}]
  %s1 = inlined_call_operand.vmem [shape: f32[1,128], index: 1, kind: input, shape index: {}]
  %s2 = inlined_call_operand.vmem [shape: f32[32,128], index: 2, kind: output, shape index: {}]
  %s3 = sld [smem:[#allocation0]]
  $region18: #{vae_forward.21} parent=0
    _
  %s5 = ssub.s32 1, %s3
  %s6 = scalar_select 0, %s5, %s3
  // Predicated region
  $region2: #{vae_forward.21} parent=0 // pred_check
    _
  $region3: #{vae_forward.21} parent=0 // pred_check_branch
    %8 = sbr.rel (0) target = $region5
  $region4: #{vae_forward.21} parent=0 // pred_region
    _
  $region5: #{vae_forward.21} parent=0 // pred_fallthru
    _
  // Predicated region
  $region6: #{vae_forward.21} parent=0 // pred_check
    _
  $region7: #{vae_forward.21} parent=0 // pred_check_branch
    %10 = sbr.rel (0) target = $region9
  $region8: #{vae_forward.21} parent=0 // pred_region
    _
  $region9: #{vae_forward.21} parent=0 // pred_fallthru
    _
  %v11 = vld [vmem:[%s0] sm:$0xff]
  %v12 = vld [vmem:[%s0 + $0x8] sm:$0xff]
  %v13 = vld [vmem:[%s0 + $0x10] sm:$0xff]
  %v14 = vld [vmem:[%s0 + $0x18] sm:$0xff]
  %v15 = vld [vmem:[%s1] sm:$0x1]
  %v17 = vlaneseq
  %v18 = vshrl.u32 %v17, 7
  %v19 = vsub.s32 0, %v18
  %v20 = vrot.slane %v15, %v19
  %v22 = vadd.f32 %v11, %v20
  %v23 = vadd.f32 %v12, %v20
  %v24 = vadd.f32 %v13, %v20
  %v25 = vadd.f32 %v14, %v20
  %v26 = vmax.f32 %v22, 0.0
  %v27 = vmax.f32 %v23, 0.0
  %v28 = vmax.f32 %v24, 0.0
  %v29 = vmax.f32 %v25, 0.0
  %30 = vst [vmem:[%s2] sm:$0xff] %v26
  %31 = vst [vmem:[%s2 + $0x8] sm:$0xff] %v27
  %32 = vst [vmem:[%s2 + $0x10] sm:$0xff] %v28
  %33 = vst [vmem:[%s2 + $0x18] sm:$0xff] %v29
  // Predicated region
  $region10: #{vae_forward.21} parent=0 // pred_check
    _
  $region11: #{vae_forward.21} parent=0 // pred_check_branch
    %35 = sbr.rel (0) target = $region13
  $region12: #{vae_forward.21} parent=0 // pred_region
    _
  $region13: #{vae_forward.21} parent=0 // pred_fallthru
    _
  // Predicated region
  $region14: #{vae_forward.21} parent=0 // pred_check
    _
  $region15: #{vae_forward.21} parent=0 // pred_check_branch
    %37 = sbr.rel (0) target = $region17
  $region16: #{vae_forward.21} parent=0 // pred_region
    _
  $region17: #{vae_forward.21} parent=0 // pred_fallthru
    _

// kernel: vae_forward.22
$region0: #{vae_forward.22}
  #allocation0 [shape = 'u32[]', space=smem, size = 0x4, offset = 0x4, fixed_abs, tag = 'smem constant byte address 0x4 - core index']
  #allocation1 [shape = 'u32[144,128]{1,0:T(1,128)}', space=vmem, size = 0x12000, scoped, tag = 'internal scratch']
  #allocation2 [shape = 'f32[32,256]{1,0:T(8,128)}', space=vmem, size = 0x8000, scoped, tag = 'scratch operand']
  %s0 = inlined_call_operand.vmem [shape: bf16[32,128], index: 0, kind: input, shape index: {}]
  %s1 = inlined_call_operand.vmem [shape: bf16[128,256], index: 1, kind: input, shape index: {}]
  %s2 = inlined_call_operand.vmem [shape: f32[1,256], index: 2, kind: input, shape index: {}]
  %s3 = inlined_call_operand.vmem [shape: f32[32,256], index: 3, kind: output, shape index: {}]
  %s4 = sld [smem:[#allocation0]]
  $region30: #{vae_forward.22} parent=0
    _
  %s6 = ssub.s32 1, %s4
  %s7 = scalar_select 0, %s6, %s4
  // Predicated region
  $region2: #{vae_forward.22} parent=0 // pred_check
    _
  $region3: #{vae_forward.22} parent=0 // pred_check_branch
    %9 = sbr.rel (0) target = $region5
  $region4: #{vae_forward.22} parent=0 // pred_region
    _
  $region5: #{vae_forward.22} parent=0 // pred_fallthru
    _
  // Predicated region
  $region6: #{vae_forward.22} parent=0 // pred_check
    _
  $region7: #{vae_forward.22} parent=0 // pred_check_branch
    %11 = sbr.rel (0) target = $region9
  $region8: #{vae_forward.22} parent=0 // pred_region
    _
  $region9: #{vae_forward.22} parent=0 // pred_fallthru
    _
  // Predicated region
  $region10: #{vae_forward.22} parent=0 // pred_check
    _
  $region11: #{vae_forward.22} parent=0 // pred_check_branch
    %13 = sbr.rel (0) target = $region13
  $region12: #{vae_forward.22} parent=0 // pred_region
    _
  $region13: #{vae_forward.22} parent=0 // pred_fallthru
    _
  %p15 = scmp.eq.s32.totalorder 0, 0
  // Predicated region
  $region14: #{vae_forward.22} parent=0 // pred_check
    %p16 = pneg %p15
  $region15: #{vae_forward.22} parent=0 // pred_check_branch
    %18 = sbr.rel (%p16) target = $region17
  $region16: #{vae_forward.22} parent=0 // pred_region
    %19 = vst [vmem:[#allocation2] sm:$0xff] 0.0
    %20 = vst [vmem:[#allocation2 + $0x8] sm:$0xff] 0.0
    %21 = vst [vmem:[#allocation2 + $0x10] sm:$0xff] 0.0
    %22 = vst [vmem:[#allocation2 + $0x18] sm:$0xff] 0.0
    %23 = vst [vmem:[#allocation2 + $0x20] sm:$0xff] 0.0
    %24 = vst [vmem:[#allocation2 + $0x28] sm:$0xff] 0.0
    %25 = vst [vmem:[#allocation2 + $0x30] sm:$0xff] 0.0
    %26 = vst [vmem:[#allocation2 + $0x38] sm:$0xff] 0.0
  $region17: #{vae_forward.22} parent=0 // pred_fallthru
    _
  %v27 = vld [vmem:[#allocation2] sm:$0xff]
  %v28 = vld [vmem:[#allocation2 + $0x8] sm:$0xff]
  %v29 = vld [vmem:[#allocation2 + $0x10] sm:$0xff]
  %v30 = vld [vmem:[#allocation2 + $0x18] sm:$0xff]
  %v31 = vld [vmem:[#allocation2 + $0x20] sm:$0xff]
  %v32 = vld [vmem:[#allocation2 + $0x28] sm:$0xff]
  %v33 = vld [vmem:[#allocation2 + $0x30] sm:$0xff]
  %v34 = vld [vmem:[#allocation2 + $0x38] sm:$0xff]
  %v35 = vld [vmem:[%s0] sm:$0xf]
  %v36 = vld [vmem:[%s0 + $0x4] sm:$0xf]
  %v37 = vld [vmem:[%s0 + $0x8] sm:$0xf]
  %v38 = vld [vmem:[%s0 + $0xc] sm:$0xf]
  %v39 = vld [vmem:[%s1] sm:$0xff]
  %v40 = vld [vmem:[%s1 + $0x8] sm:$0xff]
  %v41 = vld [vmem:[%s1 + $0x10] sm:$0xff]
  %v42 = vld [vmem:[%s1 + $0x18] sm:$0xff]
  %v43 = vld [vmem:[%s1 + $0x20] sm:$0xff]
  %v44 = vld [vmem:[%s1 + $0x28] sm:$0xff]
  %v45 = vld [vmem:[%s1 + $0x30] sm:$0xff]
  %v46 = vld [vmem:[%s1 + $0x38] sm:$0xff]
  %v47 = vld [vmem:[%s1 + $0x40] sm:$0xff]
  %v48 = vld [vmem:[%s1 + $0x48] sm:$0xff]
  %v49 = vld [vmem:[%s1 + $0x50] sm:$0xff]
  %v50 = vld [vmem:[%s1 + $0x58] sm:$0xff]
  %v51 = vld [vmem:[%s1 + $0x60] sm:$0xff]
  %v52 = vld [vmem:[%s1 + $0x68] sm:$0xff]
  %v53 = vld [vmem:[%s1 + $0x70] sm:$0xff]
  %v54 = vld [vmem:[%s1 + $0x78] sm:$0xff]
  %v59 = vunpack.c.l.b16 %v35
  %v60 = vunpack.c.l.b16 %v36
  %v61 = vunpack.c.l.b16 %v37
  %v62 = vunpack.c.l.b16 %v38
  %v63 = vpack.c.b16 %v60, %v59
  %v64 = vpack.c.b16 %v62, %v61
  %v83 = vunpack.c.l.b16 %v39
  %v84 = vunpack.c.h.b16 %v39
  %v85 = vunpack.c.l.b16 %v40
  %v86 = vunpack.c.h.b16 %v40
  %v87 = vunpack.c.l.b16 %v41
  %v88 = vunpack.c.h.b16 %v41
  %v89 = vunpack.c.l.b16 %v42
  %v90 = vunpack.c.h.b16 %v42
  %v91 = vunpack.c.l.b16 %v43
  %v92 = vunpack.c.h.b16 %v43
  %v93 = vunpack.c.l.b16 %v44
  %v94 = vunpack.c.h.b16 %v44
  %v95 = vunpack.c.l.b16 %v45
  %v96 = vunpack.c.h.b16 %v45
  %v97 = vunpack.c.l.b16 %v46
  %v98 = vunpack.c.h.b16 %v46
  %v99 = vunpack.c.l.b16 %v47
  %v100 = vunpack.c.h.b16 %v47
  %v101 = vunpack.c.l.b16 %v48
  %v102 = vunpack.c.h.b16 %v48
  %v103 = vunpack.c.l.b16 %v49
  %v104 = vunpack.c.h.b16 %v49
  %v105 = vunpack.c.l.b16 %v50
  %v106 = vunpack.c.h.b16 %v50
  %v107 = vunpack.c.l.b16 %v51
  %v108 = vunpack.c.h.b16 %v51
  %v109 = vunpack.c.l.b16 %v52
  %v110 = vunpack.c.h.b16 %v52
  %v111 = vunpack.c.l.b16 %v53
  %v112 = vunpack.c.h.b16 %v53
  %v113 = vunpack.c.l.b16 %v54
  %v114 = vunpack.c.h.b16 %v54
  %v115 = vpack.c.b16 %v85, %v83
  %v116 = vpack.c.b16 %v86, %v84
  %v117 = vpack.c.b16 %v89, %v87
  %v118 = vpack.c.b16 %v90, %v88
  %v119 = vpack.c.b16 %v93, %v91
  %v120 = vpack.c.b16 %v94, %v92
  %v121 = vpack.c.b16 %v97, %v95
  %v122 = vpack.c.b16 %v98, %v96
  %v123 = vpack.c.b16 %v101, %v99
  %v124 = vpack.c.b16 %v102, %v100
  %v125 = vpack.c.b16 %v105, %v103
  %v126 = vpack.c.b16 %v106, %v104
  %v127 = vpack.c.b16 %v109, %v107
  %v128 = vpack.c.b16 %v110, %v108
  %v129 = vpack.c.b16 %v113, %v111
  %v130 = vpack.c.b16 %v114, %v112
  %147 = vmatprep.subr.bf16.mxu0 %v116
  %148 = vmatpush1.bf16.msra.mxu0 %v115
  %149 = vmatprep.subr.bf16.mxu0 %v118
  %150 = vmatpush1.bf16.msra.mxu0 %v117
  %151 = vmatprep.subr.bf16.mxu0 %v120
  %152 = vmatpush1.bf16.msra.mxu0 %v119
  %153 = vmatprep.subr.bf16.mxu0 %v122
  %154 = vmatpush1.bf16.msra.mxu0 %v121
  %155 = vmatprep.subr.bf16.mxu0 %v124
  %156 = vmatpush1.bf16.msra.mxu0 %v123
  %157 = vmatprep.subr.bf16.mxu0 %v126
  %158 = vmatpush1.bf16.msra.mxu0 %v125
  %159 = vmatprep.subr.bf16.mxu0 %v128
  %160 = vmatpush1.bf16.msra.mxu0 %v127
  %161 = vmatprep.subr.bf16.mxu0 %v130
  %162 = vmatpush1.bf16.msra.mxu0 %v129
  %163 = vmatprep.subr.bf16.mxu0 0
  %164 = vmatpush1.bf16.msra.mxu0 0
  %165 = vmatprep.subr.bf16.mxu0 0
  %166 = vmatpush1.bf16.msra.mxu0 0
  %167 = vmatprep.subr.bf16.mxu0 0
  %168 = vmatpush1.bf16.msra.mxu0 0
  %169 = vmatprep.subr.bf16.mxu0 0
  %170 = vmatpush1.bf16.msra.mxu0 0
  %171 = vmatprep.subr.bf16.mxu0 0
  %172 = vmatpush1.bf16.msra.mxu0 0
  %173 = vmatprep.subr.bf16.mxu0 0
  %174 = vmatpush1.bf16.msra.mxu0 0
  %175 = vmatprep.subr.bf16.mxu0 0
  %176 = vmatpush1.bf16.msra.mxu0 0
  %177 = vmatprep.subr.bf16.mxu0 0
  %178 = vmatpush1.bf16.msra.mxu0 0
  %179 = vmatprep.mubr.bf16.mxu0 0
  %180 = vmatmul.mubr.bf16.gmra.mrb[0].mxu0 %v63
  %v181 = vpop.f32.mrb[0].mxu0
  %v182 = vadd.f32 0.0, %v181
  %v183 = vpop.f32.mrb[0].mxu0
  %v184 = vadd.f32 0.0, %v183
  %v185 = vpop.f32.mrb[0].mxu0
  %v186 = vadd.f32 0.0, %v185
  %v187 = vpop.f32.mrb[0].mxu0
  %v188 = vadd.f32 0.0, %v187
  %189 = vmatprep.mubr.bf16.mxu0 0
  %190 = vmatmul.mubr.bf16.gmra.mrb[0].mxu0 %v64
  %v191 = vpop.f32.mrb[0].mxu0
  %v192 = vadd.f32 0.0, %v191
  %v193 = vpop.f32.mrb[0].mxu0
  %v194 = vadd.f32 0.0, %v193
  %v195 = vpop.f32.mrb[0].mxu0
  %v196 = vadd.f32 0.0, %v195
  %v197 = vpop.f32.mrb[0].mxu0
  %v198 = vadd.f32 0.0, %v197
  %199 = vdwg.mxu0
  %v200 = vadd.f32 %v27, %v182
  %v201 = vadd.f32 %v28, %v184
  %v202 = vadd.f32 %v29, %v186
  %v203 = vadd.f32 %v30, %v188
  %v204 = vadd.f32 %v31, %v192
  %v205 = vadd.f32 %v32, %v194
  %v206 = vadd.f32 %v33, %v196
  %v207 = vadd.f32 %v34, %v198
  %208 = vst [vmem:[#allocation2] sm:$0xff] %v200
  %209 = vst [vmem:[#allocation2 + $0x8] sm:$0xff] %v201
  %210 = vst [vmem:[#allocation2 + $0x10] sm:$0xff] %v202
  %211 = vst [vmem:[#allocation2 + $0x18] sm:$0xff] %v203
  %212 = vst [vmem:[#allocation2 + $0x20] sm:$0xff] %v204
  %213 = vst [vmem:[#allocation2 + $0x28] sm:$0xff] %v205
  %214 = vst [vmem:[#allocation2 + $0x30] sm:$0xff] %v206
  %215 = vst [vmem:[#allocation2 + $0x38] sm:$0xff] %v207
  // Predicated region
  $region18: #{vae_forward.22} parent=0 // pred_check
    %p216 = pneg %p15
  $region19: #{vae_forward.22} parent=0 // pred_check_branch
    %218 = sbr.rel (%p216) target = $region21
  $region20: #{vae_forward.22} parent=0 // pred_region
    %v219 = vld [vmem:[#allocation2] sm:$0xff]
    %v220 = vld [vmem:[#allocation2 + $0x8] sm:$0xff]
    %v221 = vld [vmem:[#allocation2 + $0x10] sm:$0xff]
    %v222 = vld [vmem:[#allocation2 + $0x18] sm:$0xff]
    %v223 = vld [vmem:[#allocation2 + $0x20] sm:$0xff]
    %v224 = vld [vmem:[#allocation2 + $0x28] sm:$0xff]
    %v225 = vld [vmem:[#allocation2 + $0x30] sm:$0xff]
    %v226 = vld [vmem:[#allocation2 + $0x38] sm:$0xff]
    %v227 = vld [vmem:[%s2] sm:$0x3]
    %v229 = vlaneseq
    %v230 = vshrl.u32 %v229, 7
    %v231 = vsub.s32 0, %v230
    %v232 = vrot.slane %v227, %v231
    %v233 = vlaneseq
    %v234 = vshrl.u32 %v233, 7
    %v235 = vsub.s32 1, %v234
    %v236 = vrot.slane %v227, %v235
    %v239 = vadd.f32 %v219, %v232
    %v240 = vadd.f32 %v220, %v236
    %v241 = vadd.f32 %v221, %v232
    %v242 = vadd.f32 %v222, %v236
    %v243 = vadd.f32 %v223, %v232
    %v244 = vadd.f32 %v224, %v236
    %v245 = vadd.f32 %v225, %v232
    %v246 = vadd.f32 %v226, %v236
    %247 = vst [vmem:[%s3] sm:$0xff] %v239
    %248 = vst [vmem:[%s3 + $0x8] sm:$0xff] %v240
    %249 = vst [vmem:[%s3 + $0x10] sm:$0xff] %v241
    %250 = vst [vmem:[%s3 + $0x18] sm:$0xff] %v242
    %251 = vst [vmem:[%s3 + $0x20] sm:$0xff] %v243
    %252 = vst [vmem:[%s3 + $0x28] sm:$0xff] %v244
    %253 = vst [vmem:[%s3 + $0x30] sm:$0xff] %v245
    %254 = vst [vmem:[%s3 + $0x38] sm:$0xff] %v246
  $region21: #{vae_forward.22} parent=0 // pred_fallthru
    _
  // Predicated region
  $region22: #{vae_forward.22} parent=0 // pred_check
    _
  $region23: #{vae_forward.22} parent=0 // pred_check_branch
    %256 = sbr.rel (0) target = $region25
  $region24: #{vae_forward.22} parent=0 // pred_region
    _
  $region25: #{vae_forward.22} parent=0 // pred_fallthru
    _
  // Predicated region
  $region26: #{vae_forward.22} parent=0 // pred_check
    _
  $region27: #{vae_forward.22} parent=0 // pred_check_branch
    %258 = sbr.rel (0) target = $region29
  $region28: #{vae_forward.22} parent=0 // pred_region
    _
  $region29: #{vae_forward.22} parent=0 // pred_fallthru
    _

// kernel: vae_forward.23
$region0: #{vae_forward.23}
  #allocation0 [shape = 'u32[]', space=smem, size = 0x4, offset = 0x4, fixed_abs, tag = 'smem constant byte address 0x4 - core index']
  #allocation1 [shape = 'u32[144,128]{1,0:T(1,128)}', space=vmem, size = 0x12000, scoped, tag = 'internal scratch']
  %s0 = inlined_call_operand.vmem [shape: f32[128,128], index: 0, kind: input, shape index: {}]
  %s1 = inlined_call_operand.vmem [shape: f32[1,128], index: 1, kind: input, shape index: {}]
  %s2 = inlined_call_operand.vmem [shape: f32[128,128], index: 2, kind: output, shape index: {}]
  %s3 = sld [smem:[#allocation0]]
  $region18: #{vae_forward.23} parent=0
    _
  %s5 = ssub.s32 1, %s3
  %s6 = scalar_select 0, %s5, %s3
  // Predicated region
  $region2: #{vae_forward.23} parent=0 // pred_check
    _
  $region3: #{vae_forward.23} parent=0 // pred_check_branch
    %8 = sbr.rel (0) target = $region5
  $region4: #{vae_forward.23} parent=0 // pred_region
    _
  $region5: #{vae_forward.23} parent=0 // pred_fallthru
    _
  // Predicated region
  $region6: #{vae_forward.23} parent=0 // pred_check
    _
  $region7: #{vae_forward.23} parent=0 // pred_check_branch
    %10 = sbr.rel (0) target = $region9
  $region8: #{vae_forward.23} parent=0 // pred_region
    _
  $region9: #{vae_forward.23} parent=0 // pred_fallthru
    _
  %v11 = vld [vmem:[%s0] sm:$0xff]
  %v12 = vld [vmem:[%s0 + $0x8] sm:$0xff]
  %v13 = vld [vmem:[%s0 + $0x10] sm:$0xff]
  %v14 = vld [vmem:[%s0 + $0x18] sm:$0xff]
  %v15 = vld [vmem:[%s0 + $0x20] sm:$0xff]
  %v16 = vld [vmem:[%s0 + $0x28] sm:$0xff]
  %v17 = vld [vmem:[%s0 + $0x30] sm:$0xff]
  %v18 = vld [vmem:[%s0 + $0x38] sm:$0xff]
  %v19 = vld [vmem:[%s0 + $0x40] sm:$0xff]
  %v20 = vld [vmem:[%s0 + $0x48] sm:$0xff]
  %v21 = vld [vmem:[%s0 + $0x50] sm:$0xff]
  %v22 = vld [vmem:[%s0 + $0x58] sm:$0xff]
  %v23 = vld [vmem:[%s0 + $0x60] sm:$0xff]
  %v24 = vld [vmem:[%s0 + $0x68] sm:$0xff]
  %v25 = vld [vmem:[%s0 + $0x70] sm:$0xff]
  %v26 = vld [vmem:[%s0 + $0x78] sm:$0xff]
  %v27 = vld [vmem:[%s1] sm:$0x1]
  %v29 = vlaneseq
  %v30 = vshrl.u32 %v29, 7
  %v31 = vsub.s32 0, %v30
  %v32 = vrot.slane %v27, %v31
  %v34 = vadd.f32 %v11, %v32
  %v35 = vadd.f32 %v12, %v32
  %v36 = vadd.f32 %v13, %v32
  %v37 = vadd.f32 %v14, %v32
  %v38 = vadd.f32 %v15, %v32
  %v39 = vadd.f32 %v16, %v32
  %v40 = vadd.f32 %v17, %v32
  %v41 = vadd.f32 %v18, %v32
  %v42 = vadd.f32 %v19, %v32
  %v43 = vadd.f32 %v20, %v32
  %v44 = vadd.f32 %v21, %v32
  %v45 = vadd.f32 %v22, %v32
  %v46 = vadd.f32 %v23, %v32
  %v47 = vadd.f32 %v24, %v32
  %v48 = vadd.f32 %v25, %v32
  %v49 = vadd.f32 %v26, %v32
  %v50 = vmax.f32 %v34, 0.0
  %v51 = vmax.f32 %v35, 0.0
  %v52 = vmax.f32 %v36, 0.0
  %v53 = vmax.f32 %v37, 0.0
  %v54 = vmax.f32 %v38, 0.0
  %v55 = vmax.f32 %v39, 0.0
  %v56 = vmax.f32 %v40, 0.0
  %v57 = vmax.f32 %v41, 0.0
  %v58 = vmax.f32 %v42, 0.0
  %v59 = vmax.f32 %v43, 0.0
  %v60 = vmax.f32 %v44, 0.0
  %v61 = vmax.f32 %v45, 0.0
  %v62 = vmax.f32 %v46, 0.0
  %v63 = vmax.f32 %v47, 0.0
  %v64 = vmax.f32 %v48, 0.0
  %v65 = vmax.f32 %v49, 0.0
  %66 = vst [vmem:[%s2] sm:$0xff] %v50
  %67 = vst [vmem:[%s2 + $0x8] sm:$0xff] %v51
  %68 = vst [vmem:[%s2 + $0x10] sm:$0xff] %v52
  %69 = vst [vmem:[%s2 + $0x18] sm:$0xff] %v53
  %70 = vst [vmem:[%s2 + $0x20] sm:$0xff] %v54
  %71 = vst [vmem:[%s2 + $0x28] sm:$0xff] %v55
  %72 = vst [vmem:[%s2 + $0x30] sm:$0xff] %v56
  %73 = vst [vmem:[%s2 + $0x38] sm:$0xff] %v57
  %74 = vst [vmem:[%s2 + $0x40] sm:$0xff] %v58
  %75 = vst [vmem:[%s2 + $0x48] sm:$0xff] %v59
  %76 = vst [vmem:[%s2 + $0x50] sm:$0xff] %v60
  %77 = vst [vmem:[%s2 + $0x58] sm:$0xff] %v61
  %78 = vst [vmem:[%s2 + $0x60] sm:$0xff] %v62
  %79 = vst [vmem:[%s2 + $0x68] sm:$0xff] %v63
  %80 = vst [vmem:[%s2 + $0x70] sm:$0xff] %v64
  %81 = vst [vmem:[%s2 + $0x78] sm:$0xff] %v65
  // Predicated region
  $region10: #{vae_forward.23} parent=0 // pred_check
    _
  $region11: #{vae_forward.23} parent=0 // pred_check_branch
    %83 = sbr.rel (0) target = $region13
  $region12: #{vae_forward.23} parent=0 // pred_region
    _
  $region13: #{vae_forward.23} parent=0 // pred_fallthru
    _
  // Predicated region
  $region14: #{vae_forward.23} parent=0 // pred_check
    _
  $region15: #{vae_forward.23} parent=0 // pred_check_branch
    %85 = sbr.rel (0) target = $region17
  $region16: #{vae_forward.23} parent=0 // pred_region
    _
  $region17: #{vae_forward.23} parent=0 // pred_fallthru
    _

// kernel: vae_forward.24
$region0: #{vae_forward.24}
  #allocation0 [shape = 'u32[]', space=smem, size = 0x4, offset = 0x4, fixed_abs, tag = 'smem constant byte address 0x4 - core index']
  #allocation1 [shape = 'u32[144,128]{1,0:T(1,128)}', space=vmem, size = 0x12000, scoped, tag = 'internal scratch']
  #allocation2 [shape = 'f32[128,128]{1,0:T(8,128)}', space=vmem, size = 0x10000, scoped, tag = 'scratch operand']
  %s0 = inlined_call_operand.vmem [shape: bf16[128,128], index: 0, kind: input, shape index: {}]
  %s1 = inlined_call_operand.vmem [shape: bf16[128,128], index: 1, kind: input, shape index: {}]
  %s2 = inlined_call_operand.vmem [shape: f32[1,128], index: 2, kind: input, shape index: {}]
  %s3 = inlined_call_operand.vmem [shape: f32[128,128], index: 3, kind: output, shape index: {}]
  %s4 = sld [smem:[#allocation0]]
  $region30: #{vae_forward.24} parent=0
    _
  %s6 = ssub.s32 1, %s4
  %s7 = scalar_select 0, %s6, %s4
  // Predicated region
  $region2: #{vae_forward.24} parent=0 // pred_check
    _
  $region3: #{vae_forward.24} parent=0 // pred_check_branch
    %9 = sbr.rel (0) target = $region5
  $region4: #{vae_forward.24} parent=0 // pred_region
    _
  $region5: #{vae_forward.24} parent=0 // pred_fallthru
    _
  // Predicated region
  $region6: #{vae_forward.24} parent=0 // pred_check
    _
  $region7: #{vae_forward.24} parent=0 // pred_check_branch
    %11 = sbr.rel (0) target = $region9
  $region8: #{vae_forward.24} parent=0 // pred_region
    _
  $region9: #{vae_forward.24} parent=0 // pred_fallthru
    _
  // Predicated region
  $region10: #{vae_forward.24} parent=0 // pred_check
    _
  $region11: #{vae_forward.24} parent=0 // pred_check_branch
    %13 = sbr.rel (0) target = $region13
  $region12: #{vae_forward.24} parent=0 // pred_region
    _
  $region13: #{vae_forward.24} parent=0 // pred_fallthru
    _
  %p15 = scmp.eq.s32.totalorder 0, 0
  // Predicated region
  $region14: #{vae_forward.24} parent=0 // pred_check
    %p16 = pneg %p15
  $region15: #{vae_forward.24} parent=0 // pred_check_branch
    %18 = sbr.rel (%p16) target = $region17
  $region16: #{vae_forward.24} parent=0 // pred_region
    %19 = vst [vmem:[#allocation2] sm:$0xff] 0.0
    %20 = vst [vmem:[#allocation2 + $0x8] sm:$0xff] 0.0
    %21 = vst [vmem:[#allocation2 + $0x10] sm:$0xff] 0.0
    %22 = vst [vmem:[#allocation2 + $0x18] sm:$0xff] 0.0
    %23 = vst [vmem:[#allocation2 + $0x20] sm:$0xff] 0.0
    %24 = vst [vmem:[#allocation2 + $0x28] sm:$0xff] 0.0
    %25 = vst [vmem:[#allocation2 + $0x30] sm:$0xff] 0.0
    %26 = vst [vmem:[#allocation2 + $0x38] sm:$0xff] 0.0
    %27 = vst [vmem:[#allocation2 + $0x40] sm:$0xff] 0.0
    %28 = vst [vmem:[#allocation2 + $0x48] sm:$0xff] 0.0
    %29 = vst [vmem:[#allocation2 + $0x50] sm:$0xff] 0.0
    %30 = vst [vmem:[#allocation2 + $0x58] sm:$0xff] 0.0
    %31 = vst [vmem:[#allocation2 + $0x60] sm:$0xff] 0.0
    %32 = vst [vmem:[#allocation2 + $0x68] sm:$0xff] 0.0
    %33 = vst [vmem:[#allocation2 + $0x70] sm:$0xff] 0.0
    %34 = vst [vmem:[#allocation2 + $0x78] sm:$0xff] 0.0
  $region17: #{vae_forward.24} parent=0 // pred_fallthru
    _
  %v35 = vld [vmem:[#allocation2] sm:$0xff]
  %v36 = vld [vmem:[#allocation2 + $0x8] sm:$0xff]
  %v37 = vld [vmem:[#allocation2 + $0x10] sm:$0xff]
  %v38 = vld [vmem:[#allocation2 + $0x18] sm:$0xff]
  %v39 = vld [vmem:[#allocation2 + $0x20] sm:$0xff]
  %v40 = vld [vmem:[#allocation2 + $0x28] sm:$0xff]
  %v41 = vld [vmem:[#allocation2 + $0x30] sm:$0xff]
  %v42 = vld [vmem:[#allocation2 + $0x38] sm:$0xff]
  %v43 = vld [vmem:[#allocation2 + $0x40] sm:$0xff]
  %v44 = vld [vmem:[#allocation2 + $0x48] sm:$0xff]
  %v45 = vld [vmem:[#allocation2 + $0x50] sm:$0xff]
  %v46 = vld [vmem:[#allocation2 + $0x58] sm:$0xff]
  %v47 = vld [vmem:[#allocation2 + $0x60] sm:$0xff]
  %v48 = vld [vmem:[#allocation2 + $0x68] sm:$0xff]
  %v49 = vld [vmem:[#allocation2 + $0x70] sm:$0xff]
  %v50 = vld [vmem:[#allocation2 + $0x78] sm:$0xff]
  %v51 = vld [vmem:[%s0] sm:$0xf]
  %v52 = vld [vmem:[%s0 + $0x4] sm:$0xf]
  %v53 = vld [vmem:[%s0 + $0x8] sm:$0xf]
  %v54 = vld [vmem:[%s0 + $0xc] sm:$0xf]
  %v55 = vld [vmem:[%s0 + $0x10] sm:$0xf]
  %v56 = vld [vmem:[%s0 + $0x14] sm:$0xf]
  %v57 = vld [vmem:[%s0 + $0x18] sm:$0xf]
  %v58 = vld [vmem:[%s0 + $0x1c] sm:$0xf]
  %v59 = vld [vmem:[%s0 + $0x20] sm:$0xf]
  %v60 = vld [vmem:[%s0 + $0x24] sm:$0xf]
  %v61 = vld [vmem:[%s0 + $0x28] sm:$0xf]
  %v62 = vld [vmem:[%s0 + $0x2c] sm:$0xf]
  %v63 = vld [vmem:[%s0 + $0x30] sm:$0xf]
  %v64 = vld [vmem:[%s0 + $0x34] sm:$0xf]
  %v65 = vld [vmem:[%s0 + $0x38] sm:$0xf]
  %v66 = vld [vmem:[%s0 + $0x3c] sm:$0xf]
  %v67 = vld [vmem:[%s1] sm:$0xf]
  %v68 = vld [vmem:[%s1 + $0x4] sm:$0xf]
  %v69 = vld [vmem:[%s1 + $0x8] sm:$0xf]
  %v70 = vld [vmem:[%s1 + $0xc] sm:$0xf]
  %v71 = vld [vmem:[%s1 + $0x10] sm:$0xf]
  %v72 = vld [vmem:[%s1 + $0x14] sm:$0xf]
  %v73 = vld [vmem:[%s1 + $0x18] sm:$0xf]
  %v74 = vld [vmem:[%s1 + $0x1c] sm:$0xf]
  %v75 = vld [vmem:[%s1 + $0x20] sm:$0xf]
  %v76 = vld [vmem:[%s1 + $0x24] sm:$0xf]
  %v77 = vld [vmem:[%s1 + $0x28] sm:$0xf]
  %v78 = vld [vmem:[%s1 + $0x2c] sm:$0xf]
  %v79 = vld [vmem:[%s1 + $0x30] sm:$0xf]
  %v80 = vld [vmem:[%s1 + $0x34] sm:$0xf]
  %v81 = vld [vmem:[%s1 + $0x38] sm:$0xf]
  %v82 = vld [vmem:[%s1 + $0x3c] sm:$0xf]
  %v99 = vunpack.c.l.b16 %v51
  %v100 = vunpack.c.l.b16 %v52
  %v101 = vunpack.c.l.b16 %v53
  %v102 = vunpack.c.l.b16 %v54
  %v103 = vunpack.c.l.b16 %v55
  %v104 = vunpack.c.l.b16 %v56
  %v105 = vunpack.c.l.b16 %v57
  %v106 = vunpack.c.l.b16 %v58
  %v107 = vunpack.c.l.b16 %v59
  %v108 = vunpack.c.l.b16 %v60
  %v109 = vunpack.c.l.b16 %v61
  %v110 = vunpack.c.l.b16 %v62
  %v111 = vunpack.c.l.b16 %v63
  %v112 = vunpack.c.l.b16 %v64
  %v113 = vunpack.c.l.b16 %v65
  %v114 = vunpack.c.l.b16 %v66
  %v115 = vpack.c.b16 %v100, %v99
  %v116 = vpack.c.b16 %v102, %v101
  %v117 = vpack.c.b16 %v104, %v103
  %v118 = vpack.c.b16 %v106, %v105
  %v119 = vpack.c.b16 %v108, %v107
  %v120 = vpack.c.b16 %v110, %v109
  %v121 = vpack.c.b16 %v112, %v111
  %v122 = vpack.c.b16 %v114, %v113
  %v147 = vunpack.c.l.b16 %v67
  %v148 = vunpack.c.l.b16 %v68
  %v149 = vunpack.c.l.b16 %v69
  %v150 = vunpack.c.l.b16 %v70
  %v151 = vunpack.c.l.b16 %v71
  %v152 = vunpack.c.l.b16 %v72
  %v153 = vunpack.c.l.b16 %v73
  %v154 = vunpack.c.l.b16 %v74
  %v155 = vunpack.c.l.b16 %v75
  %v156 = vunpack.c.l.b16 %v76
  %v157 = vunpack.c.l.b16 %v77
  %v158 = vunpack.c.l.b16 %v78
  %v159 = vunpack.c.l.b16 %v79
  %v160 = vunpack.c.l.b16 %v80
  %v161 = vunpack.c.l.b16 %v81
  %v162 = vunpack.c.l.b16 %v82
  %v163 = vpack.c.b16 %v148, %v147
  %v164 = vpack.c.b16 %v150, %v149
  %v165 = vpack.c.b16 %v152, %v151
  %v166 = vpack.c.b16 %v154, %v153
  %v167 = vpack.c.b16 %v156, %v155
  %v168 = vpack.c.b16 %v158, %v157
  %v169 = vpack.c.b16 %v160, %v159
  %v170 = vpack.c.b16 %v162, %v161
  %179 = vmatprep.subr.bf16.mxu0 0
  %180 = vmatpush1.bf16.msra.mxu0 %v163
  %181 = vmatprep.subr.bf16.mxu0 0
  %182 = vmatpush1.bf16.msra.mxu0 %v164
  %183 = vmatprep.subr.bf16.mxu0 0
  %184 = vmatpush1.bf16.msra.mxu0 %v165
  %185 = vmatprep.subr.bf16.mxu0 0
  %186 = vmatpush1.bf16.msra.mxu0 %v166
  %187 = vmatprep.subr.bf16.mxu0 0
  %188 = vmatpush1.bf16.msra.mxu0 %v167
  %189 = vmatprep.subr.bf16.mxu0 0
  %190 = vmatpush1.bf16.msra.mxu0 %v168
  %191 = vmatprep.subr.bf16.mxu0 0
  %192 = vmatpush1.bf16.msra.mxu0 %v169
  %193 = vmatprep.subr.bf16.mxu0 0
  %194 = vmatpush1.bf16.msra.mxu0 %v170
  %195 = vmatprep.subr.bf16.mxu0 0
  %196 = vmatpush1.bf16.msra.mxu0 0
  %197 = vmatprep.subr.bf16.mxu0 0
  %198 = vmatpush1.bf16.msra.mxu0 0
  %199 = vmatprep.subr.bf16.mxu0 0
  %200 = vmatpush1.bf16.msra.mxu0 0
  %201 = vmatprep.subr.bf16.mxu0 0
  %202 = vmatpush1.bf16.msra.mxu0 0
  %203 = vmatprep.subr.bf16.mxu0 0
  %204 = vmatpush1.bf16.msra.mxu0 0
  %205 = vmatprep.subr.bf16.mxu0 0
  %206 = vmatpush1.bf16.msra.mxu0 0
  %207 = vmatprep.subr.bf16.mxu0 0
  %208 = vmatpush1.bf16.msra.mxu0 0
  %209 = vmatprep.subr.bf16.mxu0 0
  %210 = vmatpush1.bf16.msra.mxu0 0
  %211 = vmatprep.mubr.bf16.mxu0 0
  %212 = vmatmul.mubr.bf16.gmra.mrb[0].mxu0 %v115
  %v213 = vpop.f32.mrb[0].mxu0
  %v214 = vadd.f32 0.0, %v213
  %v215 = vpop.f32.mrb[0].mxu0
  %v216 = vpop.f32.mrb[0].mxu0
  %v217 = vadd.f32 0.0, %v216
  %v218 = vpop.f32.mrb[0].mxu0
  %219 = vmatprep.mubr.bf16.mxu0 0
  %220 = vmatmul.mubr.bf16.gmra.mrb[0].mxu0 %v116
  %v221 = vpop.f32.mrb[0].mxu0
  %v222 = vadd.f32 0.0, %v221
  %v223 = vpop.f32.mrb[0].mxu0
  %v224 = vpop.f32.mrb[0].mxu0
  %v225 = vadd.f32 0.0, %v224
  %v226 = vpop.f32.mrb[0].mxu0
  %227 = vmatprep.mubr.bf16.mxu0 0
  %228 = vmatmul.mubr.bf16.gmra.mrb[0].mxu0 %v117
  %v229 = vpop.f32.mrb[0].mxu0
  %v230 = vadd.f32 0.0, %v229
  %v231 = vpop.f32.mrb[0].mxu0
  %v232 = vpop.f32.mrb[0].mxu0
  %v233 = vadd.f32 0.0, %v232
  %v234 = vpop.f32.mrb[0].mxu0
  %235 = vmatprep.mubr.bf16.mxu0 0
  %236 = vmatmul.mubr.bf16.gmra.mrb[0].mxu0 %v118
  %v237 = vpop.f32.mrb[0].mxu0
  %v238 = vadd.f32 0.0, %v237
  %v239 = vpop.f32.mrb[0].mxu0
  %v240 = vpop.f32.mrb[0].mxu0
  %v241 = vadd.f32 0.0, %v240
  %v242 = vpop.f32.mrb[0].mxu0
  %243 = vmatprep.mubr.bf16.mxu0 0
  %244 = vmatmul.mubr.bf16.gmra.mrb[0].mxu0 %v119
  %v245 = vpop.f32.mrb[0].mxu0
  %v246 = vadd.f32 0.0, %v245
  %v247 = vpop.f32.mrb[0].mxu0
  %v248 = vpop.f32.mrb[0].mxu0
  %v249 = vadd.f32 0.0, %v248
  %v250 = vpop.f32.mrb[0].mxu0
  %251 = vmatprep.mubr.bf16.mxu0 0
  %252 = vmatmul.mubr.bf16.gmra.mrb[0].mxu0 %v120
  %v253 = vpop.f32.mrb[0].mxu0
  %v254 = vadd.f32 0.0, %v253
  %v255 = vpop.f32.mrb[0].mxu0
  %v256 = vpop.f32.mrb[0].mxu0
  %v257 = vadd.f32 0.0, %v256
  %v258 = vpop.f32.mrb[0].mxu0
  %259 = vmatprep.mubr.bf16.mxu0 0
  %260 = vmatmul.mubr.bf16.gmra.mrb[0].mxu0 %v121
  %v261 = vpop.f32.mrb[0].mxu0
  %v262 = vadd.f32 0.0, %v261
  %v263 = vpop.f32.mrb[0].mxu0
  %v264 = vpop.f32.mrb[0].mxu0
  %v265 = vadd.f32 0.0, %v264
  %v266 = vpop.f32.mrb[0].mxu0
  %267 = vmatprep.mubr.bf16.mxu0 0
  %268 = vmatmul.mubr.bf16.gmra.mrb[0].mxu0 %v122
  %v269 = vpop.f32.mrb[0].mxu0
  %v270 = vadd.f32 0.0, %v269
  %v271 = vpop.f32.mrb[0].mxu0
  %v272 = vpop.f32.mrb[0].mxu0
  %v273 = vadd.f32 0.0, %v272
  %v274 = vpop.f32.mrb[0].mxu0
  %275 = vdwg.mxu0
  %v276 = vadd.f32 %v35, %v214
  %v277 = vadd.f32 %v36, %v217
  %v278 = vadd.f32 %v37, %v222
  %v279 = vadd.f32 %v38, %v225
  %v280 = vadd.f32 %v39, %v230
  %v281 = vadd.f32 %v40, %v233
  %v282 = vadd.f32 %v41, %v238
  %v283 = vadd.f32 %v42, %v241
  %v284 = vadd.f32 %v43, %v246
  %v285 = vadd.f32 %v44, %v249
  %v286 = vadd.f32 %v45, %v254
  %v287 = vadd.f32 %v46, %v257
  %v288 = vadd.f32 %v47, %v262
  %v289 = vadd.f32 %v48, %v265
  %v290 = vadd.f32 %v49, %v270
  %v291 = vadd.f32 %v50, %v273
  %292 = vst [vmem:[#allocation2] sm:$0xff] %v276
  %293 = vst [vmem:[#allocation2 + $0x8] sm:$0xff] %v277
  %294 = vst [vmem:[#allocation2 + $0x10] sm:$0xff] %v278
  %295 = vst [vmem:[#allocation2 + $0x18] sm:$0xff] %v279
  %296 = vst [vmem:[#allocation2 + $0x20] sm:$0xff] %v280
  %297 = vst [vmem:[#allocation2 + $0x28] sm:$0xff] %v281
  %298 = vst [vmem:[#allocation2 + $0x30] sm:$0xff] %v282
  %299 = vst [vmem:[#allocation2 + $0x38] sm:$0xff] %v283
  %300 = vst [vmem:[#allocation2 + $0x40] sm:$0xff] %v284
  %301 = vst [vmem:[#allocation2 + $0x48] sm:$0xff] %v285
  %302 = vst [vmem:[#allocation2 + $0x50] sm:$0xff] %v286
  %303 = vst [vmem:[#allocation2 + $0x58] sm:$0xff] %v287
  %304 = vst [vmem:[#allocation2 + $0x60] sm:$0xff] %v288
  %305 = vst [vmem:[#allocation2 + $0x68] sm:$0xff] %v289
  %306 = vst [vmem:[#allocation2 + $0x70] sm:$0xff] %v290
  %307 = vst [vmem:[#allocation2 + $0x78] sm:$0xff] %v291
  // Predicated region
  $region18: #{vae_forward.24} parent=0 // pred_check
    %p308 = pneg %p15
  $region19: #{vae_forward.24} parent=0 // pred_check_branch
    %310 = sbr.rel (%p308) target = $region21
  $region20: #{vae_forward.24} parent=0 // pred_region
    %v311 = vld [vmem:[#allocation2] sm:$0xff]
    %v312 = vld [vmem:[#allocation2 + $0x8] sm:$0xff]
    %v313 = vld [vmem:[#allocation2 + $0x10] sm:$0xff]
    %v314 = vld [vmem:[#allocation2 + $0x18] sm:$0xff]
    %v315 = vld [vmem:[#allocation2 + $0x20] sm:$0xff]
    %v316 = vld [vmem:[#allocation2 + $0x28] sm:$0xff]
    %v317 = vld [vmem:[#allocation2 + $0x30] sm:$0xff]
    %v318 = vld [vmem:[#allocation2 + $0x38] sm:$0xff]
    %v319 = vld [vmem:[#allocation2 + $0x40] sm:$0xff]
    %v320 = vld [vmem:[#allocation2 + $0x48] sm:$0xff]
    %v321 = vld [vmem:[#allocation2 + $0x50] sm:$0xff]
    %v322 = vld [vmem:[#allocation2 + $0x58] sm:$0xff]
    %v323 = vld [vmem:[#allocation2 + $0x60] sm:$0xff]
    %v324 = vld [vmem:[#allocation2 + $0x68] sm:$0xff]
    %v325 = vld [vmem:[#allocation2 + $0x70] sm:$0xff]
    %v326 = vld [vmem:[#allocation2 + $0x78] sm:$0xff]
    %v327 = vld [vmem:[%s2] sm:$0x1]
    %v329 = vlaneseq
    %v330 = vshrl.u32 %v329, 7
    %v331 = vsub.s32 0, %v330
    %v332 = vrot.slane %v327, %v331
    %v334 = vadd.f32 %v311, %v332
    %v335 = vadd.f32 %v312, %v332
    %v336 = vadd.f32 %v313, %v332
    %v337 = vadd.f32 %v314, %v332
    %v338 = vadd.f32 %v315, %v332
    %v339 = vadd.f32 %v316, %v332
    %v340 = vadd.f32 %v317, %v332
    %v341 = vadd.f32 %v318, %v332
    %v342 = vadd.f32 %v319, %v332
    %v343 = vadd.f32 %v320, %v332
    %v344 = vadd.f32 %v321, %v332
    %v345 = vadd.f32 %v322, %v332
    %v346 = vadd.f32 %v323, %v332
    %v347 = vadd.f32 %v324, %v332
    %v348 = vadd.f32 %v325, %v332
    %v349 = vadd.f32 %v326, %v332
    %350 = vst [vmem:[%s3] sm:$0xff] %v334
    %351 = vst [vmem:[%s3 + $0x8] sm:$0xff] %v335
    %352 = vst [vmem:[%s3 + $0x10] sm:$0xff] %v336
    %353 = vst [vmem:[%s3 + $0x18] sm:$0xff] %v337
    %354 = vst [vmem:[%s3 + $0x20] sm:$0xff] %v338
    %355 = vst [vmem:[%s3 + $0x28] sm:$0xff] %v339
    %356 = vst [vmem:[%s3 + $0x30] sm:$0xff] %v340
    %357 = vst [vmem:[%s3 + $0x38] sm:$0xff] %v341
    %358 = vst [vmem:[%s3 + $0x40] sm:$0xff] %v342
    %359 = vst [vmem:[%s3 + $0x48] sm:$0xff] %v343
    %360 = vst [vmem:[%s3 + $0x50] sm:$0xff] %v344
    %361 = vst [vmem:[%s3 + $0x58] sm:$0xff] %v345
    %362 = vst [vmem:[%s3 + $0x60] sm:$0xff] %v346
    %363 = vst [vmem:[%s3 + $0x68] sm:$0xff] %v347
    %364 = vst [vmem:[%s3 + $0x70] sm:$0xff] %v348
    %365 = vst [vmem:[%s3 + $0x78] sm:$0xff] %v349
  $region21: #{vae_forward.24} parent=0 // pred_fallthru
    _
  // Predicated region
  $region22: #{vae_forward.24} parent=0 // pred_check
    _
  $region23: #{vae_forward.24} parent=0 // pred_check_branch
    %367 = sbr.rel (0) target = $region25
  $region24: #{vae_forward.24} parent=0 // pred_region
    _
  $region25: #{vae_forward.24} parent=0 // pred_fallthru
    _
  // Predicated region
  $region26: #{vae_forward.24} parent=0 // pred_check
    _
  $region27: #{vae_forward.24} parent=0 // pred_check_branch
    %369 = sbr.rel (0) target = $region29
  $region28: #{vae_forward.24} parent=0 // pred_region
    _
  $region29: #{vae_forward.24} parent=0 // pred_fallthru
    _

// kernel: vae_forward.25
$region0: #{vae_forward.25}
  #allocation0 [shape = 'u32[]', space=smem, size = 0x4, offset = 0x4, fixed_abs, tag = 'smem constant byte address 0x4 - core index']
  #allocation1 [shape = 'u32[144,128]{1,0:T(1,128)}', space=vmem, size = 0x12000, scoped, tag = 'internal scratch']
  %s0 = inlined_call_operand.vmem [shape: f32[512,128], index: 0, kind: input, shape index: {}]
  %s1 = inlined_call_operand.vmem [shape: f32[1,128], index: 1, kind: input, shape index: {}]
  %s2 = inlined_call_operand.vmem [shape: f32[512,128], index: 2, kind: output, shape index: {}]
  %s3 = sld [smem:[#allocation0]]
  $region18: #{vae_forward.25} parent=0
    _
  %s5 = ssub.s32 1, %s3
  %s6 = scalar_select 0, %s5, %s3
  // Predicated region
  $region2: #{vae_forward.25} parent=0 // pred_check
    _
  $region3: #{vae_forward.25} parent=0 // pred_check_branch
    %8 = sbr.rel (0) target = $region5
  $region4: #{vae_forward.25} parent=0 // pred_region
    _
  $region5: #{vae_forward.25} parent=0 // pred_fallthru
    _
  // Predicated region
  $region6: #{vae_forward.25} parent=0 // pred_check
    _
  $region7: #{vae_forward.25} parent=0 // pred_check_branch
    %10 = sbr.rel (0) target = $region9
  $region8: #{vae_forward.25} parent=0 // pred_region
    _
  $region9: #{vae_forward.25} parent=0 // pred_fallthru
    _
  %v11 = vld [vmem:[%s0] sm:$0xff]
  %v12 = vld [vmem:[%s0 + $0x8] sm:$0xff]
  %v13 = vld [vmem:[%s0 + $0x10] sm:$0xff]
  %v14 = vld [vmem:[%s0 + $0x18] sm:$0xff]
  %v15 = vld [vmem:[%s0 + $0x20] sm:$0xff]
  %v16 = vld [vmem:[%s0 + $0x28] sm:$0xff]
  %v17 = vld [vmem:[%s0 + $0x30] sm:$0xff]
  %v18 = vld [vmem:[%s0 + $0x38] sm:$0xff]
  %v19 = vld [vmem:[%s0 + $0x40] sm:$0xff]
  %v20 = vld [vmem:[%s0 + $0x48] sm:$0xff]
  %v21 = vld [vmem:[%s0 + $0x50] sm:$0xff]
  %v22 = vld [vmem:[%s0 + $0x58] sm:$0xff]
  %v23 = vld [vmem:[%s0 + $0x60] sm:$0xff]
  %v24 = vld [vmem:[%s0 + $0x68] sm:$0xff]
  %v25 = vld [vmem:[%s0 + $0x70] sm:$0xff]
  %v26 = vld [vmem:[%s0 + $0x78] sm:$0xff]
  %v27 = vld [vmem:[%s0 + $0x80] sm:$0xff]
  %v28 = vld [vmem:[%s0 + $0x88] sm:$0xff]
  %v29 = vld [vmem:[%s0 + $0x90] sm:$0xff]
  %v30 = vld [vmem:[%s0 + $0x98] sm:$0xff]
  %v31 = vld [vmem:[%s0 + $0xa0] sm:$0xff]
  %v32 = vld [vmem:[%s0 + $0xa8] sm:$0xff]
  %v33 = vld [vmem:[%s0 + $0xb0] sm:$0xff]
  %v34 = vld [vmem:[%s0 + $0xb8] sm:$0xff]
  %v35 = vld [vmem:[%s0 + $0xc0] sm:$0xff]
  %v36 = vld [vmem:[%s0 + $0xc8] sm:$0xff]
  %v37 = vld [vmem:[%s0 + $0xd0] sm:$0xff]
  %v38 = vld [vmem:[%s0 + $0xd8] sm:$0xff]
  %v39 = vld [vmem:[%s0 + $0xe0] sm:$0xff]
  %v40 = vld [vmem:[%s0 + $0xe8] sm:$0xff]
  %v41 = vld [vmem:[%s0 + $0xf0] sm:$0xff]
  %v42 = vld [vmem:[%s0 + $0xf8] sm:$0xff]
  %v43 = vld [vmem:[%s0 + $0x100] sm:$0xff]
  %v44 = vld [vmem:[%s0 + $0x108] sm:$0xff]
  %v45 = vld [vmem:[%s0 + $0x110] sm:$0xff]
  %v46 = vld [vmem:[%s0 + $0x118] sm:$0xff]
  %v47 = vld [vmem:[%s0 + $0x120] sm:$0xff]
  %v48 = vld [vmem:[%s0 + $0x128] sm:$0xff]
  %v49 = vld [vmem:[%s0 + $0x130] sm:$0xff]
  %v50 = vld [vmem:[%s0 + $0x138] sm:$0xff]
  %v51 = vld [vmem:[%s0 + $0x140] sm:$0xff]
  %v52 = vld [vmem:[%s0 + $0x148] sm:$0xff]
  %v53 = vld [vmem:[%s0 + $0x150] sm:$0xff]
  %v54 = vld [vmem:[%s0 + $0x158] sm:$0xff]
  %v55 = vld [vmem:[%s0 + $0x160] sm:$0xff]
  %v56 = vld [vmem:[%s0 + $0x168] sm:$0xff]
  %v57 = vld [vmem:[%s0 + $0x170] sm:$0xff]
  %v58 = vld [vmem:[%s0 + $0x178] sm:$0xff]
  %v59 = vld [vmem:[%s0 + $0x180] sm:$0xff]
  %v60 = vld [vmem:[%s0 + $0x188] sm:$0xff]
  %v61 = vld [vmem:[%s0 + $0x190] sm:$0xff]
  %v62 = vld [vmem:[%s0 + $0x198] sm:$0xff]
  %v63 = vld [vmem:[%s0 + $0x1a0] sm:$0xff]
  %v64 = vld [vmem:[%s0 + $0x1a8] sm:$0xff]
  %v65 = vld [vmem:[%s0 + $0x1b0] sm:$0xff]
  %v66 = vld [vmem:[%s0 + $0x1b8] sm:$0xff]
  %v67 = vld [vmem:[%s0 + $0x1c0] sm:$0xff]
  %v68 = vld [vmem:[%s0 + $0x1c8] sm:$0xff]
  %v69 = vld [vmem:[%s0 + $0x1d0] sm:$0xff]
  %v70 = vld [vmem:[%s0 + $0x1d8] sm:$0xff]
  %v71 = vld [vmem:[%s0 + $0x1e0] sm:$0xff]
  %v72 = vld [vmem:[%s0 + $0x1e8] sm:$0xff]
  %v73 = vld [vmem:[%s0 + $0x1f0] sm:$0xff]
  %v74 = vld [vmem:[%s0 + $0x1f8] sm:$0xff]
  %v75 = vld [vmem:[%s1] sm:$0x1]
  %v77 = vlaneseq
  %v78 = vshrl.u32 %v77, 7
  %v79 = vsub.s32 0, %v78
  %v80 = vrot.slane %v75, %v79
  %v82 = vadd.f32 %v11, %v80
  %v83 = vadd.f32 %v12, %v80
  %v84 = vadd.f32 %v13, %v80
  %v85 = vadd.f32 %v14, %v80
  %v86 = vadd.f32 %v15, %v80
  %v87 = vadd.f32 %v16, %v80
  %v88 = vadd.f32 %v17, %v80
  %v89 = vadd.f32 %v18, %v80
  %v90 = vadd.f32 %v19, %v80
  %v91 = vadd.f32 %v20, %v80
  %v92 = vadd.f32 %v21, %v80
  %v93 = vadd.f32 %v22, %v80
  %v94 = vadd.f32 %v23, %v80
  %v95 = vadd.f32 %v24, %v80
  %v96 = vadd.f32 %v25, %v80
  %v97 = vadd.f32 %v26, %v80
  %v98 = vadd.f32 %v27, %v80
  %v99 = vadd.f32 %v28, %v80
  %v100 = vadd.f32 %v29, %v80
  %v101 = vadd.f32 %v30, %v80
  %v102 = vadd.f32 %v31, %v80
  %v103 = vadd.f32 %v32, %v80
  %v104 = vadd.f32 %v33, %v80
  %v105 = vadd.f32 %v34, %v80
  %v106 = vadd.f32 %v35, %v80
  %v107 = vadd.f32 %v36, %v80
  %v108 = vadd.f32 %v37, %v80
  %v109 = vadd.f32 %v38, %v80
  %v110 = vadd.f32 %v39, %v80
  %v111 = vadd.f32 %v40, %v80
  %v112 = vadd.f32 %v41, %v80
  %v113 = vadd.f32 %v42, %v80
  %v114 = vadd.f32 %v43, %v80
  %v115 = vadd.f32 %v44, %v80
  %v116 = vadd.f32 %v45, %v80
  %v117 = vadd.f32 %v46, %v80
  %v118 = vadd.f32 %v47, %v80
  %v119 = vadd.f32 %v48, %v80
  %v120 = vadd.f32 %v49, %v80
  %v121 = vadd.f32 %v50, %v80
  %v122 = vadd.f32 %v51, %v80
  %v123 = vadd.f32 %v52, %v80
  %v124 = vadd.f32 %v53, %v80
  %v125 = vadd.f32 %v54, %v80
  %v126 = vadd.f32 %v55, %v80
  %v127 = vadd.f32 %v56, %v80
  %v128 = vadd.f32 %v57, %v80
  %v129 = vadd.f32 %v58, %v80
  %v130 = vadd.f32 %v59, %v80
  %v131 = vadd.f32 %v60, %v80
  %v132 = vadd.f32 %v61, %v80
  %v133 = vadd.f32 %v62, %v80
  %v134 = vadd.f32 %v63, %v80
  %v135 = vadd.f32 %v64, %v80
  %v136 = vadd.f32 %v65, %v80
  %v137 = vadd.f32 %v66, %v80
  %v138 = vadd.f32 %v67, %v80
  %v139 = vadd.f32 %v68, %v80
  %v140 = vadd.f32 %v69, %v80
  %v141 = vadd.f32 %v70, %v80
  %v142 = vadd.f32 %v71, %v80
  %v143 = vadd.f32 %v72, %v80
  %v144 = vadd.f32 %v73, %v80
  %v145 = vadd.f32 %v74, %v80
  %v146 = vmax.f32 %v82, 0.0
  %v147 = vmax.f32 %v83, 0.0
  %v148 = vmax.f32 %v84, 0.0
  %v149 = vmax.f32 %v85, 0.0
  %v150 = vmax.f32 %v86, 0.0
  %v151 = vmax.f32 %v87, 0.0
  %v152 = vmax.f32 %v88, 0.0
  %v153 = vmax.f32 %v89, 0.0
  %v154 = vmax.f32 %v90, 0.0
  %v155 = vmax.f32 %v91, 0.0
  %v156 = vmax.f32 %v92, 0.0
  %v157 = vmax.f32 %v93, 0.0
  %v158 = vmax.f32 %v94, 0.0
  %v159 = vmax.f32 %v95, 0.0
  %v160 = vmax.f32 %v96, 0.0
  %v161 = vmax.f32 %v97, 0.0
  %v162 = vmax.f32 %v98, 0.0
  %v163 = vmax.f32 %v99, 0.0
  %v164 = vmax.f32 %v100, 0.0
  %v165 = vmax.f32 %v101, 0.0
  %v166 = vmax.f32 %v102, 0.0
  %v167 = vmax.f32 %v103, 0.0
  %v168 = vmax.f32 %v104, 0.0
  %v169 = vmax.f32 %v105, 0.0
  %v170 = vmax.f32 %v106, 0.0
  %v171 = vmax.f32 %v107, 0.0
  %v172 = vmax.f32 %v108, 0.0
  %v173 = vmax.f32 %v109, 0.0
  %v174 = vmax.f32 %v110, 0.0
  %v175 = vmax.f32 %v111, 0.0
  %v176 = vmax.f32 %v112, 0.0
  %v177 = vmax.f32 %v113, 0.0
  %v178 = vmax.f32 %v114, 0.0
  %v179 = vmax.f32 %v115, 0.0
  %v180 = vmax.f32 %v116, 0.0
  %v181 = vmax.f32 %v117, 0.0
  %v182 = vmax.f32 %v118, 0.0
  %v183 = vmax.f32 %v119, 0.0
  %v184 = vmax.f32 %v120, 0.0
  %v185 = vmax.f32 %v121, 0.0
  %v186 = vmax.f32 %v122, 0.0
  %v187 = vmax.f32 %v123, 0.0
  %v188 = vmax.f32 %v124, 0.0
  %v189 = vmax.f32 %v125, 0.0
  %v190 = vmax.f32 %v126, 0.0
  %v191 = vmax.f32 %v127, 0.0
  %v192 = vmax.f32 %v128, 0.0
  %v193 = vmax.f32 %v129, 0.0
  %v194 = vmax.f32 %v130, 0.0
  %v195 = vmax.f32 %v131, 0.0
  %v196 = vmax.f32 %v132, 0.0
  %v197 = vmax.f32 %v133, 0.0
  %v198 = vmax.f32 %v134, 0.0
  %v199 = vmax.f32 %v135, 0.0
  %v200 = vmax.f32 %v136, 0.0
  %v201 = vmax.f32 %v137, 0.0
  %v202 = vmax.f32 %v138, 0.0
  %v203 = vmax.f32 %v139, 0.0
  %v204 = vmax.f32 %v140, 0.0
  %v205 = vmax.f32 %v141, 0.0
  %v206 = vmax.f32 %v142, 0.0
  %v207 = vmax.f32 %v143, 0.0
  %v208 = vmax.f32 %v144, 0.0
  %v209 = vmax.f32 %v145, 0.0
  %210 = vst [vmem:[%s2] sm:$0xff] %v146
  %211 = vst [vmem:[%s2 + $0x8] sm:$0xff] %v147
  %212 = vst [vmem:[%s2 + $0x10] sm:$0xff] %v148
  %213 = vst [vmem:[%s2 + $0x18] sm:$0xff] %v149
  %214 = vst [vmem:[%s2 + $0x20] sm:$0xff] %v150
  %215 = vst [vmem:[%s2 + $0x28] sm:$0xff] %v151
  %216 = vst [vmem:[%s2 + $0x30] sm:$0xff] %v152
  %217 = vst [vmem:[%s2 + $0x38] sm:$0xff] %v153
  %218 = vst [vmem:[%s2 + $0x40] sm:$0xff] %v154
  %219 = vst [vmem:[%s2 + $0x48] sm:$0xff] %v155
  %220 = vst [vmem:[%s2 + $0x50] sm:$0xff] %v156
  %221 = vst [vmem:[%s2 + $0x58] sm:$0xff] %v157
  %222 = vst [vmem:[%s2 + $0x60] sm:$0xff] %v158
  %223 = vst [vmem:[%s2 + $0x68] sm:$0xff] %v159
  %224 = vst [vmem:[%s2 + $0x70] sm:$0xff] %v160
  %225 = vst [vmem:[%s2 + $0x78] sm:$0xff] %v161
  %226 = vst [vmem:[%s2 + $0x80] sm:$0xff] %v162
  %227 = vst [vmem:[%s2 + $0x88] sm:$0xff] %v163
  %228 = vst [vmem:[%s2 + $0x90] sm:$0xff] %v164
  %229 = vst [vmem:[%s2 + $0x98] sm:$0xff] %v165
  %230 = vst [vmem:[%s2 + $0xa0] sm:$0xff] %v166
  %231 = vst [vmem:[%s2 + $0xa8] sm:$0xff] %v167
  %232 = vst [vmem:[%s2 + $0xb0] sm:$0xff] %v168
  %233 = vst [vmem:[%s2 + $0xb8] sm:$0xff] %v169
  %234 = vst [vmem:[%s2 + $0xc0] sm:$0xff] %v170
  %235 = vst [vmem:[%s2 + $0xc8] sm:$0xff] %v171
  %236 = vst [vmem:[%s2 + $0xd0] sm:$0xff] %v172
  %237 = vst [vmem:[%s2 + $0xd8] sm:$0xff] %v173
  %238 = vst [vmem:[%s2 + $0xe0] sm:$0xff] %v174
  %239 = vst [vmem:[%s2 + $0xe8] sm:$0xff] %v175
  %240 = vst [vmem:[%s2 + $0xf0] sm:$0xff] %v176
  %241 = vst [vmem:[%s2 + $0xf8] sm:$0xff] %v177
  %242 = vst [vmem:[%s2 + $0x100] sm:$0xff] %v178
  %243 = vst [vmem:[%s2 + $0x108] sm:$0xff] %v179
  %244 = vst [vmem:[%s2 + $0x110] sm:$0xff] %v180
  %245 = vst [vmem:[%s2 + $0x118] sm:$0xff] %v181
  %246 = vst [vmem:[%s2 + $0x120] sm:$0xff] %v182
  %247 = vst [vmem:[%s2 + $0x128] sm:$0xff] %v183
  %248 = vst [vmem:[%s2 + $0x130] sm:$0xff] %v184
  %249 = vst [vmem:[%s2 + $0x138] sm:$0xff] %v185
  %250 = vst [vmem:[%s2 + $0x140] sm:$0xff] %v186
  %251 = vst [vmem:[%s2 + $0x148] sm:$0xff] %v187
  %252 = vst [vmem:[%s2 + $0x150] sm:$0xff] %v188
  %253 = vst [vmem:[%s2 + $0x158] sm:$0xff] %v189
  %254 = vst [vmem:[%s2 + $0x160] sm:$0xff] %v190
  %255 = vst [vmem:[%s2 + $0x168] sm:$0xff] %v191
  %256 = vst [vmem:[%s2 + $0x170] sm:$0xff] %v192
  %257 = vst [vmem:[%s2 + $0x178] sm:$0xff] %v193
  %258 = vst [vmem:[%s2 + $0x180] sm:$0xff] %v194
  %259 = vst [vmem:[%s2 + $0x188] sm:$0xff] %v195
  %260 = vst [vmem:[%s2 + $0x190] sm:$0xff] %v196
  %261 = vst [vmem:[%s2 + $0x198] sm:$0xff] %v197
  %262 = vst [vmem:[%s2 + $0x1a0] sm:$0xff] %v198
  %263 = vst [vmem:[%s2 + $0x1a8] sm:$0xff] %v199
  %264 = vst [vmem:[%s2 + $0x1b0] sm:$0xff] %v200
  %265 = vst [vmem:[%s2 + $0x1b8] sm:$0xff] %v201
  %266 = vst [vmem:[%s2 + $0x1c0] sm:$0xff] %v202
  %267 = vst [vmem:[%s2 + $0x1c8] sm:$0xff] %v203
  %268 = vst [vmem:[%s2 + $0x1d0] sm:$0xff] %v204
  %269 = vst [vmem:[%s2 + $0x1d8] sm:$0xff] %v205
  %270 = vst [vmem:[%s2 + $0x1e0] sm:$0xff] %v206
  %271 = vst [vmem:[%s2 + $0x1e8] sm:$0xff] %v207
  %272 = vst [vmem:[%s2 + $0x1f0] sm:$0xff] %v208
  %273 = vst [vmem:[%s2 + $0x1f8] sm:$0xff] %v209
  // Predicated region
  $region10: #{vae_forward.25} parent=0 // pred_check
    _
  $region11: #{vae_forward.25} parent=0 // pred_check_branch
    %275 = sbr.rel (0) target = $region13
  $region12: #{vae_forward.25} parent=0 // pred_region
    _
  $region13: #{vae_forward.25} parent=0 // pred_fallthru
    _
  // Predicated region
  $region14: #{vae_forward.25} parent=0 // pred_check
    _
  $region15: #{vae_forward.25} parent=0 // pred_check_branch
    %277 = sbr.rel (0) target = $region17
  $region16: #{vae_forward.25} parent=0 // pred_region
    _
  $region17: #{vae_forward.25} parent=0 // pred_fallthru
    _

// kernel: vae_forward.26
$region0: #{vae_forward.26}
  #allocation0 [shape = 'u32[]', space=smem, size = 0x4, offset = 0x4, fixed_abs, tag = 'smem constant byte address 0x4 - core index']
  #allocation1 [shape = 'u32[144,128]{1,0:T(1,128)}', space=vmem, size = 0x12000, scoped, tag = 'internal scratch']
  #allocation2 [shape = 'f32[512,128]{1,0:T(8,128)}', space=vmem, size = 0x40000, scoped, tag = 'scratch operand']
  %s0 = inlined_call_operand.vmem [shape: bf16[512,128], index: 0, kind: input, shape index: {}]
  %s1 = inlined_call_operand.vmem [shape: bf16[128,128], index: 1, kind: input, shape index: {}]
  %s2 = inlined_call_operand.vmem [shape: f32[1,128], index: 2, kind: input, shape index: {}]
  %s3 = inlined_call_operand.vmem [shape: f32[512,128], index: 3, kind: output, shape index: {}]
  %s4 = sld [smem:[#allocation0]]
  $region30: #{vae_forward.26} parent=0
    _
  %s6 = ssub.s32 1, %s4
  %s7 = scalar_select 0, %s6, %s4
  // Predicated region
  $region2: #{vae_forward.26} parent=0 // pred_check
    _
  $region3: #{vae_forward.26} parent=0 // pred_check_branch
    %9 = sbr.rel (0) target = $region5
  $region4: #{vae_forward.26} parent=0 // pred_region
    _
  $region5: #{vae_forward.26} parent=0 // pred_fallthru
    _
  // Predicated region
  $region6: #{vae_forward.26} parent=0 // pred_check
    _
  $region7: #{vae_forward.26} parent=0 // pred_check_branch
    %11 = sbr.rel (0) target = $region9
  $region8: #{vae_forward.26} parent=0 // pred_region
    _
  $region9: #{vae_forward.26} parent=0 // pred_fallthru
    _
  // Predicated region
  $region10: #{vae_forward.26} parent=0 // pred_check
    _
  $region11: #{vae_forward.26} parent=0 // pred_check_branch
    %13 = sbr.rel (0) target = $region13
  $region12: #{vae_forward.26} parent=0 // pred_region
    _
  $region13: #{vae_forward.26} parent=0 // pred_fallthru
    _
  %p15 = scmp.eq.s32.totalorder 0, 0
  // Predicated region
  $region14: #{vae_forward.26} parent=0 // pred_check
    %p16 = pneg %p15
  $region15: #{vae_forward.26} parent=0 // pred_check_branch
    %18 = sbr.rel (%p16) target = $region17
  $region16: #{vae_forward.26} parent=0 // pred_region
    %19 = vst [vmem:[#allocation2] sm:$0xff] 0.0
    %20 = vst [vmem:[#allocation2 + $0x8] sm:$0xff] 0.0
    %21 = vst [vmem:[#allocation2 + $0x10] sm:$0xff] 0.0
    %22 = vst [vmem:[#allocation2 + $0x18] sm:$0xff] 0.0
    %23 = vst [vmem:[#allocation2 + $0x20] sm:$0xff] 0.0
    %24 = vst [vmem:[#allocation2 + $0x28] sm:$0xff] 0.0
    %25 = vst [vmem:[#allocation2 + $0x30] sm:$0xff] 0.0
    %26 = vst [vmem:[#allocation2 + $0x38] sm:$0xff] 0.0
    %27 = vst [vmem:[#allocation2 + $0x40] sm:$0xff] 0.0
    %28 = vst [vmem:[#allocation2 + $0x48] sm:$0xff] 0.0
    %29 = vst [vmem:[#allocation2 + $0x50] sm:$0xff] 0.0
    %30 = vst [vmem:[#allocation2 + $0x58] sm:$0xff] 0.0
    %31 = vst [vmem:[#allocation2 + $0x60] sm:$0xff] 0.0
    %32 = vst [vmem:[#allocation2 + $0x68] sm:$0xff] 0.0
    %33 = vst [vmem:[#allocation2 + $0x70] sm:$0xff] 0.0
    %34 = vst [vmem:[#allocation2 + $0x78] sm:$0xff] 0.0
    %35 = vst [vmem:[#allocation2 + $0x80] sm:$0xff] 0.0
    %36 = vst [vmem:[#allocation2 + $0x88] sm:$0xff] 0.0
    %37 = vst [vmem:[#allocation2 + $0x90] sm:$0xff] 0.0
    %38 = vst [vmem:[#allocation2 + $0x98] sm:$0xff] 0.0
    %39 = vst [vmem:[#allocation2 + $0xa0] sm:$0xff] 0.0
    %40 = vst [vmem:[#allocation2 + $0xa8] sm:$0xff] 0.0
    %41 = vst [vmem:[#allocation2 + $0xb0] sm:$0xff] 0.0
    %42 = vst [vmem:[#allocation2 + $0xb8] sm:$0xff] 0.0
    %43 = vst [vmem:[#allocation2 + $0xc0] sm:$0xff] 0.0
    %44 = vst [vmem:[#allocation2 + $0xc8] sm:$0xff] 0.0
    %45 = vst [vmem:[#allocation2 + $0xd0] sm:$0xff] 0.0
    %46 = vst [vmem:[#allocation2 + $0xd8] sm:$0xff] 0.0
    %47 = vst [vmem:[#allocation2 + $0xe0] sm:$0xff] 0.0
    %48 = vst [vmem:[#allocation2 + $0xe8] sm:$0xff] 0.0
    %49 = vst [vmem:[#allocation2 + $0xf0] sm:$0xff] 0.0
    %50 = vst [vmem:[#allocation2 + $0xf8] sm:$0xff] 0.0
    %51 = vst [vmem:[#allocation2 + $0x100] sm:$0xff] 0.0
    %52 = vst [vmem:[#allocation2 + $0x108] sm:$0xff] 0.0
    %53 = vst [vmem:[#allocation2 + $0x110] sm:$0xff] 0.0
    %54 = vst [vmem:[#allocation2 + $0x118] sm:$0xff] 0.0
    %55 = vst [vmem:[#allocation2 + $0x120] sm:$0xff] 0.0
    %56 = vst [vmem:[#allocation2 + $0x128] sm:$0xff] 0.0
    %57 = vst [vmem:[#allocation2 + $0x130] sm:$0xff] 0.0
    %58 = vst [vmem:[#allocation2 + $0x138] sm:$0xff] 0.0
    %59 = vst [vmem:[#allocation2 + $0x140] sm:$0xff] 0.0
    %60 = vst [vmem:[#allocation2 + $0x148] sm:$0xff] 0.0
    %61 = vst [vmem:[#allocation2 + $0x150] sm:$0xff] 0.0
    %62 = vst [vmem:[#allocation2 + $0x158] sm:$0xff] 0.0
    %63 = vst [vmem:[#allocation2 + $0x160] sm:$0xff] 0.0
    %64 = vst [vmem:[#allocation2 + $0x168] sm:$0xff] 0.0
    %65 = vst [vmem:[#allocation2 + $0x170] sm:$0xff] 0.0
    %66 = vst [vmem:[#allocation2 + $0x178] sm:$0xff] 0.0
    %67 = vst [vmem:[#allocation2 + $0x180] sm:$0xff] 0.0
    %68 = vst [vmem:[#allocation2 + $0x188] sm:$0xff] 0.0
    %69 = vst [vmem:[#allocation2 + $0x190] sm:$0xff] 0.0
    %70 = vst [vmem:[#allocation2 + $0x198] sm:$0xff] 0.0
    %71 = vst [vmem:[#allocation2 + $0x1a0] sm:$0xff] 0.0
    %72 = vst [vmem:[#allocation2 + $0x1a8] sm:$0xff] 0.0
    %73 = vst [vmem:[#allocation2 + $0x1b0] sm:$0xff] 0.0
    %74 = vst [vmem:[#allocation2 + $0x1b8] sm:$0xff] 0.0
    %75 = vst [vmem:[#allocation2 + $0x1c0] sm:$0xff] 0.0
    %76 = vst [vmem:[#allocation2 + $0x1c8] sm:$0xff] 0.0
    %77 = vst [vmem:[#allocation2 + $0x1d0] sm:$0xff] 0.0
    %78 = vst [vmem:[#allocation2 + $0x1d8] sm:$0xff] 0.0
    %79 = vst [vmem:[#allocation2 + $0x1e0] sm:$0xff] 0.0
    %80 = vst [vmem:[#allocation2 + $0x1e8] sm:$0xff] 0.0
    %81 = vst [vmem:[#allocation2 + $0x1f0] sm:$0xff] 0.0
    %82 = vst [vmem:[#allocation2 + $0x1f8] sm:$0xff] 0.0
  $region17: #{vae_forward.26} parent=0 // pred_fallthru
    _
  %v83 = vld [vmem:[#allocation2] sm:$0xff]
  %v84 = vld [vmem:[#allocation2 + $0x8] sm:$0xff]
  %v85 = vld [vmem:[#allocation2 + $0x10] sm:$0xff]
  %v86 = vld [vmem:[#allocation2 + $0x18] sm:$0xff]
  %v87 = vld [vmem:[#allocation2 + $0x20] sm:$0xff]
  %v88 = vld [vmem:[#allocation2 + $0x28] sm:$0xff]
  %v89 = vld [vmem:[#allocation2 + $0x30] sm:$0xff]
  %v90 = vld [vmem:[#allocation2 + $0x38] sm:$0xff]
  %v91 = vld [vmem:[#allocation2 + $0x40] sm:$0xff]
  %v92 = vld [vmem:[#allocation2 + $0x48] sm:$0xff]
  %v93 = vld [vmem:[#allocation2 + $0x50] sm:$0xff]
  %v94 = vld [vmem:[#allocation2 + $0x58] sm:$0xff]
  %v95 = vld [vmem:[#allocation2 + $0x60] sm:$0xff]
  %v96 = vld [vmem:[#allocation2 + $0x68] sm:$0xff]
  %v97 = vld [vmem:[#allocation2 + $0x70] sm:$0xff]
  %v98 = vld [vmem:[#allocation2 + $0x78] sm:$0xff]
  %v99 = vld [vmem:[#allocation2 + $0x80] sm:$0xff]
  %v100 = vld [vmem:[#allocation2 + $0x88] sm:$0xff]
  %v101 = vld [vmem:[#allocation2 + $0x90] sm:$0xff]
  %v102 = vld [vmem:[#allocation2 + $0x98] sm:$0xff]
  %v103 = vld [vmem:[#allocation2 + $0xa0] sm:$0xff]
  %v104 = vld [vmem:[#allocation2 + $0xa8] sm:$0xff]
  %v105 = vld [vmem:[#allocation2 + $0xb0] sm:$0xff]
  %v106 = vld [vmem:[#allocation2 + $0xb8] sm:$0xff]
  %v107 = vld [vmem:[#allocation2 + $0xc0] sm:$0xff]
  %v108 = vld [vmem:[#allocation2 + $0xc8] sm:$0xff]
  %v109 = vld [vmem:[#allocation2 + $0xd0] sm:$0xff]
  %v110 = vld [vmem:[#allocation2 + $0xd8] sm:$0xff]
  %v111 = vld [vmem:[#allocation2 + $0xe0] sm:$0xff]
  %v112 = vld [vmem:[#allocation2 + $0xe8] sm:$0xff]
  %v113 = vld [vmem:[#allocation2 + $0xf0] sm:$0xff]
  %v114 = vld [vmem:[#allocation2 + $0xf8] sm:$0xff]
  %v115 = vld [vmem:[#allocation2 + $0x100] sm:$0xff]
  %v116 = vld [vmem:[#allocation2 + $0x108] sm:$0xff]
  %v117 = vld [vmem:[#allocation2 + $0x110] sm:$0xff]
  %v118 = vld [vmem:[#allocation2 + $0x118] sm:$0xff]
  %v119 = vld [vmem:[#allocation2 + $0x120] sm:$0xff]
  %v120 = vld [vmem:[#allocation2 + $0x128] sm:$0xff]
  %v121 = vld [vmem:[#allocation2 + $0x130] sm:$0xff]
  %v122 = vld [vmem:[#allocation2 + $0x138] sm:$0xff]
  %v123 = vld [vmem:[#allocation2 + $0x140] sm:$0xff]
  %v124 = vld [vmem:[#allocation2 + $0x148] sm:$0xff]
  %v125 = vld [vmem:[#allocation2 + $0x150] sm:$0xff]
  %v126 = vld [vmem:[#allocation2 + $0x158] sm:$0xff]
  %v127 = vld [vmem:[#allocation2 + $0x160] sm:$0xff]
  %v128 = vld [vmem:[#allocation2 + $0x168] sm:$0xff]
  %v129 = vld [vmem:[#allocation2 + $0x170] sm:$0xff]
  %v130 = vld [vmem:[#allocation2 + $0x178] sm:$0xff]
  %v131 = vld [vmem:[#allocation2 + $0x180] sm:$0xff]
  %v132 = vld [vmem:[#allocation2 + $0x188] sm:$0xff]
  %v133 = vld [vmem:[#allocation2 + $0x190] sm:$0xff]
  %v134 = vld [vmem:[#allocation2 + $0x198] sm:$0xff]
  %v135 = vld [vmem:[#allocation2 + $0x1a0] sm:$0xff]
  %v136 = vld [vmem:[#allocation2 + $0x1a8] sm:$0xff]
  %v137 = vld [vmem:[#allocation2 + $0x1b0] sm:$0xff]
  %v138 = vld [vmem:[#allocation2 + $0x1b8] sm:$0xff]
  %v139 = vld [vmem:[#allocation2 + $0x1c0] sm:$0xff]
  %v140 = vld [vmem:[#allocation2 + $0x1c8] sm:$0xff]
  %v141 = vld [vmem:[#allocation2 + $0x1d0] sm:$0xff]
  %v142 = vld [vmem:[#allocation2 + $0x1d8] sm:$0xff]
  %v143 = vld [vmem:[#allocation2 + $0x1e0] sm:$0xff]
  %v144 = vld [vmem:[#allocation2 + $0x1e8] sm:$0xff]
  %v145 = vld [vmem:[#allocation2 + $0x1f0] sm:$0xff]
  %v146 = vld [vmem:[#allocation2 + $0x1f8] sm:$0xff]
  %v147 = vld [vmem:[%s0] sm:$0xf]
  %v148 = vld [vmem:[%s0 + $0x4] sm:$0xf]
  %v149 = vld [vmem:[%s0 + $0x8] sm:$0xf]
  %v150 = vld [vmem:[%s0 + $0xc] sm:$0xf]
  %v151 = vld [vmem:[%s0 + $0x10] sm:$0xf]
  %v152 = vld [vmem:[%s0 + $0x14] sm:$0xf]
  %v153 = vld [vmem:[%s0 + $0x18] sm:$0xf]
  %v154 = vld [vmem:[%s0 + $0x1c] sm:$0xf]
  %v155 = vld [vmem:[%s0 + $0x20] sm:$0xf]
  %v156 = vld [vmem:[%s0 + $0x24] sm:$0xf]
  %v157 = vld [vmem:[%s0 + $0x28] sm:$0xf]
  %v158 = vld [vmem:[%s0 + $0x2c] sm:$0xf]
  %v159 = vld [vmem:[%s0 + $0x30] sm:$0xf]
  %v160 = vld [vmem:[%s0 + $0x34] sm:$0xf]
  %v161 = vld [vmem:[%s0 + $0x38] sm:$0xf]
  %v162 = vld [vmem:[%s0 + $0x3c] sm:$0xf]
  %v163 = vld [vmem:[%s0 + $0x40] sm:$0xf]
  %v164 = vld [vmem:[%s0 + $0x44] sm:$0xf]
  %v165 = vld [vmem:[%s0 + $0x48] sm:$0xf]
  %v166 = vld [vmem:[%s0 + $0x4c] sm:$0xf]
  %v167 = vld [vmem:[%s0 + $0x50] sm:$0xf]
  %v168 = vld [vmem:[%s0 + $0x54] sm:$0xf]
  %v169 = vld [vmem:[%s0 + $0x58] sm:$0xf]
  %v170 = vld [vmem:[%s0 + $0x5c] sm:$0xf]
  %v171 = vld [vmem:[%s0 + $0x60] sm:$0xf]
  %v172 = vld [vmem:[%s0 + $0x64] sm:$0xf]
  %v173 = vld [vmem:[%s0 + $0x68] sm:$0xf]
  %v174 = vld [vmem:[%s0 + $0x6c] sm:$0xf]
  %v175 = vld [vmem:[%s0 + $0x70] sm:$0xf]
  %v176 = vld [vmem:[%s0 + $0x74] sm:$0xf]
  %v177 = vld [vmem:[%s0 + $0x78] sm:$0xf]
  %v178 = vld [vmem:[%s0 + $0x7c] sm:$0xf]
  %v179 = vld [vmem:[%s0 + $0x80] sm:$0xf]
  %v180 = vld [vmem:[%s0 + $0x84] sm:$0xf]
  %v181 = vld [vmem:[%s0 + $0x88] sm:$0xf]
  %v182 = vld [vmem:[%s0 + $0x8c] sm:$0xf]
  %v183 = vld [vmem:[%s0 + $0x90] sm:$0xf]
  %v184 = vld [vmem:[%s0 + $0x94] sm:$0xf]
  %v185 = vld [vmem:[%s0 + $0x98] sm:$0xf]
  %v186 = vld [vmem:[%s0 + $0x9c] sm:$0xf]
  %v187 = vld [vmem:[%s0 + $0xa0] sm:$0xf]
  %v188 = vld [vmem:[%s0 + $0xa4] sm:$0xf]
  %v189 = vld [vmem:[%s0 + $0xa8] sm:$0xf]
  %v190 = vld [vmem:[%s0 + $0xac] sm:$0xf]
  %v191 = vld [vmem:[%s0 + $0xb0] sm:$0xf]
  %v192 = vld [vmem:[%s0 + $0xb4] sm:$0xf]
  %v193 = vld [vmem:[%s0 + $0xb8] sm:$0xf]
  %v194 = vld [vmem:[%s0 + $0xbc] sm:$0xf]
  %v195 = vld [vmem:[%s0 + $0xc0] sm:$0xf]
  %v196 = vld [vmem:[%s0 + $0xc4] sm:$0xf]
  %v197 = vld [vmem:[%s0 + $0xc8] sm:$0xf]
  %v198 = vld [vmem:[%s0 + $0xcc] sm:$0xf]
  %v199 = vld [vmem:[%s0 + $0xd0] sm:$0xf]
  %v200 = vld [vmem:[%s0 + $0xd4] sm:$0xf]
  %v201 = vld [vmem:[%s0 + $0xd8] sm:$0xf]
  %v202 = vld [vmem:[%s0 + $0xdc] sm:$0xf]
  %v203 = vld [vmem:[%s0 + $0xe0] sm:$0xf]
  %v204 = vld [vmem:[%s0 + $0xe4] sm:$0xf]
  %v205 = vld [vmem:[%s0 + $0xe8] sm:$0xf]
  %v206 = vld [vmem:[%s0 + $0xec] sm:$0xf]
  %v207 = vld [vmem:[%s0 + $0xf0] sm:$0xf]
  %v208 = vld [vmem:[%s0 + $0xf4] sm:$0xf]
  %v209 = vld [vmem:[%s0 + $0xf8] sm:$0xf]
  %v210 = vld [vmem:[%s0 + $0xfc] sm:$0xf]
  %v211 = vld [vmem:[%s1] sm:$0xf]
  %v212 = vld [vmem:[%s1 + $0x4] sm:$0xf]
  %v213 = vld [vmem:[%s1 + $0x8] sm:$0xf]
  %v214 = vld [vmem:[%s1 + $0xc] sm:$0xf]
  %v215 = vld [vmem:[%s1 + $0x10] sm:$0xf]
  %v216 = vld [vmem:[%s1 + $0x14] sm:$0xf]
  %v217 = vld [vmem:[%s1 + $0x18] sm:$0xf]
  %v218 = vld [vmem:[%s1 + $0x1c] sm:$0xf]
  %v219 = vld [vmem:[%s1 + $0x20] sm:$0xf]
  %v220 = vld [vmem:[%s1 + $0x24] sm:$0xf]
  %v221 = vld [vmem:[%s1 + $0x28] sm:$0xf]
  %v222 = vld [vmem:[%s1 + $0x2c] sm:$0xf]
  %v223 = vld [vmem:[%s1 + $0x30] sm:$0xf]
  %v224 = vld [vmem:[%s1 + $0x34] sm:$0xf]
  %v225 = vld [vmem:[%s1 + $0x38] sm:$0xf]
  %v226 = vld [vmem:[%s1 + $0x3c] sm:$0xf]
  %v291 = vunpack.c.l.b16 %v147
  %v292 = vunpack.c.l.b16 %v148
  %v293 = vunpack.c.l.b16 %v149
  %v294 = vunpack.c.l.b16 %v150
  %v295 = vunpack.c.l.b16 %v151
  %v296 = vunpack.c.l.b16 %v152
  %v297 = vunpack.c.l.b16 %v153
  %v298 = vunpack.c.l.b16 %v154
  %v299 = vunpack.c.l.b16 %v155
  %v300 = vunpack.c.l.b16 %v156
  %v301 = vunpack.c.l.b16 %v157
  %v302 = vunpack.c.l.b16 %v158
  %v303 = vunpack.c.l.b16 %v159
  %v304 = vunpack.c.l.b16 %v160
  %v305 = vunpack.c.l.b16 %v161
  %v306 = vunpack.c.l.b16 %v162
  %v307 = vunpack.c.l.b16 %v163
  %v308 = vunpack.c.l.b16 %v164
  %v309 = vunpack.c.l.b16 %v165
  %v310 = vunpack.c.l.b16 %v166
  %v311 = vunpack.c.l.b16 %v167
  %v312 = vunpack.c.l.b16 %v168
  %v313 = vunpack.c.l.b16 %v169
  %v314 = vunpack.c.l.b16 %v170
  %v315 = vunpack.c.l.b16 %v171
  %v316 = vunpack.c.l.b16 %v172
  %v317 = vunpack.c.l.b16 %v173
  %v318 = vunpack.c.l.b16 %v174
  %v319 = vunpack.c.l.b16 %v175
  %v320 = vunpack.c.l.b16 %v176
  %v321 = vunpack.c.l.b16 %v177
  %v322 = vunpack.c.l.b16 %v178
  %v323 = vunpack.c.l.b16 %v179
  %v324 = vunpack.c.l.b16 %v180
  %v325 = vunpack.c.l.b16 %v181
  %v326 = vunpack.c.l.b16 %v182
  %v327 = vunpack.c.l.b16 %v183
  %v328 = vunpack.c.l.b16 %v184
  %v329 = vunpack.c.l.b16 %v185
  %v330 = vunpack.c.l.b16 %v186
  %v331 = vunpack.c.l.b16 %v187
  %v332 = vunpack.c.l.b16 %v188
  %v333 = vunpack.c.l.b16 %v189
  %v334 = vunpack.c.l.b16 %v190
  %v335 = vunpack.c.l.b16 %v191
  %v336 = vunpack.c.l.b16 %v192
  %v337 = vunpack.c.l.b16 %v193
  %v338 = vunpack.c.l.b16 %v194
  %v339 = vunpack.c.l.b16 %v195
  %v340 = vunpack.c.l.b16 %v196
  %v341 = vunpack.c.l.b16 %v197
  %v342 = vunpack.c.l.b16 %v198
  %v343 = vunpack.c.l.b16 %v199
  %v344 = vunpack.c.l.b16 %v200
  %v345 = vunpack.c.l.b16 %v201
  %v346 = vunpack.c.l.b16 %v202
  %v347 = vunpack.c.l.b16 %v203
  %v348 = vunpack.c.l.b16 %v204
  %v349 = vunpack.c.l.b16 %v205
  %v350 = vunpack.c.l.b16 %v206
  %v351 = vunpack.c.l.b16 %v207
  %v352 = vunpack.c.l.b16 %v208
  %v353 = vunpack.c.l.b16 %v209
  %v354 = vunpack.c.l.b16 %v210
  %v355 = vpack.c.b16 %v292, %v291
  %v356 = vpack.c.b16 %v294, %v293
  %v357 = vpack.c.b16 %v296, %v295
  %v358 = vpack.c.b16 %v298, %v297
  %v359 = vpack.c.b16 %v300, %v299
  %v360 = vpack.c.b16 %v302, %v301
  %v361 = vpack.c.b16 %v304, %v303
  %v362 = vpack.c.b16 %v306, %v305
  %v363 = vpack.c.b16 %v308, %v307
  %v364 = vpack.c.b16 %v310, %v309
  %v365 = vpack.c.b16 %v312, %v311
  %v366 = vpack.c.b16 %v314, %v313
  %v367 = vpack.c.b16 %v316, %v315
  %v368 = vpack.c.b16 %v318, %v317
  %v369 = vpack.c.b16 %v320, %v319
  %v370 = vpack.c.b16 %v322, %v321
  %v371 = vpack.c.b16 %v324, %v323
  %v372 = vpack.c.b16 %v326, %v325
  %v373 = vpack.c.b16 %v328, %v327
  %v374 = vpack.c.b16 %v330, %v329
  %v375 = vpack.c.b16 %v332, %v331
  %v376 = vpack.c.b16 %v334, %v333
  %v377 = vpack.c.b16 %v336, %v335
  %v378 = vpack.c.b16 %v338, %v337
  %v379 = vpack.c.b16 %v340, %v339
  %v380 = vpack.c.b16 %v342, %v341
  %v381 = vpack.c.b16 %v344, %v343
  %v382 = vpack.c.b16 %v346, %v345
  %v383 = vpack.c.b16 %v348, %v347
  %v384 = vpack.c.b16 %v350, %v349
  %v385 = vpack.c.b16 %v352, %v351
  %v386 = vpack.c.b16 %v354, %v353
  %v435 = vunpack.c.l.b16 %v211
  %v436 = vunpack.c.l.b16 %v212
  %v437 = vunpack.c.l.b16 %v213
  %v438 = vunpack.c.l.b16 %v214
  %v439 = vunpack.c.l.b16 %v215
  %v440 = vunpack.c.l.b16 %v216
  %v441 = vunpack.c.l.b16 %v217
  %v442 = vunpack.c.l.b16 %v218
  %v443 = vunpack.c.l.b16 %v219
  %v444 = vunpack.c.l.b16 %v220
  %v445 = vunpack.c.l.b16 %v221
  %v446 = vunpack.c.l.b16 %v222
  %v447 = vunpack.c.l.b16 %v223
  %v448 = vunpack.c.l.b16 %v224
  %v449 = vunpack.c.l.b16 %v225
  %v450 = vunpack.c.l.b16 %v226
  %v451 = vpack.c.b16 %v436, %v435
  %v452 = vpack.c.b16 %v438, %v437
  %v453 = vpack.c.b16 %v440, %v439
  %v454 = vpack.c.b16 %v442, %v441
  %v455 = vpack.c.b16 %v444, %v443
  %v456 = vpack.c.b16 %v446, %v445
  %v457 = vpack.c.b16 %v448, %v447
  %v458 = vpack.c.b16 %v450, %v449
  %467 = vmatprep.subr.bf16.mxu0 0
  %468 = vmatpush1.bf16.msra.mxu0 %v451
  %469 = vmatprep.subr.bf16.mxu0 0
  %470 = vmatpush1.bf16.msra.mxu0 %v452
  %471 = vmatprep.subr.bf16.mxu0 0
  %472 = vmatpush1.bf16.msra.mxu0 %v453
  %473 = vmatprep.subr.bf16.mxu0 0
  %474 = vmatpush1.bf16.msra.mxu0 %v454
  %475 = vmatprep.subr.bf16.mxu0 0
  %476 = vmatpush1.bf16.msra.mxu0 %v455
  %477 = vmatprep.subr.bf16.mxu0 0
  %478 = vmatpush1.bf16.msra.mxu0 %v456
  %479 = vmatprep.subr.bf16.mxu0 0
  %480 = vmatpush1.bf16.msra.mxu0 %v457
  %481 = vmatprep.subr.bf16.mxu0 0
  %482 = vmatpush1.bf16.msra.mxu0 %v458
  %483 = vmatprep.subr.bf16.mxu0 0
  %484 = vmatpush1.bf16.msra.mxu0 0
  %485 = vmatprep.subr.bf16.mxu0 0
  %486 = vmatpush1.bf16.msra.mxu0 0
  %487 = vmatprep.subr.bf16.mxu0 0
  %488 = vmatpush1.bf16.msra.mxu0 0
  %489 = vmatprep.subr.bf16.mxu0 0
  %490 = vmatpush1.bf16.msra.mxu0 0
  %491 = vmatprep.subr.bf16.mxu0 0
  %492 = vmatpush1.bf16.msra.mxu0 0
  %493 = vmatprep.subr.bf16.mxu0 0
  %494 = vmatpush1.bf16.msra.mxu0 0
  %495 = vmatprep.subr.bf16.mxu0 0
  %496 = vmatpush1.bf16.msra.mxu0 0
  %497 = vmatprep.subr.bf16.mxu0 0
  %498 = vmatpush1.bf16.msra.mxu0 0
  %499 = vmatprep.mubr.bf16.mxu0 0
  %500 = vmatmul.mubr.bf16.gmra.mrb[0].mxu0 %v355
  %v501 = vpop.f32.mrb[0].mxu0
  %v502 = vadd.f32 0.0, %v501
  %v503 = vpop.f32.mrb[0].mxu0
  %v504 = vpop.f32.mrb[0].mxu0
  %v505 = vadd.f32 0.0, %v504
  %v506 = vpop.f32.mrb[0].mxu0
  %507 = vmatprep.mubr.bf16.mxu0 0
  %508 = vmatmul.mubr.bf16.gmra.mrb[0].mxu0 %v356
  %v509 = vpop.f32.mrb[0].mxu0
  %v510 = vadd.f32 0.0, %v509
  %v511 = vpop.f32.mrb[0].mxu0
  %v512 = vpop.f32.mrb[0].mxu0
  %v513 = vadd.f32 0.0, %v512
  %v514 = vpop.f32.mrb[0].mxu0
  %515 = vmatprep.mubr.bf16.mxu0 0
  %516 = vmatmul.mubr.bf16.gmra.mrb[0].mxu0 %v357
  %v517 = vpop.f32.mrb[0].mxu0
  %v518 = vadd.f32 0.0, %v517
  %v519 = vpop.f32.mrb[0].mxu0
  %v520 = vpop.f32.mrb[0].mxu0
  %v521 = vadd.f32 0.0, %v520
  %v522 = vpop.f32.mrb[0].mxu0
  %523 = vmatprep.mubr.bf16.mxu0 0
  %524 = vmatmul.mubr.bf16.gmra.mrb[0].mxu0 %v358
  %v525 = vpop.f32.mrb[0].mxu0
  %v526 = vadd.f32 0.0, %v525
  %v527 = vpop.f32.mrb[0].mxu0
  %v528 = vpop.f32.mrb[0].mxu0
  %v529 = vadd.f32 0.0, %v528
  %v530 = vpop.f32.mrb[0].mxu0
  %531 = vmatprep.mubr.bf16.mxu0 0
  %532 = vmatmul.mubr.bf16.gmra.mrb[0].mxu0 %v359
  %v533 = vpop.f32.mrb[0].mxu0
  %v534 = vadd.f32 0.0, %v533
  %v535 = vpop.f32.mrb[0].mxu0
  %v536 = vpop.f32.mrb[0].mxu0
  %v537 = vadd.f32 0.0, %v536
  %v538 = vpop.f32.mrb[0].mxu0
  %539 = vmatprep.mubr.bf16.mxu0 0
  %540 = vmatmul.mubr.bf16.gmra.mrb[0].mxu0 %v360
  %v541 = vpop.f32.mrb[0].mxu0
  %v542 = vadd.f32 0.0, %v541
  %v543 = vpop.f32.mrb[0].mxu0
  %v544 = vpop.f32.mrb[0].mxu0
  %v545 = vadd.f32 0.0, %v544
  %v546 = vpop.f32.mrb[0].mxu0
  %547 = vmatprep.mubr.bf16.mxu0 0
  %548 = vmatmul.mubr.bf16.gmra.mrb[0].mxu0 %v361
  %v549 = vpop.f32.mrb[0].mxu0
  %v550 = vadd.f32 0.0, %v549
  %v551 = vpop.f32.mrb[0].mxu0
  %v552 = vpop.f32.mrb[0].mxu0
  %v553 = vadd.f32 0.0, %v552
  %v554 = vpop.f32.mrb[0].mxu0
  %555 = vmatprep.mubr.bf16.mxu0 0
  %556 = vmatmul.mubr.bf16.gmra.mrb[0].mxu0 %v362
  %v557 = vpop.f32.mrb[0].mxu0
  %v558 = vadd.f32 0.0, %v557
  %v559 = vpop.f32.mrb[0].mxu0
  %v560 = vpop.f32.mrb[0].mxu0
  %v561 = vadd.f32 0.0, %v560
  %v562 = vpop.f32.mrb[0].mxu0
  %563 = vmatprep.mubr.bf16.mxu0 0
  %564 = vmatmul.mubr.bf16.gmra.mrb[0].mxu0 %v363
  %v565 = vpop.f32.mrb[0].mxu0
  %v566 = vadd.f32 0.0, %v565
  %v567 = vpop.f32.mrb[0].mxu0
  %v568 = vpop.f32.mrb[0].mxu0
  %v569 = vadd.f32 0.0, %v568
  %v570 = vpop.f32.mrb[0].mxu0
  %571 = vmatprep.mubr.bf16.mxu0 0
  %572 = vmatmul.mubr.bf16.gmra.mrb[0].mxu0 %v364
  %v573 = vpop.f32.mrb[0].mxu0
  %v574 = vadd.f32 0.0, %v573
  %v575 = vpop.f32.mrb[0].mxu0
  %v576 = vpop.f32.mrb[0].mxu0
  %v577 = vadd.f32 0.0, %v576
  %v578 = vpop.f32.mrb[0].mxu0
  %579 = vmatprep.mubr.bf16.mxu0 0
  %580 = vmatmul.mubr.bf16.gmra.mrb[0].mxu0 %v365
  %v581 = vpop.f32.mrb[0].mxu0
  %v582 = vadd.f32 0.0, %v581
  %v583 = vpop.f32.mrb[0].mxu0
  %v584 = vpop.f32.mrb[0].mxu0
  %v585 = vadd.f32 0.0, %v584
  %v586 = vpop.f32.mrb[0].mxu0
  %587 = vmatprep.mubr.bf16.mxu0 0
  %588 = vmatmul.mubr.bf16.gmra.mrb[0].mxu0 %v366
  %v589 = vpop.f32.mrb[0].mxu0
  %v590 = vadd.f32 0.0, %v589
  %v591 = vpop.f32.mrb[0].mxu0
  %v592 = vpop.f32.mrb[0].mxu0
  %v593 = vadd.f32 0.0, %v592
  %v594 = vpop.f32.mrb[0].mxu0
  %595 = vmatprep.mubr.bf16.mxu0 0
  %596 = vmatmul.mubr.bf16.gmra.mrb[0].mxu0 %v367
  %v597 = vpop.f32.mrb[0].mxu0
  %v598 = vadd.f32 0.0, %v597
  %v599 = vpop.f32.mrb[0].mxu0
  %v600 = vpop.f32.mrb[0].mxu0
  %v601 = vadd.f32 0.0, %v600
  %v602 = vpop.f32.mrb[0].mxu0
  %603 = vmatprep.mubr.bf16.mxu0 0
  %604 = vmatmul.mubr.bf16.gmra.mrb[0].mxu0 %v368
  %v605 = vpop.f32.mrb[0].mxu0
  %v606 = vadd.f32 0.0, %v605
  %v607 = vpop.f32.mrb[0].mxu0
  %v608 = vpop.f32.mrb[0].mxu0
  %v609 = vadd.f32 0.0, %v608
  %v610 = vpop.f32.mrb[0].mxu0
  %611 = vmatprep.mubr.bf16.mxu0 0
  %612 = vmatmul.mubr.bf16.gmra.mrb[0].mxu0 %v369
  %v613 = vpop.f32.mrb[0].mxu0
  %v614 = vadd.f32 0.0, %v613
  %v615 = vpop.f32.mrb[0].mxu0
  %v616 = vpop.f32.mrb[0].mxu0
  %v617 = vadd.f32 0.0, %v616
  %v618 = vpop.f32.mrb[0].mxu0
  %619 = vmatprep.mubr.bf16.mxu0 0
  %620 = vmatmul.mubr.bf16.gmra.mrb[0].mxu0 %v370
  %v621 = vpop.f32.mrb[0].mxu0
  %v622 = vadd.f32 0.0, %v621
  %v623 = vpop.f32.mrb[0].mxu0
  %v624 = vpop.f32.mrb[0].mxu0
  %v625 = vadd.f32 0.0, %v624
  %v626 = vpop.f32.mrb[0].mxu0
  %627 = vmatprep.mubr.bf16.mxu0 0
  %628 = vmatmul.mubr.bf16.gmra.mrb[0].mxu0 %v371
  %v629 = vpop.f32.mrb[0].mxu0
  %v630 = vadd.f32 0.0, %v629
  %v631 = vpop.f32.mrb[0].mxu0
  %v632 = vpop.f32.mrb[0].mxu0
  %v633 = vadd.f32 0.0, %v632
  %v634 = vpop.f32.mrb[0].mxu0
  %635 = vmatprep.mubr.bf16.mxu0 0
  %636 = vmatmul.mubr.bf16.gmra.mrb[0].mxu0 %v372
  %v637 = vpop.f32.mrb[0].mxu0
  %v638 = vadd.f32 0.0, %v637
  %v639 = vpop.f32.mrb[0].mxu0
  %v640 = vpop.f32.mrb[0].mxu0
  %v641 = vadd.f32 0.0, %v640
  %v642 = vpop.f32.mrb[0].mxu0
  %643 = vmatprep.mubr.bf16.mxu0 0
  %644 = vmatmul.mubr.bf16.gmra.mrb[0].mxu0 %v373
  %v645 = vpop.f32.mrb[0].mxu0
  %v646 = vadd.f32 0.0, %v645
  %v647 = vpop.f32.mrb[0].mxu0
  %v648 = vpop.f32.mrb[0].mxu0
  %v649 = vadd.f32 0.0, %v648
  %v650 = vpop.f32.mrb[0].mxu0
  %651 = vmatprep.mubr.bf16.mxu0 0
  %652 = vmatmul.mubr.bf16.gmra.mrb[0].mxu0 %v374
  %v653 = vpop.f32.mrb[0].mxu0
  %v654 = vadd.f32 0.0, %v653
  %v655 = vpop.f32.mrb[0].mxu0
  %v656 = vpop.f32.mrb[0].mxu0
  %v657 = vadd.f32 0.0, %v656
  %v658 = vpop.f32.mrb[0].mxu0
  %659 = vmatprep.mubr.bf16.mxu0 0
  %660 = vmatmul.mubr.bf16.gmra.mrb[0].mxu0 %v375
  %v661 = vpop.f32.mrb[0].mxu0
  %v662 = vadd.f32 0.0, %v661
  %v663 = vpop.f32.mrb[0].mxu0
  %v664 = vpop.f32.mrb[0].mxu0
  %v665 = vadd.f32 0.0, %v664
  %v666 = vpop.f32.mrb[0].mxu0
  %667 = vmatprep.mubr.bf16.mxu0 0
  %668 = vmatmul.mubr.bf16.gmra.mrb[0].mxu0 %v376
  %v669 = vpop.f32.mrb[0].mxu0
  %v670 = vadd.f32 0.0, %v669
  %v671 = vpop.f32.mrb[0].mxu0
  %v672 = vpop.f32.mrb[0].mxu0
  %v673 = vadd.f32 0.0, %v672
  %v674 = vpop.f32.mrb[0].mxu0
  %675 = vmatprep.mubr.bf16.mxu0 0
  %676 = vmatmul.mubr.bf16.gmra.mrb[0].mxu0 %v377
  %v677 = vpop.f32.mrb[0].mxu0
  %v678 = vadd.f32 0.0, %v677
  %v679 = vpop.f32.mrb[0].mxu0
  %v680 = vpop.f32.mrb[0].mxu0
  %v681 = vadd.f32 0.0, %v680
  %v682 = vpop.f32.mrb[0].mxu0
  %683 = vmatprep.mubr.bf16.mxu0 0
  %684 = vmatmul.mubr.bf16.gmra.mrb[0].mxu0 %v378
  %v685 = vpop.f32.mrb[0].mxu0
  %v686 = vadd.f32 0.0, %v685
  %v687 = vpop.f32.mrb[0].mxu0
  %v688 = vpop.f32.mrb[0].mxu0
  %v689 = vadd.f32 0.0, %v688
  %v690 = vpop.f32.mrb[0].mxu0
  %691 = vmatprep.mubr.bf16.mxu0 0
  %692 = vmatmul.mubr.bf16.gmra.mrb[0].mxu0 %v379
  %v693 = vpop.f32.mrb[0].mxu0
  %v694 = vadd.f32 0.0, %v693
  %v695 = vpop.f32.mrb[0].mxu0
  %v696 = vpop.f32.mrb[0].mxu0
  %v697 = vadd.f32 0.0, %v696
  %v698 = vpop.f32.mrb[0].mxu0
  %699 = vmatprep.mubr.bf16.mxu0 0
  %700 = vmatmul.mubr.bf16.gmra.mrb[0].mxu0 %v380
  %v701 = vpop.f32.mrb[0].mxu0
  %v702 = vadd.f32 0.0, %v701
  %v703 = vpop.f32.mrb[0].mxu0
  %v704 = vpop.f32.mrb[0].mxu0
  %v705 = vadd.f32 0.0, %v704
  %v706 = vpop.f32.mrb[0].mxu0
  %707 = vmatprep.mubr.bf16.mxu0 0
  %708 = vmatmul.mubr.bf16.gmra.mrb[0].mxu0 %v381
  %v709 = vpop.f32.mrb[0].mxu0
  %v710 = vadd.f32 0.0, %v709
  %v711 = vpop.f32.mrb[0].mxu0
  %v712 = vpop.f32.mrb[0].mxu0
  %v713 = vadd.f32 0.0, %v712
  %v714 = vpop.f32.mrb[0].mxu0
  %715 = vmatprep.mubr.bf16.mxu0 0
  %716 = vmatmul.mubr.bf16.gmra.mrb[0].mxu0 %v382
  %v717 = vpop.f32.mrb[0].mxu0
  %v718 = vadd.f32 0.0, %v717
  %v719 = vpop.f32.mrb[0].mxu0
  %v720 = vpop.f32.mrb[0].mxu0
  %v721 = vadd.f32 0.0, %v720
  %v722 = vpop.f32.mrb[0].mxu0
  %723 = vmatprep.mubr.bf16.mxu0 0
  %724 = vmatmul.mubr.bf16.gmra.mrb[0].mxu0 %v383
  %v725 = vpop.f32.mrb[0].mxu0
  %v726 = vadd.f32 0.0, %v725
  %v727 = vpop.f32.mrb[0].mxu0
  %v728 = vpop.f32.mrb[0].mxu0
  %v729 = vadd.f32 0.0, %v728
  %v730 = vpop.f32.mrb[0].mxu0
  %731 = vmatprep.mubr.bf16.mxu0 0
  %732 = vmatmul.mubr.bf16.gmra.mrb[0].mxu0 %v384
  %v733 = vpop.f32.mrb[0].mxu0
  %v734 = vadd.f32 0.0, %v733
  %v735 = vpop.f32.mrb[0].mxu0
  %v736 = vpop.f32.mrb[0].mxu0
  %v737 = vadd.f32 0.0, %v736
  %v738 = vpop.f32.mrb[0].mxu0
  %739 = vmatprep.mubr.bf16.mxu0 0
  %740 = vmatmul.mubr.bf16.gmra.mrb[0].mxu0 %v385
  %v741 = vpop.f32.mrb[0].mxu0
  %v742 = vadd.f32 0.0, %v741
  %v743 = vpop.f32.mrb[0].mxu0
  %v744 = vpop.f32.mrb[0].mxu0
  %v745 = vadd.f32 0.0, %v744
  %v746 = vpop.f32.mrb[0].mxu0
  %747 = vmatprep.mubr.bf16.mxu0 0
  %748 = vmatmul.mubr.bf16.gmra.mrb[0].mxu0 %v386
  %v749 = vpop.f32.mrb[0].mxu0
  %v750 = vadd.f32 0.0, %v749
  %v751 = vpop.f32.mrb[0].mxu0
  %v752 = vpop.f32.mrb[0].mxu0
  %v753 = vadd.f32 0.0, %v752
  %v754 = vpop.f32.mrb[0].mxu0
  %755 = vdwg.mxu0
  %v756 = vadd.f32 %v83, %v502
  %v757 = vadd.f32 %v84, %v505
  %v758 = vadd.f32 %v85, %v510
  %v759 = vadd.f32 %v86, %v513
  %v760 = vadd.f32 %v87, %v518
  %v761 = vadd.f32 %v88, %v521
  %v762 = vadd.f32 %v89, %v526
  %v763 = vadd.f32 %v90, %v529
  %v764 = vadd.f32 %v91, %v534
  %v765 = vadd.f32 %v92, %v537
  %v766 = vadd.f32 %v93, %v542
  %v767 = vadd.f32 %v94, %v545
  %v768 = vadd.f32 %v95, %v550
  %v769 = vadd.f32 %v96, %v553
  %v770 = vadd.f32 %v97, %v558
  %v771 = vadd.f32 %v98, %v561
  %v772 = vadd.f32 %v99, %v566
  %v773 = vadd.f32 %v100, %v569
  %v774 = vadd.f32 %v101, %v574
  %v775 = vadd.f32 %v102, %v577
  %v776 = vadd.f32 %v103, %v582
  %v777 = vadd.f32 %v104, %v585
  %v778 = vadd.f32 %v105, %v590
  %v779 = vadd.f32 %v106, %v593
  %v780 = vadd.f32 %v107, %v598
  %v781 = vadd.f32 %v108, %v601
  %v782 = vadd.f32 %v109, %v606
  %v783 = vadd.f32 %v110, %v609
  %v784 = vadd.f32 %v111, %v614
  %v785 = vadd.f32 %v112, %v617
  %v786 = vadd.f32 %v113, %v622
  %v787 = vadd.f32 %v114, %v625
  %v788 = vadd.f32 %v115, %v630
  %v789 = vadd.f32 %v116, %v633
  %v790 = vadd.f32 %v117, %v638
  %v791 = vadd.f32 %v118, %v641
  %v792 = vadd.f32 %v119, %v646
  %v793 = vadd.f32 %v120, %v649
  %v794 = vadd.f32 %v121, %v654
  %v795 = vadd.f32 %v122, %v657
  %v796 = vadd.f32 %v123, %v662
  %v797 = vadd.f32 %v124, %v665
  %v798 = vadd.f32 %v125, %v670
  %v799 = vadd.f32 %v126, %v673
  %v800 = vadd.f32 %v127, %v678
  %v801 = vadd.f32 %v128, %v681
  %v802 = vadd.f32 %v129, %v686
  %v803 = vadd.f32 %v130, %v689
  %v804 = vadd.f32 %v131, %v694
  %v805 = vadd.f32 %v132, %v697
  %v806 = vadd.f32 %v133, %v702
  %v807 = vadd.f32 %v134, %v705
  %v808 = vadd.f32 %v135, %v710
  %v809 = vadd.f32 %v136, %v713
  %v810 = vadd.f32 %v137, %v718
  %v811 = vadd.f32 %v138, %v721
  %v812 = vadd.f32 %v139, %v726
  %v813 = vadd.f32 %v140, %v729
  %v814 = vadd.f32 %v141, %v734
  %v815 = vadd.f32 %v142, %v737
  %v816 = vadd.f32 %v143, %v742
  %v817 = vadd.f32 %v144, %v745
  %v818 = vadd.f32 %v145, %v750
  %v819 = vadd.f32 %v146, %v753
  %820 = vst [vmem:[#allocation2] sm:$0xff] %v756
  %821 = vst [vmem:[#allocation2 + $0x8] sm:$0xff] %v757
  %822 = vst [vmem:[#allocation2 + $0x10] sm:$0xff] %v758
  %823 = vst [vmem:[#allocation2 + $0x18] sm:$0xff] %v759
  %824 = vst [vmem:[#allocation2 + $0x20] sm:$0xff] %v760
  %825 = vst [vmem:[#allocation2 + $0x28] sm:$0xff] %v761
  %826 = vst [vmem:[#allocation2 + $0x30] sm:$0xff] %v762
  %827 = vst [vmem:[#allocation2 + $0x38] sm:$0xff] %v763
  %828 = vst [vmem:[#allocation2 + $0x40] sm:$0xff] %v764
  %829 = vst [vmem:[#allocation2 + $0x48] sm:$0xff] %v765
  %830 = vst [vmem:[#allocation2 + $0x50] sm:$0xff] %v766
  %831 = vst [vmem:[#allocation2 + $0x58] sm:$0xff] %v767
  %832 = vst [vmem:[#allocation2 + $0x60] sm:$0xff] %v768
  %833 = vst [vmem:[#allocation2 + $0x68] sm:$0xff] %v769
  %834 = vst [vmem:[#allocation2 + $0x70] sm:$0xff] %v770
  %835 = vst [vmem:[#allocation2 + $0x78] sm:$0xff] %v771
  %836 = vst [vmem:[#allocation2 + $0x80] sm:$0xff] %v772
  %837 = vst [vmem:[#allocation2 + $0x88] sm:$0xff] %v773
  %838 = vst [vmem:[#allocation2 + $0x90] sm:$0xff] %v774
  %839 = vst [vmem:[#allocation2 + $0x98] sm:$0xff] %v775
  %840 = vst [vmem:[#allocation2 + $0xa0] sm:$0xff] %v776
  %841 = vst [vmem:[#allocation2 + $0xa8] sm:$0xff] %v777
  %842 = vst [vmem:[#allocation2 + $0xb0] sm:$0xff] %v778
  %843 = vst [vmem:[#allocation2 + $0xb8] sm:$0xff] %v779
  %844 = vst [vmem:[#allocation2 + $0xc0] sm:$0xff] %v780
  %845 = vst [vmem:[#allocation2 + $0xc8] sm:$0xff] %v781
  %846 = vst [vmem:[#allocation2 + $0xd0] sm:$0xff] %v782
  %847 = vst [vmem:[#allocation2 + $0xd8] sm:$0xff] %v783
  %848 = vst [vmem:[#allocation2 + $0xe0] sm:$0xff] %v784
  %849 = vst [vmem:[#allocation2 + $0xe8] sm:$0xff] %v785
  %850 = vst [vmem:[#allocation2 + $0xf0] sm:$0xff] %v786
  %851 = vst [vmem:[#allocation2 + $0xf8] sm:$0xff] %v787
  %852 = vst [vmem:[#allocation2 + $0x100] sm:$0xff] %v788
  %853 = vst [vmem:[#allocation2 + $0x108] sm:$0xff] %v789
  %854 = vst [vmem:[#allocation2 + $0x110] sm:$0xff] %v790
  %855 = vst [vmem:[#allocation2 + $0x118] sm:$0xff] %v791
  %856 = vst [vmem:[#allocation2 + $0x120] sm:$0xff] %v792
  %857 = vst [vmem:[#allocation2 + $0x128] sm:$0xff] %v793
  %858 = vst [vmem:[#allocation2 + $0x130] sm:$0xff] %v794
  %859 = vst [vmem:[#allocation2 + $0x138] sm:$0xff] %v795
  %860 = vst [vmem:[#allocation2 + $0x140] sm:$0xff] %v796
  %861 = vst [vmem:[#allocation2 + $0x148] sm:$0xff] %v797
  %862 = vst [vmem:[#allocation2 + $0x150] sm:$0xff] %v798
  %863 = vst [vmem:[#allocation2 + $0x158] sm:$0xff] %v799
  %864 = vst [vmem:[#allocation2 + $0x160] sm:$0xff] %v800
  %865 = vst [vmem:[#allocation2 + $0x168] sm:$0xff] %v801
  %866 = vst [vmem:[#allocation2 + $0x170] sm:$0xff] %v802
  %867 = vst [vmem:[#allocation2 + $0x178] sm:$0xff] %v803
  %868 = vst [vmem:[#allocation2 + $0x180] sm:$0xff] %v804
  %869 = vst [vmem:[#allocation2 + $0x188] sm:$0xff] %v805
  %870 = vst [vmem:[#allocation2 + $0x190] sm:$0xff] %v806
  %871 = vst [vmem:[#allocation2 + $0x198] sm:$0xff] %v807
  %872 = vst [vmem:[#allocation2 + $0x1a0] sm:$0xff] %v808
  %873 = vst [vmem:[#allocation2 + $0x1a8] sm:$0xff] %v809
  %874 = vst [vmem:[#allocation2 + $0x1b0] sm:$0xff] %v810
  %875 = vst [vmem:[#allocation2 + $0x1b8] sm:$0xff] %v811
  %876 = vst [vmem:[#allocation2 + $0x1c0] sm:$0xff] %v812
  %877 = vst [vmem:[#allocation2 + $0x1c8] sm:$0xff] %v813
  %878 = vst [vmem:[#allocation2 + $0x1d0] sm:$0xff] %v814
  %879 = vst [vmem:[#allocation2 + $0x1d8] sm:$0xff] %v815
  %880 = vst [vmem:[#allocation2 + $0x1e0] sm:$0xff] %v816
  %881 = vst [vmem:[#allocation2 + $0x1e8] sm:$0xff] %v817
  %882 = vst [vmem:[#allocation2 + $0x1f0] sm:$0xff] %v818
  %883 = vst [vmem:[#allocation2 + $0x1f8] sm:$0xff] %v819
  // Predicated region
  $region18: #{vae_forward.26} parent=0 // pred_check
    %p884 = pneg %p15
  $region19: #{vae_forward.26} parent=0 // pred_check_branch
    %886 = sbr.rel (%p884) target = $region21
  $region20: #{vae_forward.26} parent=0 // pred_region
    %v887 = vld [vmem:[#allocation2] sm:$0xff]
    %v888 = vld [vmem:[#allocation2 + $0x8] sm:$0xff]
    %v889 = vld [vmem:[#allocation2 + $0x10] sm:$0xff]
    %v890 = vld [vmem:[#allocation2 + $0x18] sm:$0xff]
    %v891 = vld [vmem:[#allocation2 + $0x20] sm:$0xff]
    %v892 = vld [vmem:[#allocation2 + $0x28] sm:$0xff]
    %v893 = vld [vmem:[#allocation2 + $0x30] sm:$0xff]
    %v894 = vld [vmem:[#allocation2 + $0x38] sm:$0xff]
    %v895 = vld [vmem:[#allocation2 + $0x40] sm:$0xff]
    %v896 = vld [vmem:[#allocation2 + $0x48] sm:$0xff]
    %v897 = vld [vmem:[#allocation2 + $0x50] sm:$0xff]
    %v898 = vld [vmem:[#allocation2 + $0x58] sm:$0xff]
    %v899 = vld [vmem:[#allocation2 + $0x60] sm:$0xff]
    %v900 = vld [vmem:[#allocation2 + $0x68] sm:$0xff]
    %v901 = vld [vmem:[#allocation2 + $0x70] sm:$0xff]
    %v902 = vld [vmem:[#allocation2 + $0x78] sm:$0xff]
    %v903 = vld [vmem:[#allocation2 + $0x80] sm:$0xff]
    %v904 = vld [vmem:[#allocation2 + $0x88] sm:$0xff]
    %v905 = vld [vmem:[#allocation2 + $0x90] sm:$0xff]
    %v906 = vld [vmem:[#allocation2 + $0x98] sm:$0xff]
    %v907 = vld [vmem:[#allocation2 + $0xa0] sm:$0xff]
    %v908 = vld [vmem:[#allocation2 + $0xa8] sm:$0xff]
    %v909 = vld [vmem:[#allocation2 + $0xb0] sm:$0xff]
    %v910 = vld [vmem:[#allocation2 + $0xb8] sm:$0xff]
    %v911 = vld [vmem:[#allocation2 + $0xc0] sm:$0xff]
    %v912 = vld [vmem:[#allocation2 + $0xc8] sm:$0xff]
    %v913 = vld [vmem:[#allocation2 + $0xd0] sm:$0xff]
    %v914 = vld [vmem:[#allocation2 + $0xd8] sm:$0xff]
    %v915 = vld [vmem:[#allocation2 + $0xe0] sm:$0xff]
    %v916 = vld [vmem:[#allocation2 + $0xe8] sm:$0xff]
    %v917 = vld [vmem:[#allocation2 + $0xf0] sm:$0xff]
    %v918 = vld [vmem:[#allocation2 + $0xf8] sm:$0xff]
    %v919 = vld [vmem:[#allocation2 + $0x100] sm:$0xff]
    %v920 = vld [vmem:[#allocation2 + $0x108] sm:$0xff]
    %v921 = vld [vmem:[#allocation2 + $0x110] sm:$0xff]
    %v922 = vld [vmem:[#allocation2 + $0x118] sm:$0xff]
    %v923 = vld [vmem:[#allocation2 + $0x120] sm:$0xff]
    %v924 = vld [vmem:[#allocation2 + $0x128] sm:$0xff]
    %v925 = vld [vmem:[#allocation2 + $0x130] sm:$0xff]
    %v926 = vld [vmem:[#allocation2 + $0x138] sm:$0xff]
    %v927 = vld [vmem:[#allocation2 + $0x140] sm:$0xff]
    %v928 = vld [vmem:[#allocation2 + $0x148] sm:$0xff]
    %v929 = vld [vmem:[#allocation2 + $0x150] sm:$0xff]
    %v930 = vld [vmem:[#allocation2 + $0x158] sm:$0xff]
    %v931 = vld [vmem:[#allocation2 + $0x160] sm:$0xff]
    %v932 = vld [vmem:[#allocation2 + $0x168] sm:$0xff]
    %v933 = vld [vmem:[#allocation2 + $0x170] sm:$0xff]
    %v934 = vld [vmem:[#allocation2 + $0x178] sm:$0xff]
    %v935 = vld [vmem:[#allocation2 + $0x180] sm:$0xff]
    %v936 = vld [vmem:[#allocation2 + $0x188] sm:$0xff]
    %v937 = vld [vmem:[#allocation2 + $0x190] sm:$0xff]
    %v938 = vld [vmem:[#allocation2 + $0x198] sm:$0xff]
    %v939 = vld [vmem:[#allocation2 + $0x1a0] sm:$0xff]
    %v940 = vld [vmem:[#allocation2 + $0x1a8] sm:$0xff]
    %v941 = vld [vmem:[#allocation2 + $0x1b0] sm:$0xff]
    %v942 = vld [vmem:[#allocation2 + $0x1b8] sm:$0xff]
    %v943 = vld [vmem:[#allocation2 + $0x1c0] sm:$0xff]
    %v944 = vld [vmem:[#allocation2 + $0x1c8] sm:$0xff]
    %v945 = vld [vmem:[#allocation2 + $0x1d0] sm:$0xff]
    %v946 = vld [vmem:[#allocation2 + $0x1d8] sm:$0xff]
    %v947 = vld [vmem:[#allocation2 + $0x1e0] sm:$0xff]
    %v948 = vld [vmem:[#allocation2 + $0x1e8] sm:$0xff]
    %v949 = vld [vmem:[#allocation2 + $0x1f0] sm:$0xff]
    %v950 = vld [vmem:[#allocation2 + $0x1f8] sm:$0xff]
    %v951 = vld [vmem:[%s2] sm:$0x1]
    %v953 = vlaneseq
    %v954 = vshrl.u32 %v953, 7
    %v955 = vsub.s32 0, %v954
    %v956 = vrot.slane %v951, %v955
    %v958 = vadd.f32 %v887, %v956
    %v959 = vadd.f32 %v888, %v956
    %v960 = vadd.f32 %v889, %v956
    %v961 = vadd.f32 %v890, %v956
    %v962 = vadd.f32 %v891, %v956
    %v963 = vadd.f32 %v892, %v956
    %v964 = vadd.f32 %v893, %v956
    %v965 = vadd.f32 %v894, %v956
    %v966 = vadd.f32 %v895, %v956
    %v967 = vadd.f32 %v896, %v956
    %v968 = vadd.f32 %v897, %v956
    %v969 = vadd.f32 %v898, %v956
    %v970 = vadd.f32 %v899, %v956
    %v971 = vadd.f32 %v900, %v956
    %v972 = vadd.f32 %v901, %v956
    %v973 = vadd.f32 %v902, %v956
    %v974 = vadd.f32 %v903, %v956
    %v975 = vadd.f32 %v904, %v956
    %v976 = vadd.f32 %v905, %v956
    %v977 = vadd.f32 %v906, %v956
    %v978 = vadd.f32 %v907, %v956
    %v979 = vadd.f32 %v908, %v956
    %v980 = vadd.f32 %v909, %v956
    %v981 = vadd.f32 %v910, %v956
    %v982 = vadd.f32 %v911, %v956
    %v983 = vadd.f32 %v912, %v956
    %v984 = vadd.f32 %v913, %v956
    %v985 = vadd.f32 %v914, %v956
    %v986 = vadd.f32 %v915, %v956
    %v987 = vadd.f32 %v916, %v956
    %v988 = vadd.f32 %v917, %v956
    %v989 = vadd.f32 %v918, %v956
    %v990 = vadd.f32 %v919, %v956
    %v991 = vadd.f32 %v920, %v956
    %v992 = vadd.f32 %v921, %v956
    %v993 = vadd.f32 %v922, %v956
    %v994 = vadd.f32 %v923, %v956
    %v995 = vadd.f32 %v924, %v956
    %v996 = vadd.f32 %v925, %v956
    %v997 = vadd.f32 %v926, %v956
    %v998 = vadd.f32 %v927, %v956
    %v999 = vadd.f32 %v928, %v956
    %v1000 = vadd.f32 %v929, %v956
    %v1001 = vadd.f32 %v930, %v956
    %v1002 = vadd.f32 %v931, %v956
    %v1003 = vadd.f32 %v932, %v956
    %v1004 = vadd.f32 %v933, %v956
    %v1005 = vadd.f32 %v934, %v956
    %v1006 = vadd.f32 %v935, %v956
    %v1007 = vadd.f32 %v936, %v956
    %v1008 = vadd.f32 %v937, %v956
    %v1009 = vadd.f32 %v938, %v956
    %v1010 = vadd.f32 %v939, %v956
    %v1011 = vadd.f32 %v940, %v956
    %v1012 = vadd.f32 %v941, %v956
    %v1013 = vadd.f32 %v942, %v956
    %v1014 = vadd.f32 %v943, %v956
    %v1015 = vadd.f32 %v944, %v956
    %v1016 = vadd.f32 %v945, %v956
    %v1017 = vadd.f32 %v946, %v956
    %v1018 = vadd.f32 %v947, %v956
    %v1019 = vadd.f32 %v948, %v956
    %v1020 = vadd.f32 %v949, %v956
    %v1021 = vadd.f32 %v950, %v956
    %1022 = vst [vmem:[%s3] sm:$0xff] %v958
    %1023 = vst [vmem:[%s3 + $0x8] sm:$0xff] %v959
    %1024 = vst [vmem:[%s3 + $0x10] sm:$0xff] %v960
    %1025 = vst [vmem:[%s3 + $0x18] sm:$0xff] %v961
    %1026 = vst [vmem:[%s3 + $0x20] sm:$0xff] %v962
    %1027 = vst [vmem:[%s3 + $0x28] sm:$0xff] %v963
    %1028 = vst [vmem:[%s3 + $0x30] sm:$0xff] %v964
    %1029 = vst [vmem:[%s3 + $0x38] sm:$0xff] %v965
    %1030 = vst [vmem:[%s3 + $0x40] sm:$0xff] %v966
    %1031 = vst [vmem:[%s3 + $0x48] sm:$0xff] %v967
    %1032 = vst [vmem:[%s3 + $0x50] sm:$0xff] %v968
    %1033 = vst [vmem:[%s3 + $0x58] sm:$0xff] %v969
    %1034 = vst [vmem:[%s3 + $0x60] sm:$0xff] %v970
    %1035 = vst [vmem:[%s3 + $0x68] sm:$0xff] %v971
    %1036 = vst [vmem:[%s3 + $0x70] sm:$0xff] %v972
    %1037 = vst [vmem:[%s3 + $0x78] sm:$0xff] %v973
    %1038 = vst [vmem:[%s3 + $0x80] sm:$0xff] %v974
    %1039 = vst [vmem:[%s3 + $0x88] sm:$0xff] %v975
    %1040 = vst [vmem:[%s3 + $0x90] sm:$0xff] %v976
    %1041 = vst [vmem:[%s3 + $0x98] sm:$0xff] %v977
    %1042 = vst [vmem:[%s3 + $0xa0] sm:$0xff] %v978
    %1043 = vst [vmem:[%s3 + $0xa8] sm:$0xff] %v979
    %1044 = vst [vmem:[%s3 + $0xb0] sm:$0xff] %v980
    %1045 = vst [vmem:[%s3 + $0xb8] sm:$0xff] %v981
    %1046 = vst [vmem:[%s3 + $0xc0] sm:$0xff] %v982
    %1047 = vst [vmem:[%s3 + $0xc8] sm:$0xff] %v983
    %1048 = vst [vmem:[%s3 + $0xd0] sm:$0xff] %v984
    %1049 = vst [vmem:[%s3 + $0xd8] sm:$0xff] %v985
    %1050 = vst [vmem:[%s3 + $0xe0] sm:$0xff] %v986
    %1051 = vst [vmem:[%s3 + $0xe8] sm:$0xff] %v987
    %1052 = vst [vmem:[%s3 + $0xf0] sm:$0xff] %v988
    %1053 = vst [vmem:[%s3 + $0xf8] sm:$0xff] %v989
    %1054 = vst [vmem:[%s3 + $0x100] sm:$0xff] %v990
    %1055 = vst [vmem:[%s3 + $0x108] sm:$0xff] %v991
    %1056 = vst [vmem:[%s3 + $0x110] sm:$0xff] %v992
    %1057 = vst [vmem:[%s3 + $0x118] sm:$0xff] %v993
    %1058 = vst [vmem:[%s3 + $0x120] sm:$0xff] %v994
    %1059 = vst [vmem:[%s3 + $0x128] sm:$0xff] %v995
    %1060 = vst [vmem:[%s3 + $0x130] sm:$0xff] %v996
    %1061 = vst [vmem:[%s3 + $0x138] sm:$0xff] %v997
    %1062 = vst [vmem:[%s3 + $0x140] sm:$0xff] %v998
    %1063 = vst [vmem:[%s3 + $0x148] sm:$0xff] %v999
    %1064 = vst [vmem:[%s3 + $0x150] sm:$0xff] %v1000
    %1065 = vst [vmem:[%s3 + $0x158] sm:$0xff] %v1001
    %1066 = vst [vmem:[%s3 + $0x160] sm:$0xff] %v1002
    %1067 = vst [vmem:[%s3 + $0x168] sm:$0xff] %v1003
    %1068 = vst [vmem:[%s3 + $0x170] sm:$0xff] %v1004
    %1069 = vst [vmem:[%s3 + $0x178] sm:$0xff] %v1005
    %1070 = vst [vmem:[%s3 + $0x180] sm:$0xff] %v1006
    %1071 = vst [vmem:[%s3 + $0x188] sm:$0xff] %v1007
    %1072 = vst [vmem:[%s3 + $0x190] sm:$0xff] %v1008
    %1073 = vst [vmem:[%s3 + $0x198] sm:$0xff] %v1009
    %1074 = vst [vmem:[%s3 + $0x1a0] sm:$0xff] %v1010
    %1075 = vst [vmem:[%s3 + $0x1a8] sm:$0xff] %v1011
    %1076 = vst [vmem:[%s3 + $0x1b0] sm:$0xff] %v1012
    %1077 = vst [vmem:[%s3 + $0x1b8] sm:$0xff] %v1013
    %1078 = vst [vmem:[%s3 + $0x1c0] sm:$0xff] %v1014
    %1079 = vst [vmem:[%s3 + $0x1c8] sm:$0xff] %v1015
    %1080 = vst [vmem:[%s3 + $0x1d0] sm:$0xff] %v1016
    %1081 = vst [vmem:[%s3 + $0x1d8] sm:$0xff] %v1017
    %1082 = vst [vmem:[%s3 + $0x1e0] sm:$0xff] %v1018
    %1083 = vst [vmem:[%s3 + $0x1e8] sm:$0xff] %v1019
    %1084 = vst [vmem:[%s3 + $0x1f0] sm:$0xff] %v1020
    %1085 = vst [vmem:[%s3 + $0x1f8] sm:$0xff] %v1021
  $region21: #{vae_forward.26} parent=0 // pred_fallthru
    _
  // Predicated region
  $region22: #{vae_forward.26} parent=0 // pred_check
    _
  $region23: #{vae_forward.26} parent=0 // pred_check_branch
    %1087 = sbr.rel (0) target = $region25
  $region24: #{vae_forward.26} parent=0 // pred_region
    _
  $region25: #{vae_forward.26} parent=0 // pred_fallthru
    _
  // Predicated region
  $region26: #{vae_forward.26} parent=0 // pred_check
    _
  $region27: #{vae_forward.26} parent=0 // pred_check_branch
    %1089 = sbr.rel (0) target = $region29
  $region28: #{vae_forward.26} parent=0 // pred_region
    _
  $region29: #{vae_forward.26} parent=0 // pred_fallthru
    _

// kernel: vae_forward.27
$region0: #{vae_forward.27}
  #allocation0 [shape = 'u32[]', space=smem, size = 0x4, offset = 0x4, fixed_abs, tag = 'smem constant byte address 0x4 - core index']
  #allocation1 [shape = 'u32[144,128]{1,0:T(1,128)}', space=vmem, size = 0x12000, scoped, tag = 'internal scratch']
  %s0 = inlined_call_operand.vmem [shape: f32[512,128], index: 0, kind: input, shape index: {}]
  %s1 = inlined_call_operand.vmem [shape: f32[1,128], index: 1, kind: input, shape index: {}]
  %s2 = inlined_call_operand.vmem [shape: f32[512,128], index: 2, kind: output, shape index: {}]
  %s3 = sld [smem:[#allocation0]]
  $region18: #{vae_forward.27} parent=0
    _
  %s5 = ssub.s32 1, %s3
  %s6 = scalar_select 0, %s5, %s3
  // Predicated region
  $region2: #{vae_forward.27} parent=0 // pred_check
    _
  $region3: #{vae_forward.27} parent=0 // pred_check_branch
    %8 = sbr.rel (0) target = $region5
  $region4: #{vae_forward.27} parent=0 // pred_region
    _
  $region5: #{vae_forward.27} parent=0 // pred_fallthru
    _
  // Predicated region
  $region6: #{vae_forward.27} parent=0 // pred_check
    _
  $region7: #{vae_forward.27} parent=0 // pred_check_branch
    %10 = sbr.rel (0) target = $region9
  $region8: #{vae_forward.27} parent=0 // pred_region
    _
  $region9: #{vae_forward.27} parent=0 // pred_fallthru
    _
  %v11 = vld [vmem:[%s0] sm:$0xff]
  %v12 = vld [vmem:[%s0 + $0x8] sm:$0xff]
  %v13 = vld [vmem:[%s0 + $0x10] sm:$0xff]
  %v14 = vld [vmem:[%s0 + $0x18] sm:$0xff]
  %v15 = vld [vmem:[%s0 + $0x20] sm:$0xff]
  %v16 = vld [vmem:[%s0 + $0x28] sm:$0xff]
  %v17 = vld [vmem:[%s0 + $0x30] sm:$0xff]
  %v18 = vld [vmem:[%s0 + $0x38] sm:$0xff]
  %v19 = vld [vmem:[%s0 + $0x40] sm:$0xff]
  %v20 = vld [vmem:[%s0 + $0x48] sm:$0xff]
  %v21 = vld [vmem:[%s0 + $0x50] sm:$0xff]
  %v22 = vld [vmem:[%s0 + $0x58] sm:$0xff]
  %v23 = vld [vmem:[%s0 + $0x60] sm:$0xff]
  %v24 = vld [vmem:[%s0 + $0x68] sm:$0xff]
  %v25 = vld [vmem:[%s0 + $0x70] sm:$0xff]
  %v26 = vld [vmem:[%s0 + $0x78] sm:$0xff]
  %v27 = vld [vmem:[%s0 + $0x80] sm:$0xff]
  %v28 = vld [vmem:[%s0 + $0x88] sm:$0xff]
  %v29 = vld [vmem:[%s0 + $0x90] sm:$0xff]
  %v30 = vld [vmem:[%s0 + $0x98] sm:$0xff]
  %v31 = vld [vmem:[%s0 + $0xa0] sm:$0xff]
  %v32 = vld [vmem:[%s0 + $0xa8] sm:$0xff]
  %v33 = vld [vmem:[%s0 + $0xb0] sm:$0xff]
  %v34 = vld [vmem:[%s0 + $0xb8] sm:$0xff]
  %v35 = vld [vmem:[%s0 + $0xc0] sm:$0xff]
  %v36 = vld [vmem:[%s0 + $0xc8] sm:$0xff]
  %v37 = vld [vmem:[%s0 + $0xd0] sm:$0xff]
  %v38 = vld [vmem:[%s0 + $0xd8] sm:$0xff]
  %v39 = vld [vmem:[%s0 + $0xe0] sm:$0xff]
  %v40 = vld [vmem:[%s0 + $0xe8] sm:$0xff]
  %v41 = vld [vmem:[%s0 + $0xf0] sm:$0xff]
  %v42 = vld [vmem:[%s0 + $0xf8] sm:$0xff]
  %v43 = vld [vmem:[%s0 + $0x100] sm:$0xff]
  %v44 = vld [vmem:[%s0 + $0x108] sm:$0xff]
  %v45 = vld [vmem:[%s0 + $0x110] sm:$0xff]
  %v46 = vld [vmem:[%s0 + $0x118] sm:$0xff]
  %v47 = vld [vmem:[%s0 + $0x120] sm:$0xff]
  %v48 = vld [vmem:[%s0 + $0x128] sm:$0xff]
  %v49 = vld [vmem:[%s0 + $0x130] sm:$0xff]
  %v50 = vld [vmem:[%s0 + $0x138] sm:$0xff]
  %v51 = vld [vmem:[%s0 + $0x140] sm:$0xff]
  %v52 = vld [vmem:[%s0 + $0x148] sm:$0xff]
  %v53 = vld [vmem:[%s0 + $0x150] sm:$0xff]
  %v54 = vld [vmem:[%s0 + $0x158] sm:$0xff]
  %v55 = vld [vmem:[%s0 + $0x160] sm:$0xff]
  %v56 = vld [vmem:[%s0 + $0x168] sm:$0xff]
  %v57 = vld [vmem:[%s0 + $0x170] sm:$0xff]
  %v58 = vld [vmem:[%s0 + $0x178] sm:$0xff]
  %v59 = vld [vmem:[%s0 + $0x180] sm:$0xff]
  %v60 = vld [vmem:[%s0 + $0x188] sm:$0xff]
  %v61 = vld [vmem:[%s0 + $0x190] sm:$0xff]
  %v62 = vld [vmem:[%s0 + $0x198] sm:$0xff]
  %v63 = vld [vmem:[%s0 + $0x1a0] sm:$0xff]
  %v64 = vld [vmem:[%s0 + $0x1a8] sm:$0xff]
  %v65 = vld [vmem:[%s0 + $0x1b0] sm:$0xff]
  %v66 = vld [vmem:[%s0 + $0x1b8] sm:$0xff]
  %v67 = vld [vmem:[%s0 + $0x1c0] sm:$0xff]
  %v68 = vld [vmem:[%s0 + $0x1c8] sm:$0xff]
  %v69 = vld [vmem:[%s0 + $0x1d0] sm:$0xff]
  %v70 = vld [vmem:[%s0 + $0x1d8] sm:$0xff]
  %v71 = vld [vmem:[%s0 + $0x1e0] sm:$0xff]
  %v72 = vld [vmem:[%s0 + $0x1e8] sm:$0xff]
  %v73 = vld [vmem:[%s0 + $0x1f0] sm:$0xff]
  %v74 = vld [vmem:[%s0 + $0x1f8] sm:$0xff]
  %v75 = vld [vmem:[%s1] sm:$0x1]
  %v77 = vlaneseq
  %v78 = vshrl.u32 %v77, 7
  %v79 = vsub.s32 0, %v78
  %v80 = vrot.slane %v75, %v79
  %v82 = vadd.f32 %v11, %v80
  %v83 = vadd.f32 %v12, %v80
  %v84 = vadd.f32 %v13, %v80
  %v85 = vadd.f32 %v14, %v80
  %v86 = vadd.f32 %v15, %v80
  %v87 = vadd.f32 %v16, %v80
  %v88 = vadd.f32 %v17, %v80
  %v89 = vadd.f32 %v18, %v80
  %v90 = vadd.f32 %v19, %v80
  %v91 = vadd.f32 %v20, %v80
  %v92 = vadd.f32 %v21, %v80
  %v93 = vadd.f32 %v22, %v80
  %v94 = vadd.f32 %v23, %v80
  %v95 = vadd.f32 %v24, %v80
  %v96 = vadd.f32 %v25, %v80
  %v97 = vadd.f32 %v26, %v80
  %v98 = vadd.f32 %v27, %v80
  %v99 = vadd.f32 %v28, %v80
  %v100 = vadd.f32 %v29, %v80
  %v101 = vadd.f32 %v30, %v80
  %v102 = vadd.f32 %v31, %v80
  %v103 = vadd.f32 %v32, %v80
  %v104 = vadd.f32 %v33, %v80
  %v105 = vadd.f32 %v34, %v80
  %v106 = vadd.f32 %v35, %v80
  %v107 = vadd.f32 %v36, %v80
  %v108 = vadd.f32 %v37, %v80
  %v109 = vadd.f32 %v38, %v80
  %v110 = vadd.f32 %v39, %v80
  %v111 = vadd.f32 %v40, %v80
  %v112 = vadd.f32 %v41, %v80
  %v113 = vadd.f32 %v42, %v80
  %v114 = vadd.f32 %v43, %v80
  %v115 = vadd.f32 %v44, %v80
  %v116 = vadd.f32 %v45, %v80
  %v117 = vadd.f32 %v46, %v80
  %v118 = vadd.f32 %v47, %v80
  %v119 = vadd.f32 %v48, %v80
  %v120 = vadd.f32 %v49, %v80
  %v121 = vadd.f32 %v50, %v80
  %v122 = vadd.f32 %v51, %v80
  %v123 = vadd.f32 %v52, %v80
  %v124 = vadd.f32 %v53, %v80
  %v125 = vadd.f32 %v54, %v80
  %v126 = vadd.f32 %v55, %v80
  %v127 = vadd.f32 %v56, %v80
  %v128 = vadd.f32 %v57, %v80
  %v129 = vadd.f32 %v58, %v80
  %v130 = vadd.f32 %v59, %v80
  %v131 = vadd.f32 %v60, %v80
  %v132 = vadd.f32 %v61, %v80
  %v133 = vadd.f32 %v62, %v80
  %v134 = vadd.f32 %v63, %v80
  %v135 = vadd.f32 %v64, %v80
  %v136 = vadd.f32 %v65, %v80
  %v137 = vadd.f32 %v66, %v80
  %v138 = vadd.f32 %v67, %v80
  %v139 = vadd.f32 %v68, %v80
  %v140 = vadd.f32 %v69, %v80
  %v141 = vadd.f32 %v70, %v80
  %v142 = vadd.f32 %v71, %v80
  %v143 = vadd.f32 %v72, %v80
  %v144 = vadd.f32 %v73, %v80
  %v145 = vadd.f32 %v74, %v80
  %v146 = vxor.u32 %v82, 2147483648
  %v147 = vxor.u32 %v83, 2147483648
  %v148 = vxor.u32 %v84, 2147483648
  %v149 = vxor.u32 %v85, 2147483648
  %v150 = vxor.u32 %v86, 2147483648
  %v151 = vxor.u32 %v87, 2147483648
  %v152 = vxor.u32 %v88, 2147483648
  %v153 = vxor.u32 %v89, 2147483648
  %v154 = vxor.u32 %v90, 2147483648
  %v155 = vxor.u32 %v91, 2147483648
  %v156 = vxor.u32 %v92, 2147483648
  %v157 = vxor.u32 %v93, 2147483648
  %v158 = vxor.u32 %v94, 2147483648
  %v159 = vxor.u32 %v95, 2147483648
  %v160 = vxor.u32 %v96, 2147483648
  %v161 = vxor.u32 %v97, 2147483648
  %v162 = vxor.u32 %v98, 2147483648
  %v163 = vxor.u32 %v99, 2147483648
  %v164 = vxor.u32 %v100, 2147483648
  %v165 = vxor.u32 %v101, 2147483648
  %v166 = vxor.u32 %v102, 2147483648
  %v167 = vxor.u32 %v103, 2147483648
  %v168 = vxor.u32 %v104, 2147483648
  %v169 = vxor.u32 %v105, 2147483648
  %v170 = vxor.u32 %v106, 2147483648
  %v171 = vxor.u32 %v107, 2147483648
  %v172 = vxor.u32 %v108, 2147483648
  %v173 = vxor.u32 %v109, 2147483648
  %v174 = vxor.u32 %v110, 2147483648
  %v175 = vxor.u32 %v111, 2147483648
  %v176 = vxor.u32 %v112, 2147483648
  %v177 = vxor.u32 %v113, 2147483648
  %v178 = vxor.u32 %v114, 2147483648
  %v179 = vxor.u32 %v115, 2147483648
  %v180 = vxor.u32 %v116, 2147483648
  %v181 = vxor.u32 %v117, 2147483648
  %v182 = vxor.u32 %v118, 2147483648
  %v183 = vxor.u32 %v119, 2147483648
  %v184 = vxor.u32 %v120, 2147483648
  %v185 = vxor.u32 %v121, 2147483648
  %v186 = vxor.u32 %v122, 2147483648
  %v187 = vxor.u32 %v123, 2147483648
  %v188 = vxor.u32 %v124, 2147483648
  %v189 = vxor.u32 %v125, 2147483648
  %v190 = vxor.u32 %v126, 2147483648
  %v191 = vxor.u32 %v127, 2147483648
  %v192 = vxor.u32 %v128, 2147483648
  %v193 = vxor.u32 %v129, 2147483648
  %v194 = vxor.u32 %v130, 2147483648
  %v195 = vxor.u32 %v131, 2147483648
  %v196 = vxor.u32 %v132, 2147483648
  %v197 = vxor.u32 %v133, 2147483648
  %v198 = vxor.u32 %v134, 2147483648
  %v199 = vxor.u32 %v135, 2147483648
  %v200 = vxor.u32 %v136, 2147483648
  %v201 = vxor.u32 %v137, 2147483648
  %v202 = vxor.u32 %v138, 2147483648
  %v203 = vxor.u32 %v139, 2147483648
  %v204 = vxor.u32 %v140, 2147483648
  %v205 = vxor.u32 %v141, 2147483648
  %v206 = vxor.u32 %v142, 2147483648
  %v207 = vxor.u32 %v143, 2147483648
  %v208 = vxor.u32 %v144, 2147483648
  %v209 = vxor.u32 %v145, 2147483648
  %v210 = vmul.f32 %v146, 1.442695
  %v211 = vpow.pop %v210
  %v212 = vmul.f32 %v147, 1.442695
  %v213 = vpow.pop %v212
  %v214 = vmul.f32 %v148, 1.442695
  %v215 = vpow.pop %v214
  %v216 = vmul.f32 %v149, 1.442695
  %v217 = vpow.pop %v216
  %v218 = vmul.f32 %v150, 1.442695
  %v219 = vpow.pop %v218
  %v220 = vmul.f32 %v151, 1.442695
  %v221 = vpow.pop %v220
  %v222 = vmul.f32 %v152, 1.442695
  %v223 = vpow.pop %v222
  %v224 = vmul.f32 %v153, 1.442695
  %v225 = vpow.pop %v224
  %v226 = vmul.f32 %v154, 1.442695
  %v227 = vpow.pop %v226
  %v228 = vmul.f32 %v155, 1.442695
  %v229 = vpow.pop %v228
  %v230 = vmul.f32 %v156, 1.442695
  %v231 = vpow.pop %v230
  %v232 = vmul.f32 %v157, 1.442695
  %v233 = vpow.pop %v232
  %v234 = vmul.f32 %v158, 1.442695
  %v235 = vpow.pop %v234
  %v236 = vmul.f32 %v159, 1.442695
  %v237 = vpow.pop %v236
  %v238 = vmul.f32 %v160, 1.442695
  %v239 = vpow.pop %v238
  %v240 = vmul.f32 %v161, 1.442695
  %v241 = vpow.pop %v240
  %v242 = vmul.f32 %v162, 1.442695
  %v243 = vpow.pop %v242
  %v244 = vmul.f32 %v163, 1.442695
  %v245 = vpow.pop %v244
  %v246 = vmul.f32 %v164, 1.442695
  %v247 = vpow.pop %v246
  %v248 = vmul.f32 %v165, 1.442695
  %v249 = vpow.pop %v248
  %v250 = vmul.f32 %v166, 1.442695
  %v251 = vpow.pop %v250
  %v252 = vmul.f32 %v167, 1.442695
  %v253 = vpow.pop %v252
  %v254 = vmul.f32 %v168, 1.442695
  %v255 = vpow.pop %v254
  %v256 = vmul.f32 %v169, 1.442695
  %v257 = vpow.pop %v256
  %v258 = vmul.f32 %v170, 1.442695
  %v259 = vpow.pop %v258
  %v260 = vmul.f32 %v171, 1.442695
  %v261 = vpow.pop %v260
  %v262 = vmul.f32 %v172, 1.442695
  %v263 = vpow.pop %v262
  %v264 = vmul.f32 %v173, 1.442695
  %v265 = vpow.pop %v264
  %v266 = vmul.f32 %v174, 1.442695
  %v267 = vpow.pop %v266
  %v268 = vmul.f32 %v175, 1.442695
  %v269 = vpow.pop %v268
  %v270 = vmul.f32 %v176, 1.442695
  %v271 = vpow.pop %v270
  %v272 = vmul.f32 %v177, 1.442695
  %v273 = vpow.pop %v272
  %v274 = vmul.f32 %v178, 1.442695
  %v275 = vpow.pop %v274
  %v276 = vmul.f32 %v179, 1.442695
  %v277 = vpow.pop %v276
  %v278 = vmul.f32 %v180, 1.442695
  %v279 = vpow.pop %v278
  %v280 = vmul.f32 %v181, 1.442695
  %v281 = vpow.pop %v280
  %v282 = vmul.f32 %v182, 1.442695
  %v283 = vpow.pop %v282
  %v284 = vmul.f32 %v183, 1.442695
  %v285 = vpow.pop %v284
  %v286 = vmul.f32 %v184, 1.442695
  %v287 = vpow.pop %v286
  %v288 = vmul.f32 %v185, 1.442695
  %v289 = vpow.pop %v288
  %v290 = vmul.f32 %v186, 1.442695
  %v291 = vpow.pop %v290
  %v292 = vmul.f32 %v187, 1.442695
  %v293 = vpow.pop %v292
  %v294 = vmul.f32 %v188, 1.442695
  %v295 = vpow.pop %v294
  %v296 = vmul.f32 %v189, 1.442695
  %v297 = vpow.pop %v296
  %v298 = vmul.f32 %v190, 1.442695
  %v299 = vpow.pop %v298
  %v300 = vmul.f32 %v191, 1.442695
  %v301 = vpow.pop %v300
  %v302 = vmul.f32 %v192, 1.442695
  %v303 = vpow.pop %v302
  %v304 = vmul.f32 %v193, 1.442695
  %v305 = vpow.pop %v304
  %v306 = vmul.f32 %v194, 1.442695
  %v307 = vpow.pop %v306
  %v308 = vmul.f32 %v195, 1.442695
  %v309 = vpow.pop %v308
  %v310 = vmul.f32 %v196, 1.442695
  %v311 = vpow.pop %v310
  %v312 = vmul.f32 %v197, 1.442695
  %v313 = vpow.pop %v312
  %v314 = vmul.f32 %v198, 1.442695
  %v315 = vpow.pop %v314
  %v316 = vmul.f32 %v199, 1.442695
  %v317 = vpow.pop %v316
  %v318 = vmul.f32 %v200, 1.442695
  %v319 = vpow.pop %v318
  %v320 = vmul.f32 %v201, 1.442695
  %v321 = vpow.pop %v320
  %v322 = vmul.f32 %v202, 1.442695
  %v323 = vpow.pop %v322
  %v324 = vmul.f32 %v203, 1.442695
  %v325 = vpow.pop %v324
  %v326 = vmul.f32 %v204, 1.442695
  %v327 = vpow.pop %v326
  %v328 = vmul.f32 %v205, 1.442695
  %v329 = vpow.pop %v328
  %v330 = vmul.f32 %v206, 1.442695
  %v331 = vpow.pop %v330
  %v332 = vmul.f32 %v207, 1.442695
  %v333 = vpow.pop %v332
  %v334 = vmul.f32 %v208, 1.442695
  %v335 = vpow.pop %v334
  %v336 = vmul.f32 %v209, 1.442695
  %v337 = vpow.pop %v336
  %v338 = vadd.f32 %v211, 1.0
  %v339 = vadd.f32 %v213, 1.0
  %v340 = vadd.f32 %v215, 1.0
  %v341 = vadd.f32 %v217, 1.0
  %v342 = vadd.f32 %v219, 1.0
  %v343 = vadd.f32 %v221, 1.0
  %v344 = vadd.f32 %v223, 1.0
  %v345 = vadd.f32 %v225, 1.0
  %v346 = vadd.f32 %v227, 1.0
  %v347 = vadd.f32 %v229, 1.0
  %v348 = vadd.f32 %v231, 1.0
  %v349 = vadd.f32 %v233, 1.0
  %v350 = vadd.f32 %v235, 1.0
  %v351 = vadd.f32 %v237, 1.0
  %v352 = vadd.f32 %v239, 1.0
  %v353 = vadd.f32 %v241, 1.0
  %v354 = vadd.f32 %v243, 1.0
  %v355 = vadd.f32 %v245, 1.0
  %v356 = vadd.f32 %v247, 1.0
  %v357 = vadd.f32 %v249, 1.0
  %v358 = vadd.f32 %v251, 1.0
  %v359 = vadd.f32 %v253, 1.0
  %v360 = vadd.f32 %v255, 1.0
  %v361 = vadd.f32 %v257, 1.0
  %v362 = vadd.f32 %v259, 1.0
  %v363 = vadd.f32 %v261, 1.0
  %v364 = vadd.f32 %v263, 1.0
  %v365 = vadd.f32 %v265, 1.0
  %v366 = vadd.f32 %v267, 1.0
  %v367 = vadd.f32 %v269, 1.0
  %v368 = vadd.f32 %v271, 1.0
  %v369 = vadd.f32 %v273, 1.0
  %v370 = vadd.f32 %v275, 1.0
  %v371 = vadd.f32 %v277, 1.0
  %v372 = vadd.f32 %v279, 1.0
  %v373 = vadd.f32 %v281, 1.0
  %v374 = vadd.f32 %v283, 1.0
  %v375 = vadd.f32 %v285, 1.0
  %v376 = vadd.f32 %v287, 1.0
  %v377 = vadd.f32 %v289, 1.0
  %v378 = vadd.f32 %v291, 1.0
  %v379 = vadd.f32 %v293, 1.0
  %v380 = vadd.f32 %v295, 1.0
  %v381 = vadd.f32 %v297, 1.0
  %v382 = vadd.f32 %v299, 1.0
  %v383 = vadd.f32 %v301, 1.0
  %v384 = vadd.f32 %v303, 1.0
  %v385 = vadd.f32 %v305, 1.0
  %v386 = vadd.f32 %v307, 1.0
  %v387 = vadd.f32 %v309, 1.0
  %v388 = vadd.f32 %v311, 1.0
  %v389 = vadd.f32 %v313, 1.0
  %v390 = vadd.f32 %v315, 1.0
  %v391 = vadd.f32 %v317, 1.0
  %v392 = vadd.f32 %v319, 1.0
  %v393 = vadd.f32 %v321, 1.0
  %v394 = vadd.f32 %v323, 1.0
  %v395 = vadd.f32 %v325, 1.0
  %v396 = vadd.f32 %v327, 1.0
  %v397 = vadd.f32 %v329, 1.0
  %v398 = vadd.f32 %v331, 1.0
  %v399 = vadd.f32 %v333, 1.0
  %v400 = vadd.f32 %v335, 1.0
  %v401 = vadd.f32 %v337, 1.0
  %v402 = vrcp.pop %v338
  %v403 = vmul.f32 1.0, %v402
  %v404 = vrcp.pop %v339
  %v405 = vmul.f32 1.0, %v404
  %v406 = vrcp.pop %v340
  %v407 = vmul.f32 1.0, %v406
  %v408 = vrcp.pop %v341
  %v409 = vmul.f32 1.0, %v408
  %v410 = vrcp.pop %v342
  %v411 = vmul.f32 1.0, %v410
  %v412 = vrcp.pop %v343
  %v413 = vmul.f32 1.0, %v412
  %v414 = vrcp.pop %v344
  %v415 = vmul.f32 1.0, %v414
  %v416 = vrcp.pop %v345
  %v417 = vmul.f32 1.0, %v416
  %v418 = vrcp.pop %v346
  %v419 = vmul.f32 1.0, %v418
  %v420 = vrcp.pop %v347
  %v421 = vmul.f32 1.0, %v420
  %v422 = vrcp.pop %v348
  %v423 = vmul.f32 1.0, %v422
  %v424 = vrcp.pop %v349
  %v425 = vmul.f32 1.0, %v424
  %v426 = vrcp.pop %v350
  %v427 = vmul.f32 1.0, %v426
  %v428 = vrcp.pop %v351
  %v429 = vmul.f32 1.0, %v428
  %v430 = vrcp.pop %v352
  %v431 = vmul.f32 1.0, %v430
  %v432 = vrcp.pop %v353
  %v433 = vmul.f32 1.0, %v432
  %v434 = vrcp.pop %v354
  %v435 = vmul.f32 1.0, %v434
  %v436 = vrcp.pop %v355
  %v437 = vmul.f32 1.0, %v436
  %v438 = vrcp.pop %v356
  %v439 = vmul.f32 1.0, %v438
  %v440 = vrcp.pop %v357
  %v441 = vmul.f32 1.0, %v440
  %v442 = vrcp.pop %v358
  %v443 = vmul.f32 1.0, %v442
  %v444 = vrcp.pop %v359
  %v445 = vmul.f32 1.0, %v444
  %v446 = vrcp.pop %v360
  %v447 = vmul.f32 1.0, %v446
  %v448 = vrcp.pop %v361
  %v449 = vmul.f32 1.0, %v448
  %v450 = vrcp.pop %v362
  %v451 = vmul.f32 1.0, %v450
  %v452 = vrcp.pop %v363
  %v453 = vmul.f32 1.0, %v452
  %v454 = vrcp.pop %v364
  %v455 = vmul.f32 1.0, %v454
  %v456 = vrcp.pop %v365
  %v457 = vmul.f32 1.0, %v456
  %v458 = vrcp.pop %v366
  %v459 = vmul.f32 1.0, %v458
  %v460 = vrcp.pop %v367
  %v461 = vmul.f32 1.0, %v460
  %v462 = vrcp.pop %v368
  %v463 = vmul.f32 1.0, %v462
  %v464 = vrcp.pop %v369
  %v465 = vmul.f32 1.0, %v464
  %v466 = vrcp.pop %v370
  %v467 = vmul.f32 1.0, %v466
  %v468 = vrcp.pop %v371
  %v469 = vmul.f32 1.0, %v468
  %v470 = vrcp.pop %v372
  %v471 = vmul.f32 1.0, %v470
  %v472 = vrcp.pop %v373
  %v473 = vmul.f32 1.0, %v472
  %v474 = vrcp.pop %v374
  %v475 = vmul.f32 1.0, %v474
  %v476 = vrcp.pop %v375
  %v477 = vmul.f32 1.0, %v476
  %v478 = vrcp.pop %v376
  %v479 = vmul.f32 1.0, %v478
  %v480 = vrcp.pop %v377
  %v481 = vmul.f32 1.0, %v480
  %v482 = vrcp.pop %v378
  %v483 = vmul.f32 1.0, %v482
  %v484 = vrcp.pop %v379
  %v485 = vmul.f32 1.0, %v484
  %v486 = vrcp.pop %v380
  %v487 = vmul.f32 1.0, %v486
  %v488 = vrcp.pop %v381
  %v489 = vmul.f32 1.0, %v488
  %v490 = vrcp.pop %v382
  %v491 = vmul.f32 1.0, %v490
  %v492 = vrcp.pop %v383
  %v493 = vmul.f32 1.0, %v492
  %v494 = vrcp.pop %v384
  %v495 = vmul.f32 1.0, %v494
  %v496 = vrcp.pop %v385
  %v497 = vmul.f32 1.0, %v496
  %v498 = vrcp.pop %v386
  %v499 = vmul.f32 1.0, %v498
  %v500 = vrcp.pop %v387
  %v501 = vmul.f32 1.0, %v500
  %v502 = vrcp.pop %v388
  %v503 = vmul.f32 1.0, %v502
  %v504 = vrcp.pop %v389
  %v505 = vmul.f32 1.0, %v504
  %v506 = vrcp.pop %v390
  %v507 = vmul.f32 1.0, %v506
  %v508 = vrcp.pop %v391
  %v509 = vmul.f32 1.0, %v508
  %v510 = vrcp.pop %v392
  %v511 = vmul.f32 1.0, %v510
  %v512 = vrcp.pop %v393
  %v513 = vmul.f32 1.0, %v512
  %v514 = vrcp.pop %v394
  %v515 = vmul.f32 1.0, %v514
  %v516 = vrcp.pop %v395
  %v517 = vmul.f32 1.0, %v516
  %v518 = vrcp.pop %v396
  %v519 = vmul.f32 1.0, %v518
  %v520 = vrcp.pop %v397
  %v521 = vmul.f32 1.0, %v520
  %v522 = vrcp.pop %v398
  %v523 = vmul.f32 1.0, %v522
  %v524 = vrcp.pop %v399
  %v525 = vmul.f32 1.0, %v524
  %v526 = vrcp.pop %v400
  %v527 = vmul.f32 1.0, %v526
  %v528 = vrcp.pop %v401
  %v529 = vmul.f32 1.0, %v528
  %530 = vst [vmem:[%s2] sm:$0xff] %v403
  %531 = vst [vmem:[%s2 + $0x8] sm:$0xff] %v405
  %532 = vst [vmem:[%s2 + $0x10] sm:$0xff] %v407
  %533 = vst [vmem:[%s2 + $0x18] sm:$0xff] %v409
  %534 = vst [vmem:[%s2 + $0x20] sm:$0xff] %v411
  %535 = vst [vmem:[%s2 + $0x28] sm:$0xff] %v413
  %536 = vst [vmem:[%s2 + $0x30] sm:$0xff] %v415
  %537 = vst [vmem:[%s2 + $0x38] sm:$0xff] %v417
  %538 = vst [vmem:[%s2 + $0x40] sm:$0xff] %v419
  %539 = vst [vmem:[%s2 + $0x48] sm:$0xff] %v421
  %540 = vst [vmem:[%s2 + $0x50] sm:$0xff] %v423
  %541 = vst [vmem:[%s2 + $0x58] sm:$0xff] %v425
  %542 = vst [vmem:[%s2 + $0x60] sm:$0xff] %v427
  %543 = vst [vmem:[%s2 + $0x68] sm:$0xff] %v429
  %544 = vst [vmem:[%s2 + $0x70] sm:$0xff] %v431
  %545 = vst [vmem:[%s2 + $0x78] sm:$0xff] %v433
  %546 = vst [vmem:[%s2 + $0x80] sm:$0xff] %v435
  %547 = vst [vmem:[%s2 + $0x88] sm:$0xff] %v437
  %548 = vst [vmem:[%s2 + $0x90] sm:$0xff] %v439
  %549 = vst [vmem:[%s2 + $0x98] sm:$0xff] %v441
  %550 = vst [vmem:[%s2 + $0xa0] sm:$0xff] %v443
  %551 = vst [vmem:[%s2 + $0xa8] sm:$0xff] %v445
  %552 = vst [vmem:[%s2 + $0xb0] sm:$0xff] %v447
  %553 = vst [vmem:[%s2 + $0xb8] sm:$0xff] %v449
  %554 = vst [vmem:[%s2 + $0xc0] sm:$0xff] %v451
  %555 = vst [vmem:[%s2 + $0xc8] sm:$0xff] %v453
  %556 = vst [vmem:[%s2 + $0xd0] sm:$0xff] %v455
  %557 = vst [vmem:[%s2 + $0xd8] sm:$0xff] %v457
  %558 = vst [vmem:[%s2 + $0xe0] sm:$0xff] %v459
  %559 = vst [vmem:[%s2 + $0xe8] sm:$0xff] %v461
  %560 = vst [vmem:[%s2 + $0xf0] sm:$0xff] %v463
  %561 = vst [vmem:[%s2 + $0xf8] sm:$0xff] %v465
  %562 = vst [vmem:[%s2 + $0x100] sm:$0xff] %v467
  %563 = vst [vmem:[%s2 + $0x108] sm:$0xff] %v469
  %564 = vst [vmem:[%s2 + $0x110] sm:$0xff] %v471
  %565 = vst [vmem:[%s2 + $0x118] sm:$0xff] %v473
  %566 = vst [vmem:[%s2 + $0x120] sm:$0xff] %v475
  %567 = vst [vmem:[%s2 + $0x128] sm:$0xff] %v477
  %568 = vst [vmem:[%s2 + $0x130] sm:$0xff] %v479
  %569 = vst [vmem:[%s2 + $0x138] sm:$0xff] %v481
  %570 = vst [vmem:[%s2 + $0x140] sm:$0xff] %v483
  %571 = vst [vmem:[%s2 + $0x148] sm:$0xff] %v485
  %572 = vst [vmem:[%s2 + $0x150] sm:$0xff] %v487
  %573 = vst [vmem:[%s2 + $0x158] sm:$0xff] %v489
  %574 = vst [vmem:[%s2 + $0x160] sm:$0xff] %v491
  %575 = vst [vmem:[%s2 + $0x168] sm:$0xff] %v493
  %576 = vst [vmem:[%s2 + $0x170] sm:$0xff] %v495
  %577 = vst [vmem:[%s2 + $0x178] sm:$0xff] %v497
  %578 = vst [vmem:[%s2 + $0x180] sm:$0xff] %v499
  %579 = vst [vmem:[%s2 + $0x188] sm:$0xff] %v501
  %580 = vst [vmem:[%s2 + $0x190] sm:$0xff] %v503
  %581 = vst [vmem:[%s2 + $0x198] sm:$0xff] %v505
  %582 = vst [vmem:[%s2 + $0x1a0] sm:$0xff] %v507
  %583 = vst [vmem:[%s2 + $0x1a8] sm:$0xff] %v509
  %584 = vst [vmem:[%s2 + $0x1b0] sm:$0xff] %v511
  %585 = vst [vmem:[%s2 + $0x1b8] sm:$0xff] %v513
  %586 = vst [vmem:[%s2 + $0x1c0] sm:$0xff] %v515
  %587 = vst [vmem:[%s2 + $0x1c8] sm:$0xff] %v517
  %588 = vst [vmem:[%s2 + $0x1d0] sm:$0xff] %v519
  %589 = vst [vmem:[%s2 + $0x1d8] sm:$0xff] %v521
  %590 = vst [vmem:[%s2 + $0x1e0] sm:$0xff] %v523
  %591 = vst [vmem:[%s2 + $0x1e8] sm:$0xff] %v525
  %592 = vst [vmem:[%s2 + $0x1f0] sm:$0xff] %v527
  %593 = vst [vmem:[%s2 + $0x1f8] sm:$0xff] %v529
  // Predicated region
  $region10: #{vae_forward.27} parent=0 // pred_check
    _
  $region11: #{vae_forward.27} parent=0 // pred_check_branch
    %595 = sbr.rel (0) target = $region13
  $region12: #{vae_forward.27} parent=0 // pred_region
    _
  $region13: #{vae_forward.27} parent=0 // pred_fallthru
    _
  // Predicated region
  $region14: #{vae_forward.27} parent=0 // pred_check
    _
  $region15: #{vae_forward.27} parent=0 // pred_check_branch
    %597 = sbr.rel (0) target = $region17
  $region16: #{vae_forward.27} parent=0 // pred_region
    _
  $region17: #{vae_forward.27} parent=0 // pred_fallthru
    _

</llo_original>
